<compile_context>
chip_gen: v6e
topology: v6e:2x2x1
jax: 0.10.0
libtpu: 0.0.40
codegen_flags: <defaults>
</compile_context>

<pallas_src>
import functools
import math

import jax
import jax.numpy as jnp
from jax.experimental import pallas as pl
from jax.experimental.pallas import tpu as pltpu


def _attention_kernel(*refs, num_heads, has_mask, mask_is_shared):
    if has_mask:
        x_ref, mask_ref, wq_ref, wk_ref, wv_ref, wo_ref, bo_ref, o_ref = refs
    else:
        x_ref, wq_ref, wk_ref, wv_ref, wo_ref, bo_ref, o_ref = refs
        mask_ref = None

    Bt, N, C = x_ref.shape
    H = num_heads
    hd = C // H
    G = H * Bt  # (head, batch) flattened as a single batch dim for the MXU

    # ---- fused QKV projection: heads batched on the MXU, bf16 in / f32 accumulate ----
    xb = x_ref[...].astype(jnp.bfloat16).reshape(Bt * N, C)
    x_h = jnp.broadcast_to(xb, (H, Bt * N, C))  # broadcast once, reused by q/k/v

    q = jnp.einsum('hnc,hcd->hnd', x_h, wq_ref[...],
                   preferred_element_type=jnp.float32)  # (H, Bt*N, hd); scale pre-folded
    k = jnp.einsum('hnc,hcd->hnd', x_h, wk_ref[...],
                   preferred_element_type=jnp.float32)
    v = jnp.einsum('hnc,hcd->hnd', x_h, wv_ref[...],
                   preferred_element_type=jnp.float32)

    # (H, Bt*N, hd) -> (H*Bt, N, hd): pure leading/sublane split (row-major order identical)
    q3 = q.reshape(G, N, hd).astype(jnp.bfloat16)
    k3 = k.reshape(G, N, hd).astype(jnp.bfloat16)
    v3 = v.reshape(G, N, hd).astype(jnp.bfloat16)

    # ---- scaled-dot-product attention, single batched matmul over (head, batch) ----
    s = jnp.einsum('gqd,gkd->gqk', q3, k3,
                   preferred_element_type=jnp.float32)  # (G, N, N), f32 scores

    if has_mask:
        if mask_is_shared:
            s = s + mask_ref[0][None, :, :]  # (N, N) broadcast over all heads/batches
        else:
            s = (s.reshape(H, Bt, N, N) + mask_ref[...][None]).reshape(G, N, N)

    # numerically stable softmax, kept in f32; reciprocal runs on the (otherwise idle) EUP
    s = s - jnp.max(s, axis=-1, keepdims=True)
    p = jnp.exp(s)
    p = p * pl.reciprocal(jnp.sum(p, axis=-1, keepdims=True), approx=True)

    ctx = jnp.einsum('gqk,gkd->gqd', p.astype(jnp.bfloat16), v3,
                     preferred_element_type=jnp.float32)  # (G, N, hd)

    # ---- output projection: per-head batched matmul + sum over heads (no concat/relayout) ----
    ctx_h = ctx.reshape(H, Bt * N, hd).astype(jnp.bfloat16)
    out_h = jnp.einsum('hnd,hdc->hnc', ctx_h, wo_ref[...],
                       preferred_element_type=jnp.float32)  # (H, Bt*N, C)
    out = jnp.sum(out_h, axis=0) + bo_ref[...]              # (Bt*N, C) + (1, C)

    o_ref[...] = out.reshape(Bt, N, C).astype(o_ref.dtype)


def attention_selfmask(x, wqkv, wproj, bproj, mask=None, num_heads=8, qk_scale=None):
    """Pallas implementation of Attention_SelfMask.forward (return_attention=False)."""
    B, N, C = x.shape
    H = num_heads
    assert C % H == 0
    hd = C // H
    assert wqkv.shape == (3 * C, C)
    scale = (hd ** -0.5) if qk_scale is None else qk_scale  # don't treat 0.0 as None

    # --- host-side weight reordering: (3C, C) -> per-head (H, C, hd) bf16 slabs ---
    w = wqkv.reshape(3, H, hd, C)                         # [q|k|v] x head x head_dim x in
    wq = (jnp.transpose(w[0], (0, 2, 1)) * scale).astype(jnp.bfloat16)  # scale folded in
    wk = jnp.transpose(w[1], (0, 2, 1)).astype(jnp.bfloat16)            # (H, C, hd)
    wv = jnp.transpose(w[2], (0, 2, 1)).astype(jnp.bfloat16)
    # proj: y = ctx @ wproj.T with ctx columns in head-concat order -> (H, hd, C)
    wo = jnp.transpose(wproj, (1, 0)).reshape(H, hd, C).astype(jnp.bfloat16)
    bo = bproj.reshape(1, C).astype(jnp.float32)

    # --- mask handling: no zero-mask traffic; shared masks stay (1, N, N) ---
    has_mask = mask is not None
    mask_is_shared = False
    if has_mask:
        mask_arr = jnp.asarray(mask, dtype=jnp.float32)
        if mask_arr.ndim == 2:
            mask_arr = mask_arr[None]
        if mask_arr.shape[0] == 1:
            mask_is_shared = True
        else:
            assert mask_arr.shape == (B, N, N)

    # --- batch tiling: pack batch elements per step, keep >=2 steps for dual-TC (v7x) ---
    block_b = math.gcd(B, 8)
    if B // block_b < 2 and block_b > 1:
        block_b //= 2

    in_specs = [pl.BlockSpec((block_b, N, C), lambda b: (b, 0, 0))]
    inputs = [x]
    if has_mask:
        if mask_is_shared:
            in_specs.append(pl.BlockSpec((1, N, N), lambda b: (0, 0, 0)))
        else:
            in_specs.append(pl.BlockSpec((block_b, N, N), lambda b: (b, 0, 0)))
        inputs.append(mask_arr)
    in_specs += [
        pl.BlockSpec((H, C, hd), lambda b: (0, 0, 0)),   # wq (grid-invariant)
        pl.BlockSpec((H, C, hd), lambda b: (0, 0, 0)),   # wk
        pl.BlockSpec((H, C, hd), lambda b: (0, 0, 0)),   # wv
        pl.BlockSpec((H, hd, C), lambda b: (0, 0, 0)),   # wo
        pl.BlockSpec((1, C), lambda b: (0, 0)),          # proj bias
    ]
    inputs += [wq, wk, wv, wo, bo]

    kernel = functools.partial(_attention_kernel, num_heads=H,
                               has_mask=has_mask, mask_is_shared=mask_is_shared)

    return pl.pallas_call(
        kernel,
        out_shape=jax.ShapeDtypeStruct((B, N, C), x.dtype),
        grid=(B // block_b,),
        in_specs=in_specs,
        out_specs=pl.BlockSpec((block_b, N, C), lambda b: (b, 0, 0)),
        compiler_params=pltpu.CompilerParams(dimension_semantics=("parallel",)),
    )(*inputs)


def _reference(x, wqkv, wproj, bproj, mask, num_heads):
    """Plain-JAX f32 mirror of the PyTorch forward, for verification."""
    B, N, C = x.shape
    hd = C // num_heads
    scale = hd ** -0.5
    qkv = x @ wqkv.T
    qkv = qkv.reshape(B, N, 3, num_heads, hd).transpose(2, 0, 3, 1, 4)
    q, k, v = qkv[0], qkv[1], qkv[2]                      # (B, H, N, hd)
    attn = jnp.einsum('bhqd,bhkd->bhqk', q, k) * scale
    if mask is not None:
        m = mask if mask.ndim == 3 else mask[None]
        attn = attn + m[:, None, :, :]
    attn = jax.nn.softmax(attn, axis=-1)
    out = jnp.einsum('bhqk,bhkd->bhqd', attn, v)
    out = out.transpose(0, 2, 1, 3).reshape(B, N, C)
    return out @ wproj.T + bproj


if __name__ == "__main__":
    B, N, C, H = 2, 16, 64, 8

    key = jax.random.PRNGKey(0)
    k_x, k_qkv, k_proj, k_bias, k_mask = jax.random.split(key, 5)

    x = jax.random.normal(k_x, (B, N, C), dtype=jnp.float32)
    wqkv = 0.02 * jax.random.normal(k_qkv, (3 * C, C), dtype=jnp.float32)
    wproj = 0.02 * jax.random.normal(k_proj, (C, C), dtype=jnp.float32)
    bproj = 0.01 * jax.random.normal(k_bias, (C,), dtype=jnp.float32)
    mask = jax.random.normal(k_mask, (B, N, N), dtype=jnp.float32)

    # bf16 MXU operands with f32 accumulation -> relaxed tolerance vs f32 reference.
    tol = dict(rtol=2e-2, atol=2e-2)

    # 1) per-batch additive mask
    out = jax.block_until_ready(
        attention_selfmask(x, wqkv, wproj, bproj, mask=mask, num_heads=H))
    ref = _reference(x, wqkv, wproj, bproj, mask, H)
    assert out.shape == (B, N, C)
    assert jnp.allclose(out, ref, **tol), "mismatch vs reference (per-batch mask)"

    # 2) shared (1, N, N) mask -- DMAed once, not broadcast to (B, N, N)
    mask_shared = mask[:1]
    out_s = jax.block_until_ready(
        attention_selfmask(x, wqkv, wproj, bproj, mask=mask_shared, num_heads=H))
    ref_s = _reference(x, wqkv, wproj, bproj, mask_shared, H)
    assert jnp.allclose(out_s, ref_s, **tol), "mismatch vs reference (shared mask)"

    # 3) mask=None -> mask-free kernel variant (no zero-mask HBM traffic)
    out_n = jax.block_until_ready(
        attention_selfmask(x, wqkv, wproj, bproj, mask=None, num_heads=H))
    ref_n = _reference(x, wqkv, wproj, bproj, None, H)
    assert jnp.allclose(out_n, ref_n, **tol), "mismatch vs reference (no mask)"

    print("KERNEL_OK")
</pallas_src>

<mosaic_0001>
module attributes {stable_mosaic.version = 11 : i64} {
  func.func @_attention_kernel(%arg0: i32, %arg1: memref<1x16x64xf32, #tpu.memory_space<vmem>>, %arg2: memref<1x16x16xf32, #tpu.memory_space<vmem>>, %arg3: memref<8x64x8xbf16, #tpu.memory_space<vmem>>, %arg4: memref<8x64x8xbf16, #tpu.memory_space<vmem>>, %arg5: memref<8x64x8xbf16, #tpu.memory_space<vmem>>, %arg6: memref<8x8x64xbf16, #tpu.memory_space<vmem>>, %arg7: memref<1x64xf32, #tpu.memory_space<vmem>>, %arg8: memref<1x16x64xf32, #tpu.memory_space<vmem>>) attributes {dimension_semantics = [#tpu.dimension_semantics<parallel>], iteration_bounds = array<i64: 2>, scalar_prefetch = 0 : i64, scratch_operands = 0 : i64, tpu.core_type = #tpu.core_type<tc>, window_params = [{transform_indices = @transform_0, window_bounds = array<i64: 1, 16, 64>}, {transform_indices = @transform_1, window_bounds = array<i64: 1, 16, 16>}, {pipeline_mode = #tpu.pipeline_mode<synchronous>, transform_indices = @transform_2, window_bounds = array<i64: 8, 64, 8>}, {pipeline_mode = #tpu.pipeline_mode<synchronous>, transform_indices = @transform_3, window_bounds = array<i64: 8, 64, 8>}, {pipeline_mode = #tpu.pipeline_mode<synchronous>, transform_indices = @transform_4, window_bounds = array<i64: 8, 64, 8>}, {pipeline_mode = #tpu.pipeline_mode<synchronous>, transform_indices = @transform_5, window_bounds = array<i64: 8, 8, 64>}, {pipeline_mode = #tpu.pipeline_mode<synchronous>, transform_indices = @transform_6, window_bounds = array<i64: 1, 64>}, {transform_indices = @transform_7, window_bounds = array<i64: 1, 16, 64>}]} {
    %c0 = arith.constant 0 : index
    %c0_0 = arith.constant 0 : index
    %c0_1 = arith.constant 0 : index
    %0 = vector.load %arg1[%c0, %c0_0, %c0_1] : memref<1x16x64xf32, #tpu.memory_space<vmem>>, vector<1x16x64xf32>
    %1 = arith.truncf %0 : vector<1x16x64xf32> to vector<1x16x64xbf16>
    %2 = vector.shape_cast %1 : vector<1x16x64xbf16> to vector<16x64xbf16>
    %3 = vector.shape_cast %2 : vector<16x64xbf16> to vector<1x16x64xbf16>
    %4 = vector.broadcast %3 : vector<1x16x64xbf16> to vector<8x16x64xbf16>
    %c0_2 = arith.constant 0 : index
    %c0_3 = arith.constant 0 : index
    %c0_4 = arith.constant 0 : index
    %5 = vector.load %arg3[%c0_2, %c0_3, %c0_4] : memref<8x64x8xbf16, #tpu.memory_space<vmem>>, vector<8x64x8xbf16>
    "tpu.trace_start"() <{level = 10 : i32, message = "hnc,hcd->hnd"}> : () -> ()
    %cst = arith.constant dense<0.000000e+00> : vector<8x16x8xf32>
    %6 = tpu.matmul %4, %5, %cst {dimension_numbers = #tpu.dot_dimension_numbers<[2], [1], [1], [2], [0, 0, 0, 1, 1, 2], [0], [0]>} : vector<8x16x64xbf16>, vector<8x64x8xbf16>, vector<8x16x8xf32> -> vector<8x16x8xf32>
    "tpu.trace_stop"() : () -> ()
    %c0_5 = arith.constant 0 : index
    %c0_6 = arith.constant 0 : index
    %c0_7 = arith.constant 0 : index
    %7 = vector.load %arg4[%c0_5, %c0_6, %c0_7] : memref<8x64x8xbf16, #tpu.memory_space<vmem>>, vector<8x64x8xbf16>
    "tpu.trace_start"() <{level = 10 : i32, message = "hnc,hcd->hnd"}> : () -> ()
    %cst_8 = arith.constant dense<0.000000e+00> : vector<8x16x8xf32>
    %8 = tpu.matmul %4, %7, %cst_8 {dimension_numbers = #tpu.dot_dimension_numbers<[2], [1], [1], [2], [0, 0, 0, 1, 1, 2], [0], [0]>} : vector<8x16x64xbf16>, vector<8x64x8xbf16>, vector<8x16x8xf32> -> vector<8x16x8xf32>
    "tpu.trace_stop"() : () -> ()
    %c0_9 = arith.constant 0 : index
    %c0_10 = arith.constant 0 : index
    %c0_11 = arith.constant 0 : index
    %9 = vector.load %arg5[%c0_9, %c0_10, %c0_11] : memref<8x64x8xbf16, #tpu.memory_space<vmem>>, vector<8x64x8xbf16>
    "tpu.trace_start"() <{level = 10 : i32, message = "hnc,hcd->hnd"}> : () -> ()
    %cst_12 = arith.constant dense<0.000000e+00> : vector<8x16x8xf32>
    %10 = tpu.matmul %4, %9, %cst_12 {dimension_numbers = #tpu.dot_dimension_numbers<[2], [1], [1], [2], [0, 0, 0, 1, 1, 2], [0], [0]>} : vector<8x16x64xbf16>, vector<8x64x8xbf16>, vector<8x16x8xf32> -> vector<8x16x8xf32>
    "tpu.trace_stop"() : () -> ()
    %11 = arith.truncf %6 : vector<8x16x8xf32> to vector<8x16x8xbf16>
    %12 = arith.truncf %8 : vector<8x16x8xf32> to vector<8x16x8xbf16>
    %13 = arith.truncf %10 : vector<8x16x8xf32> to vector<8x16x8xbf16>
    "tpu.trace_start"() <{level = 10 : i32, message = "gqd,gkd->gqk"}> : () -> ()
    %cst_13 = arith.constant dense<0.000000e+00> : vector<8x16x16xf32>
    %14 = tpu.matmul %11, %12, %cst_13 {dimension_numbers = #tpu.dot_dimension_numbers<[2], [2], [1], [1], [0, 0, 0, 1, 1, 1], [0], [0]>} : vector<8x16x8xbf16>, vector<8x16x8xbf16>, vector<8x16x16xf32> -> vector<8x16x16xf32>
    "tpu.trace_stop"() : () -> ()
    %15 = vector.shape_cast %14 : vector<8x16x16xf32> to vector<8x1x16x16xf32>
    %c0_14 = arith.constant 0 : index
    %c0_15 = arith.constant 0 : index
    %c0_16 = arith.constant 0 : index
    %16 = vector.load %arg2[%c0_14, %c0_15, %c0_16] : memref<1x16x16xf32, #tpu.memory_space<vmem>>, vector<1x16x16xf32>
    %17 = vector.shape_cast %16 : vector<1x16x16xf32> to vector<1x1x16x16xf32>
    %18 = vector.broadcast %17 : vector<1x1x16x16xf32> to vector<8x1x16x16xf32>
    %19 = arith.addf %15, %18 : vector<8x1x16x16xf32>
    %20 = vector.shape_cast %19 : vector<8x1x16x16xf32> to vector<8x16x16xf32>
    %cst_17 = arith.constant dense<0xFF800000> : vector<8x16xf32>
    %21 = vector.multi_reduction <maximumf>, %20, %cst_17 [2] : vector<8x16x16xf32> to vector<8x16xf32>
    %22 = vector.shape_cast %21 : vector<8x16xf32> to vector<8x16x1xf32>
    %23 = vector.broadcast %22 : vector<8x16x1xf32> to vector<8x16x16xf32>
    %24 = arith.subf %20, %23 : vector<8x16x16xf32>
    %25 = math.exp %24 : vector<8x16x16xf32>
    %cst_18 = arith.constant dense<0.000000e+00> : vector<8x16xf32>
    %26 = vector.multi_reduction <add>, %25, %cst_18 [2] : vector<8x16x16xf32> to vector<8x16xf32>
    %27 = vector.shape_cast %26 : vector<8x16xf32> to vector<8x16x1xf32>
    %28 = tpu.reciprocal %27 {approx = true} : vector<8x16x1xf32> -> vector<8x16x1xf32>
    %29 = vector.broadcast %28 : vector<8x16x1xf32> to vector<8x16x16xf32>
    %30 = arith.mulf %25, %29 : vector<8x16x16xf32>
    %31 = arith.truncf %30 : vector<8x16x16xf32> to vector<8x16x16xbf16>
    "tpu.trace_start"() <{level = 10 : i32, message = "gqk,gkd->gqd"}> : () -> ()
    %cst_19 = arith.constant dense<0.000000e+00> : vector<8x16x8xf32>
    %32 = tpu.matmul %31, %13, %cst_19 {dimension_numbers = #tpu.dot_dimension_numbers<[2], [1], [1], [2], [0, 0, 0, 1, 1, 2], [0], [0]>} : vector<8x16x16xbf16>, vector<8x16x8xbf16>, vector<8x16x8xf32> -> vector<8x16x8xf32>
    "tpu.trace_stop"() : () -> ()
    %33 = arith.truncf %32 : vector<8x16x8xf32> to vector<8x16x8xbf16>
    %c0_20 = arith.constant 0 : index
    %c0_21 = arith.constant 0 : index
    %c0_22 = arith.constant 0 : index
    %34 = vector.load %arg6[%c0_20, %c0_21, %c0_22] : memref<8x8x64xbf16, #tpu.memory_space<vmem>>, vector<8x8x64xbf16>
    "tpu.trace_start"() <{level = 10 : i32, message = "hnd,hdc->hnc"}> : () -> ()
    %cst_23 = arith.constant dense<0.000000e+00> : vector<8x16x64xf32>
    %35 = tpu.matmul %33, %34, %cst_23 {dimension_numbers = #tpu.dot_dimension_numbers<[2], [1], [1], [2], [0, 0, 0, 1, 1, 2], [0], [0]>} : vector<8x16x8xbf16>, vector<8x8x64xbf16>, vector<8x16x64xf32> -> vector<8x16x64xf32>
    "tpu.trace_stop"() : () -> ()
    %cst_24 = arith.constant dense<0.000000e+00> : vector<16x64xf32>
    %36 = vector.multi_reduction <add>, %35, %cst_24 [0] : vector<8x16x64xf32> to vector<16x64xf32>
    %c0_25 = arith.constant 0 : index
    %c0_26 = arith.constant 0 : index
    %37 = vector.load %arg7[%c0_25, %c0_26] : memref<1x64xf32, #tpu.memory_space<vmem>>, vector<1x64xf32>
    %38 = vector.broadcast %37 : vector<1x64xf32> to vector<16x64xf32>
    %39 = arith.addf %36, %38 : vector<16x64xf32>
    %40 = vector.shape_cast %39 : vector<16x64xf32> to vector<1x16x64xf32>
    %c0_27 = arith.constant 0 : index
    %c0_28 = arith.constant 0 : index
    %c0_29 = arith.constant 0 : index
    %41 = vector.load %arg8[%c0_27, %c0_28, %c0_29] : memref<1x16x64xf32, #tpu.memory_space<vmem>>, vector<1x16x64xf32>
    tpu.vector_store %arg8[%c0_27, %c0_28, %c0_29], %40 {strides = array<i32>} : memref<1x16x64xf32, #tpu.memory_space<vmem>>, vector<1x16x64xf32>,
    return
  }
  func.func @transform_0(%arg0: i32) -> (i32, i32, i32) {
    %c0_i32 = arith.constant 0 : i32
    %c0_i32_0 = arith.constant 0 : i32
    %c0_i32_1 = arith.constant 0 : i32
    return %arg0, %c0_i32, %c0_i32_0 : i32, i32, i32
  }
  func.func @transform_1(%arg0: i32) -> (i32, i32, i32) {
    %c0_i32 = arith.constant 0 : i32
    %c0_i32_0 = arith.constant 0 : i32
    %c0_i32_1 = arith.constant 0 : i32
    return %arg0, %c0_i32, %c0_i32_0 : i32, i32, i32
  }
  func.func @transform_2(%arg0: i32) -> (i32, i32, i32) {
    %c0_i32 = arith.constant 0 : i32
    %c0_i32_0 = arith.constant 0 : i32
    %c0_i32_1 = arith.constant 0 : i32
    %c0_i32_2 = arith.constant 0 : i32
    return %c0_i32, %c0_i32_0, %c0_i32_1 : i32, i32, i32
  }
  func.func @transform_3(%arg0: i32) -> (i32, i32, i32) {
    %c0_i32 = arith.constant 0 : i32
    %c0_i32_0 = arith.constant 0 : i32
    %c0_i32_1 = arith.constant 0 : i32
    %c0_i32_2 = arith.constant 0 : i32
    return %c0_i32, %c0_i32_0, %c0_i32_1 : i32, i32, i32
  }
  func.func @transform_4(%arg0: i32) -> (i32, i32, i32) {
    %c0_i32 = arith.constant 0 : i32
    %c0_i32_0 = arith.constant 0 : i32
    %c0_i32_1 = arith.constant 0 : i32
    %c0_i32_2 = arith.constant 0 : i32
    return %c0_i32, %c0_i32_0, %c0_i32_1 : i32, i32, i32
  }
  func.func @transform_5(%arg0: i32) -> (i32, i32, i32) {
    %c0_i32 = arith.constant 0 : i32
    %c0_i32_0 = arith.constant 0 : i32
    %c0_i32_1 = arith.constant 0 : i32
    %c0_i32_2 = arith.constant 0 : i32
    return %c0_i32, %c0_i32_0, %c0_i32_1 : i32, i32, i32
  }
  func.func @transform_6(%arg0: i32) -> (i32, i32) {
    %c0_i32 = arith.constant 0 : i32
    %c0_i32_0 = arith.constant 0 : i32
    %c0_i32_1 = arith.constant 0 : i32
    return %c0_i32, %c0_i32_0 : i32, i32
  }
  func.func @transform_7(%arg0: i32) -> (i32, i32, i32) {
    %c0_i32 = arith.constant 0 : i32
    %c0_i32_0 = arith.constant 0 : i32
    %c0_i32_1 = arith.constant 0 : i32
    return %arg0, %c0_i32, %c0_i32_0 : i32, i32, i32
  }
}

</mosaic_0001>

<llo_original>
// kernel: tpu_custom_call.1
$region0: #{tpu_custom_call.1}
  #allocation0 [shape = 'u32[]', space=smem, size = 0x4, offset = 0x4, fixed_abs, tag = 'smem constant byte address 0x4 - core index']
  #allocation1 [shape = 'u32[144,128]{1,0:T(1,128)}', space=vmem, size = 0x12000, scoped, tag = 'internal scratch']
  %s0 = inlined_call_operand.vmem [shape: f32[2,16,64], index: 0, kind: input, shape index: {}]
  %s1 = inlined_call_operand.vmem [shape: f32[2,16,16], index: 1, kind: input, shape index: {}]
  %s2 = inlined_call_operand.vmem [shape: bf16[8,64,8], index: 2, kind: input, shape index: {}]
  %s3 = inlined_call_operand.vmem [shape: bf16[8,64,8], index: 3, kind: input, shape index: {}]
  %s4 = inlined_call_operand.vmem [shape: bf16[8,64,8], index: 4, kind: input, shape index: {}]
  %s5 = inlined_call_operand.vmem [shape: bf16[8,8,64], index: 5, kind: input, shape index: {}]
  %s6 = inlined_call_operand.vmem [shape: f32[1,64], index: 6, kind: input, shape index: {}]
  %s7 = inlined_call_operand.hbm [shape: f32[2,16,64], index: 7, kind: output, shape index: {}]
  %s8 = sld [smem:[#allocation0]]
  $region61: #{tpu_custom_call.1} parent=0
    _
  %s10 = ssub.s32 1, %s8
  %s11 = scalar_select 0, %s10, %s8
  $region1: #{tpu_custom_call.1} parent=0
    #allocation2 [shape = 'u8[16384]{0}', space=vmem, size = 0x4000, scoped, tag = 'output window, operand 0']
    #allocation3 [shape = 's32[2]{0}', space=sflag, size = 0x8, scoped, tag = 'scoped memory for tpu_custom_call.1']
    %12 = vsyncpa [#allocation3], 0
    %s13 = scalar_lea.sflag [#allocation3], 1
    %14 = vsyncpa %s13, 0
    loop: start=0, step=1, limit=4
    $region2: #{tpu_custom_call.1} parent=1 // loop_pre_header
      _
    $region3: #{tpu_custom_call.1} parent=1 // loop_header
      %s16 = sphi 0, %s20
      %p17 = scmp.ge.s32.totalorder %s16, 4
      %s26 = sphi 0, %s28
      %s29 = sphi 0, %s26
      %s30 = sphi 0, %s29
      %s46 = sphi 0, %s30
      %s52 = sphi 0, %s54
      %s55 = sphi 0, %s52
      %s56 = sphi 0, %s55
      %s72 = sphi 0, %s56
      %s76 = sphi 0, %s76
      %s78 = sphi 0, %s76
      %s79 = sphi 0, %s78
      %s93 = sphi 0, %s79
      %s97 = sphi 0, %s97
      %s99 = sphi 0, %s97
      %s100 = sphi 0, %s99
      %s114 = sphi 0, %s100
      %s118 = sphi 0, %s118
      %s120 = sphi 0, %s118
      %s121 = sphi 0, %s120
      %s135 = sphi 0, %s121
      %s139 = sphi 0, %s139
      %s141 = sphi 0, %s139
      %s142 = sphi 0, %s141
      %s156 = sphi 0, %s142
      %s160 = sphi 0, %s160
      %s162 = sphi 0, %s160
      %s163 = sphi 0, %s162
      %s177 = sphi 0, %s163
      %s183 = sphi 0, %s185
      %s186 = sphi 0, %s183
      %s187 = sphi 0, %s186
      %s203 = sphi 0, %s187
    $region4: #{tpu_custom_call.1} parent=1 // loop_header_branch
      %19 = sbr.rel (%p17) target = $region8
    $region5: #{tpu_custom_call.1} parent=1 // loop_body
      %s21 = ssub.s32 %s16, 1
      %s22 = ssub.s32 %s16, 2
      %s23 = sadd.s32 %s16, 1
      %s24 = ssub.s32 %s16, %s23
      %p25 = scmp.eq.s32.totalorder %s24, 0
      %s27 = sadd.s32 %s26, 1
      %s28 = scalar_select %p25, %s26, %s27
      %p31 = pneg %p25
      %p32 = scmp.eq.s32.totalorder %s16, 1
      %p33 = por %p31, %p32
      %p34 = scmp.ne.s32.totalorder %s26, %s29
      %p35 = scmp.eq.s32.totalorder %s16, 0
      %p36 = por %p34, %p35
      %p37 = scmp.ne.s32.totalorder %s26, %s29
      %p38 = scmp.eq.s32.totalorder %s21, 1
      %p39 = por %p37, %p38
      %p40 = scmp.ne.s32.totalorder %s29, %s30
      %p41 = scmp.eq.s32.totalorder %s21, 0
      %p42 = por %p40, %p41
      %p43 = scmp.ne.s32.totalorder %s29, %s30
      %p44 = scmp.eq.s32.totalorder %s22, 1
      %p45 = por %p43, %p44
      %p47 = scmp.ne.s32.totalorder %s30, %s46
      %p48 = scmp.eq.s32.totalorder %s22, 0
      %p49 = por %p47, %p48
      %s50 = ssub.s32 %s16, %s23
      %p51 = scmp.eq.s32.totalorder %s50, 0
      %s53 = sadd.s32 %s52, 1
      %s54 = scalar_select %p51, %s52, %s53
      %p57 = pneg %p51
      %p58 = scmp.eq.s32.totalorder %s16, 1
      %p59 = por %p57, %p58
      %p60 = scmp.ne.s32.totalorder %s52, %s55
      %p61 = scmp.eq.s32.totalorder %s16, 0
      %p62 = por %p60, %p61
      %p63 = scmp.ne.s32.totalorder %s52, %s55
      %p64 = scmp.eq.s32.totalorder %s21, 1
      %p65 = por %p63, %p64
      %p66 = scmp.ne.s32.totalorder %s55, %s56
      %p67 = scmp.eq.s32.totalorder %s21, 0
      %p68 = por %p66, %p67
      %p69 = scmp.ne.s32.totalorder %s55, %s56
      %p70 = scmp.eq.s32.totalorder %s22, 1
      %p71 = por %p69, %p70
      %p73 = scmp.ne.s32.totalorder %s56, %s72
      %p74 = scmp.eq.s32.totalorder %s22, 0
      %p75 = por %p73, %p74
      %s77 = sadd.s32 %s76, 1
      %p80 = scmp.eq.s32.totalorder %s16, 1
      %p81 = scmp.ne.s32.totalorder %s76, %s78
      %p82 = scmp.eq.s32.totalorder %s16, 0
      %p83 = por %p81, %p82
      %p84 = scmp.ne.s32.totalorder %s76, %s78
      %p85 = scmp.eq.s32.totalorder %s21, 1
      %p86 = por %p84, %p85
      %p87 = scmp.ne.s32.totalorder %s78, %s79
      %p88 = scmp.eq.s32.totalorder %s21, 0
      %p89 = por %p87, %p88
      %p90 = scmp.ne.s32.totalorder %s78, %s79
      %p91 = scmp.eq.s32.totalorder %s22, 1
      %p92 = por %p90, %p91
      %p94 = scmp.ne.s32.totalorder %s79, %s93
      %p95 = scmp.eq.s32.totalorder %s22, 0
      %p96 = por %p94, %p95
      %s98 = sadd.s32 %s97, 1
      %p101 = scmp.eq.s32.totalorder %s16, 1
      %p102 = scmp.ne.s32.totalorder %s97, %s99
      %p103 = scmp.eq.s32.totalorder %s16, 0
      %p104 = por %p102, %p103
      %p105 = scmp.ne.s32.totalorder %s97, %s99
      %p106 = scmp.eq.s32.totalorder %s21, 1
      %p107 = por %p105, %p106
      %p108 = scmp.ne.s32.totalorder %s99, %s100
      %p109 = scmp.eq.s32.totalorder %s21, 0
      %p110 = por %p108, %p109
      %p111 = scmp.ne.s32.totalorder %s99, %s100
      %p112 = scmp.eq.s32.totalorder %s22, 1
      %p113 = por %p111, %p112
      %p115 = scmp.ne.s32.totalorder %s100, %s114
      %p116 = scmp.eq.s32.totalorder %s22, 0
      %p117 = por %p115, %p116
      %s119 = sadd.s32 %s118, 1
      %p122 = scmp.eq.s32.totalorder %s16, 1
      %p123 = scmp.ne.s32.totalorder %s118, %s120
      %p124 = scmp.eq.s32.totalorder %s16, 0
      %p125 = por %p123, %p124
      %p126 = scmp.ne.s32.totalorder %s118, %s120
      %p127 = scmp.eq.s32.totalorder %s21, 1
      %p128 = por %p126, %p127
      %p129 = scmp.ne.s32.totalorder %s120, %s121
      %p130 = scmp.eq.s32.totalorder %s21, 0
      %p131 = por %p129, %p130
      %p132 = scmp.ne.s32.totalorder %s120, %s121
      %p133 = scmp.eq.s32.totalorder %s22, 1
      %p134 = por %p132, %p133
      %p136 = scmp.ne.s32.totalorder %s121, %s135
      %p137 = scmp.eq.s32.totalorder %s22, 0
      %p138 = por %p136, %p137
      %s140 = sadd.s32 %s139, 1
      %p143 = scmp.eq.s32.totalorder %s16, 1
      %p144 = scmp.ne.s32.totalorder %s139, %s141
      %p145 = scmp.eq.s32.totalorder %s16, 0
      %p146 = por %p144, %p145
      %p147 = scmp.ne.s32.totalorder %s139, %s141
      %p148 = scmp.eq.s32.totalorder %s21, 1
      %p149 = por %p147, %p148
      %p150 = scmp.ne.s32.totalorder %s141, %s142
      %p151 = scmp.eq.s32.totalorder %s21, 0
      %p152 = por %p150, %p151
      %p153 = scmp.ne.s32.totalorder %s141, %s142
      %p154 = scmp.eq.s32.totalorder %s22, 1
      %p155 = por %p153, %p154
      %p157 = scmp.ne.s32.totalorder %s142, %s156
      %p158 = scmp.eq.s32.totalorder %s22, 0
      %p159 = por %p157, %p158
      %s161 = sadd.s32 %s160, 1
      %p164 = scmp.eq.s32.totalorder %s16, 1
      %p165 = scmp.ne.s32.totalorder %s160, %s162
      %p166 = scmp.eq.s32.totalorder %s16, 0
      %p167 = por %p165, %p166
      %p168 = scmp.ne.s32.totalorder %s160, %s162
      %p169 = scmp.eq.s32.totalorder %s21, 1
      %p170 = por %p168, %p169
      %p171 = scmp.ne.s32.totalorder %s162, %s163
      %p172 = scmp.eq.s32.totalorder %s21, 0
      %p173 = por %p171, %p172
      %p174 = scmp.ne.s32.totalorder %s162, %s163
      %p175 = scmp.eq.s32.totalorder %s22, 1
      %p176 = por %p174, %p175
      %p178 = scmp.ne.s32.totalorder %s163, %s177
      %p179 = scmp.eq.s32.totalorder %s22, 0
      %p180 = por %p178, %p179
      %s181 = ssub.s32 %s16, %s23
      %p182 = scmp.eq.s32.totalorder %s181, 0
      %s184 = sadd.s32 %s183, 1
      %s185 = scalar_select %p182, %s183, %s184
      %p188 = pneg %p182
      %p189 = scmp.eq.s32.totalorder %s16, 1
      %p190 = por %p188, %p189
      %p191 = scmp.ne.s32.totalorder %s183, %s186
      %p192 = scmp.eq.s32.totalorder %s16, 0
      %p193 = por %p191, %p192
      %p194 = scmp.ne.s32.totalorder %s183, %s186
      %p195 = scmp.eq.s32.totalorder %s21, 1
      %p196 = por %p194, %p195
      %p197 = scmp.ne.s32.totalorder %s186, %s187
      %p198 = scmp.eq.s32.totalorder %s21, 0
      %p199 = por %p197, %p198
      %p200 = scmp.ne.s32.totalorder %s186, %s187
      %p201 = scmp.eq.s32.totalorder %s22, 1
      %p202 = por %p200, %p201
      %p204 = scmp.ne.s32.totalorder %s187, %s203
      %p205 = scmp.eq.s32.totalorder %s22, 0
      %p206 = por %p204, %p205
      %p207 = scmp.le.s32.totalorder 1, %s16
      %p208 = scmp.lt.s32.totalorder %s16, 3
      %p209 = pnand %p207, %p208
      %p210 = pneg %p209
      // Predicated region
      $region9: #{tpu_custom_call.1} parent=5 // pred_check
        _
      $region10: #{tpu_custom_call.1} parent=5 // pred_check_branch
        %212 = sbr.rel (%p209) target = $region12
      $region11: #{tpu_custom_call.1} parent=5 // pred_region
        %s213 = ssub.s32 %s16, 1
        // Predicated region
        $region13: #{tpu_custom_call.1} parent=11 // pred_check
          %p214 = pneg %p89
        $region14: #{tpu_custom_call.1} parent=11 // pred_check_branch
          %216 = sbr.rel (%p214) target = $region16
        $region15: #{tpu_custom_call.1} parent=11 // pred_region
          _
        $region16: #{tpu_custom_call.1} parent=11 // pred_fallthru
          _
        // Predicated region
        $region17: #{tpu_custom_call.1} parent=11 // pred_check
          %p217 = pneg %p110
        $region18: #{tpu_custom_call.1} parent=11 // pred_check_branch
          %219 = sbr.rel (%p217) target = $region20
        $region19: #{tpu_custom_call.1} parent=11 // pred_region
          _
        $region20: #{tpu_custom_call.1} parent=11 // pred_fallthru
          _
        // Predicated region
        $region21: #{tpu_custom_call.1} parent=11 // pred_check
          %p220 = pneg %p131
        $region22: #{tpu_custom_call.1} parent=11 // pred_check_branch
          %222 = sbr.rel (%p220) target = $region24
        $region23: #{tpu_custom_call.1} parent=11 // pred_region
          _
        $region24: #{tpu_custom_call.1} parent=11 // pred_fallthru
          _
        // Predicated region
        $region25: #{tpu_custom_call.1} parent=11 // pred_check
          %p223 = pneg %p152
        $region26: #{tpu_custom_call.1} parent=11 // pred_check_branch
          %225 = sbr.rel (%p223) target = $region28
        $region27: #{tpu_custom_call.1} parent=11 // pred_region
          _
        $region28: #{tpu_custom_call.1} parent=11 // pred_fallthru
          _
        // Predicated region
        $region29: #{tpu_custom_call.1} parent=11 // pred_check
          %p226 = pneg %p173
        $region30: #{tpu_custom_call.1} parent=11 // pred_check_branch
          %228 = sbr.rel (%p226) target = $region32
        $region31: #{tpu_custom_call.1} parent=11 // pred_region
          _
        $region32: #{tpu_custom_call.1} parent=11 // pred_fallthru
          _
      $region12: #{tpu_custom_call.1} parent=5 // pred_fallthru
        _
      %p229 = scmp.lt.s32.totalorder %s16, 2
      // Predicated region
      $region33: #{tpu_custom_call.1} parent=5 // pred_check
        %p230 = pneg %p229
      $region34: #{tpu_custom_call.1} parent=5 // pred_check_branch
        %232 = sbr.rel (%p230) target = $region36
      $region35: #{tpu_custom_call.1} parent=5 // pred_region
        // Predicated region
        $region37: #{tpu_custom_call.1} parent=35 // pred_check
          %p233 = pneg %p36
        $region38: #{tpu_custom_call.1} parent=35 // pred_check_branch
          %235 = sbr.rel (%p233) target = $region40
        $region39: #{tpu_custom_call.1} parent=35 // pred_region
          %p236 = scmp.lt.s32.totalorder %s16, 1
          %s237 = scalar_select %p236, %s16, 1
          %s238 = smul.addr %s237, 2
          %s239 = smul.addr %s238, 8
          %s240 = scalar_lea.vmem %s0, %s239
        $region40: #{tpu_custom_call.1} parent=35 // pred_fallthru
          _
        // Predicated region
        $region41: #{tpu_custom_call.1} parent=35 // pred_check
          %p241 = pneg %p62
        $region42: #{tpu_custom_call.1} parent=35 // pred_check_branch
          %243 = sbr.rel (%p241) target = $region44
        $region43: #{tpu_custom_call.1} parent=35 // pred_region
          %p244 = scmp.lt.s32.totalorder %s16, 1
          %s245 = scalar_select %p244, %s16, 1
          %s246 = smul.addr %s245, 2
          %s247 = smul.addr %s246, 8
          %s248 = scalar_lea.vmem %s1, %s247
        $region44: #{tpu_custom_call.1} parent=35 // pred_fallthru
          _
      $region36: #{tpu_custom_call.1} parent=5 // pred_fallthru
        _
      %p249 = scmp.le.s32.totalorder 1, %s16
      %p250 = scmp.lt.s32.totalorder %s16, 3
      %p251 = pnand %p249, %p250
      %p252 = pneg %p251
      // Predicated region
      $region45: #{tpu_custom_call.1} parent=5 // pred_check
        _
      $region46: #{tpu_custom_call.1} parent=5 // pred_check_branch
        %254 = sbr.rel (%p251) target = $region48
      $region47: #{tpu_custom_call.1} parent=5 // pred_region
        %s255 = ssub.s32 %s16, 1
        %p256 = scmp.lt.s32.totalorder %s21, 1
        %s257 = scalar_select %p256, %s21, 1
        %s258 = smul.addr %s257, 2
        %s259 = smul.addr %s258, 8
        %s260 = scalar_lea.vmem %s0, %s259
        %p261 = pneg %p42
        %p262 = pneg %p39
        %p263 = scmp.lt.s32.totalorder %s21, 1
        %s264 = scalar_select %p263, %s21, 1
        %s265 = smul.addr %s264, 2
        %s266 = smul.addr %s265, 8
        %s267 = scalar_lea.vmem %s1, %s266
        %p268 = pneg %p68
        %p269 = pneg %p65
        %p270 = pneg %p89
        %p271 = pneg %p86
        %p272 = pneg %p110
        %p273 = pneg %p107
        %p274 = pneg %p131
        %p275 = pneg %p128
        %p276 = pneg %p152
        %p277 = pneg %p149
        %p278 = pneg %p173
        %p279 = pneg %p170
        %p280 = pneg %p199
        %p281 = pneg %p196
        %s282 = sand.u32 %s186, 1
        %s283 = scalar_lea.sflag [#allocation3], %s282
        %s284 = sand.u32 %s186, 1
        %s285 = smul.addr %s284, 16
        %s286 = scalar_lea.vmem [#allocation2], %s285
        %p287 = scmp.lt.s32.totalorder %s21, 1
        %s288 = scalar_select %p287, %s21, 1
        %s289 = smul.addr %s288, 2
        %s290 = smul.addr %s289, 8
        %s291 = scalar_lea.vmem %s0, %s290
        %p292 = scmp.lt.s32.totalorder %s21, 1
        %s293 = scalar_select %p292, %s21, 1
        %s294 = smul.addr %s293, 2
        %s295 = smul.addr %s294, 8
        %s296 = scalar_lea.vmem %s1, %s295
        %v298 = vld [vmem:[%s291] sm:$0xff]
        %v299 = vld [vmem:[%s291 + $0x8] sm:$0xff]
        %v300 = vpack.c.bf16 %v299, %v298
        %v301 = vld [vmem:[%s2] sm:$0xf]
        %v302 = vld [vmem:[%s2 + $0x4] sm:$0xf]
        %v303 = vld [vmem:[%s2 + $0x8] sm:$0xf]
        %v304 = vld [vmem:[%s2 + $0xc] sm:$0xf]
        %v305 = vld [vmem:[%s2 + $0x10] sm:$0xf]
        %v306 = vld [vmem:[%s2 + $0x14] sm:$0xf]
        %v307 = vld [vmem:[%s2 + $0x18] sm:$0xf]
        %v308 = vld [vmem:[%s2 + $0x1c] sm:$0xf]
        %v309 = vld [vmem:[%s2 + $0x20] sm:$0xf]
        %v310 = vld [vmem:[%s2 + $0x24] sm:$0xf]
        %v311 = vld [vmem:[%s2 + $0x28] sm:$0xf]
        %v312 = vld [vmem:[%s2 + $0x2c] sm:$0xf]
        %v313 = vld [vmem:[%s2 + $0x30] sm:$0xf]
        %v314 = vld [vmem:[%s2 + $0x34] sm:$0xf]
        %v315 = vld [vmem:[%s2 + $0x38] sm:$0xf]
        %v316 = vld [vmem:[%s2 + $0x3c] sm:$0xf]
        %v317 = vld [vmem:[%s2 + $0x40] sm:$0xf]
        %v318 = vld [vmem:[%s2 + $0x44] sm:$0xf]
        %v319 = vld [vmem:[%s2 + $0x48] sm:$0xf]
        %v320 = vld [vmem:[%s2 + $0x4c] sm:$0xf]
        %v321 = vld [vmem:[%s2 + $0x50] sm:$0xf]
        %v322 = vld [vmem:[%s2 + $0x54] sm:$0xf]
        %v323 = vld [vmem:[%s2 + $0x58] sm:$0xf]
        %v324 = vld [vmem:[%s2 + $0x5c] sm:$0xf]
        %v325 = vld [vmem:[%s2 + $0x60] sm:$0xf]
        %v326 = vld [vmem:[%s2 + $0x64] sm:$0xf]
        %v327 = vld [vmem:[%s2 + $0x68] sm:$0xf]
        %v328 = vld [vmem:[%s2 + $0x6c] sm:$0xf]
        %v329 = vld [vmem:[%s2 + $0x70] sm:$0xf]
        %v330 = vld [vmem:[%s2 + $0x74] sm:$0xf]
        %v331 = vld [vmem:[%s2 + $0x78] sm:$0xf]
        %v332 = vld [vmem:[%s2 + $0x7c] sm:$0xf]
        %v333 = vld [vmem:[%s2 + $0x80] sm:$0xf]
        %v334 = vld [vmem:[%s2 + $0x84] sm:$0xf]
        %v335 = vld [vmem:[%s2 + $0x88] sm:$0xf]
        %v336 = vld [vmem:[%s2 + $0x8c] sm:$0xf]
        %v337 = vld [vmem:[%s2 + $0x90] sm:$0xf]
        %v338 = vld [vmem:[%s2 + $0x94] sm:$0xf]
        %v339 = vld [vmem:[%s2 + $0x98] sm:$0xf]
        %v340 = vld [vmem:[%s2 + $0x9c] sm:$0xf]
        %v341 = vld [vmem:[%s2 + $0xa0] sm:$0xf]
        %v342 = vld [vmem:[%s2 + $0xa4] sm:$0xf]
        %v343 = vld [vmem:[%s2 + $0xa8] sm:$0xf]
        %v344 = vld [vmem:[%s2 + $0xac] sm:$0xf]
        %v345 = vld [vmem:[%s2 + $0xb0] sm:$0xf]
        %v346 = vld [vmem:[%s2 + $0xb4] sm:$0xf]
        %v347 = vld [vmem:[%s2 + $0xb8] sm:$0xf]
        %v348 = vld [vmem:[%s2 + $0xbc] sm:$0xf]
        %v349 = vld [vmem:[%s2 + $0xc0] sm:$0xf]
        %v350 = vld [vmem:[%s2 + $0xc4] sm:$0xf]
        %v351 = vld [vmem:[%s2 + $0xc8] sm:$0xf]
        %v352 = vld [vmem:[%s2 + $0xcc] sm:$0xf]
        %v353 = vld [vmem:[%s2 + $0xd0] sm:$0xf]
        %v354 = vld [vmem:[%s2 + $0xd4] sm:$0xf]
        %v355 = vld [vmem:[%s2 + $0xd8] sm:$0xf]
        %v356 = vld [vmem:[%s2 + $0xdc] sm:$0xf]
        %v357 = vld [vmem:[%s2 + $0xe0] sm:$0xf]
        %v358 = vld [vmem:[%s2 + $0xe4] sm:$0xf]
        %v359 = vld [vmem:[%s2 + $0xe8] sm:$0xf]
        %v360 = vld [vmem:[%s2 + $0xec] sm:$0xf]
        %v361 = vld [vmem:[%s2 + $0xf0] sm:$0xf]
        %v362 = vld [vmem:[%s2 + $0xf4] sm:$0xf]
        %v363 = vld [vmem:[%s2 + $0xf8] sm:$0xf]
        %v364 = vld [vmem:[%s2 + $0xfc] sm:$0xf]
        %v373 = vunpack.c.l.b16 %v301
        %v374 = vunpack.c.l.b16 %v302
        %v375 = vunpack.c.l.b16 %v303
        %v376 = vunpack.c.l.b16 %v304
        %v377 = vunpack.c.l.b16 %v305
        %v378 = vunpack.c.l.b16 %v306
        %v379 = vunpack.c.l.b16 %v307
        %v380 = vunpack.c.l.b16 %v308
        %v381 = vpack.c.b16 %v374, %v373
        %v382 = vpack.c.b16 %v376, %v375
        %v383 = vpack.c.b16 %v378, %v377
        %v384 = vpack.c.b16 %v380, %v379
        %vm389 = vcmask 523264
        %v391 = vsel %vm389, %v300, 0
        %393 = vmatprep.subr.bf16.mxu0 0
        %394 = vmatpush1.bf16.msra.mxu0 0
        %395 = vmatprep.subr.bf16.mxu0 0
        %396 = vmatpush1.bf16.msra.mxu0 0
        %397 = vmatprep.subr.bf16.mxu0 0
        %398 = vmatpush1.bf16.msra.mxu0 0
        %399 = vmatprep.subr.bf16.mxu0 0
        %400 = vmatpush1.bf16.msra.mxu0 0
        %401 = vmatprep.subr.bf16.mxu0 0
        %402 = vmatpush1.bf16.msra.mxu0 %v384
        %403 = vmatprep.subr.bf16.mxu0 0
        %404 = vmatpush1.bf16.msra.mxu0 %v383
        %405 = vmatprep.subr.bf16.mxu0 0
        %406 = vmatpush1.bf16.msra.mxu0 %v382
        %407 = vmatprep.subr.bf16.mxu0 0
        %408 = vmatpush1.bf16.msra.mxu0 %v381
        %409 = vmatprep.subr.bf16.mxu0 0
        %410 = vmatpush2.bf16.msra.mxu0 0
        %411 = vmatprep.subr.bf16.mxu0 0
        %412 = vmatpush2.bf16.msra.mxu0 0
        %413 = vmatprep.subr.bf16.mxu0 0
        %414 = vmatpush2.bf16.msra.mxu0 0
        %415 = vmatprep.subr.bf16.mxu0 0
        %416 = vmatpush2.bf16.msra.mxu0 0
        %417 = vmatprep.subr.bf16.mxu0 0
        %418 = vmatpush2.bf16.msra.mxu0 0
        %419 = vmatprep.subr.bf16.mxu0 0
        %420 = vmatpush2.bf16.msra.mxu0 0
        %421 = vmatprep.subr.bf16.mxu0 0
        %422 = vmatpush2.bf16.msra.mxu0 0
        %423 = vmatprep.subr.bf16.mxu0 0
        %424 = vmatpush2.bf16.msra.mxu0 0
        %425 = vmatprep.mubr.bf16.mxu0 0
        %426 = vmatmul.mubr.bf16.gmra.mxu0 %v391
        %v427 = vpop.f32.mrf.mxu0
        %v428 = vadd.f32 0.0, %v427
        %v429 = vpop.f32.mrf.mxu0
        %v430 = vpop.f32.mrf.mxu0
        %v431 = vadd.f32 0.0, %v430
        %v432 = vpop.f32.mrf.mxu0
        %433 = vdwg.mxu0
        %v442 = vunpack.c.l.b16 %v309
        %v443 = vunpack.c.l.b16 %v310
        %v444 = vunpack.c.l.b16 %v311
        %v445 = vunpack.c.l.b16 %v312
        %v446 = vunpack.c.l.b16 %v313
        %v447 = vunpack.c.l.b16 %v314
        %v448 = vunpack.c.l.b16 %v315
        %v449 = vunpack.c.l.b16 %v316
        %v450 = vpack.c.b16 %v443, %v442
        %v451 = vpack.c.b16 %v445, %v444
        %v452 = vpack.c.b16 %v447, %v446
        %v453 = vpack.c.b16 %v449, %v448
        %458 = vmatprep.subr.bf16.mxu0 0
        %459 = vmatpush1.bf16.msra.mxu0 0
        %460 = vmatprep.subr.bf16.mxu0 0
        %461 = vmatpush1.bf16.msra.mxu0 0
        %462 = vmatprep.subr.bf16.mxu0 0
        %463 = vmatpush1.bf16.msra.mxu0 0
        %464 = vmatprep.subr.bf16.mxu0 0
        %465 = vmatpush1.bf16.msra.mxu0 0
        %466 = vmatprep.subr.bf16.mxu0 0
        %467 = vmatpush1.bf16.msra.mxu0 %v453
        %468 = vmatprep.subr.bf16.mxu0 0
        %469 = vmatpush1.bf16.msra.mxu0 %v452
        %470 = vmatprep.subr.bf16.mxu0 0
        %471 = vmatpush1.bf16.msra.mxu0 %v451
        %472 = vmatprep.subr.bf16.mxu0 0
        %473 = vmatpush1.bf16.msra.mxu0 %v450
        %474 = vmatprep.subr.bf16.mxu0 0
        %475 = vmatpush2.bf16.msra.mxu0 0
        %476 = vmatprep.subr.bf16.mxu0 0
        %477 = vmatpush2.bf16.msra.mxu0 0
        %478 = vmatprep.subr.bf16.mxu0 0
        %479 = vmatpush2.bf16.msra.mxu0 0
        %480 = vmatprep.subr.bf16.mxu0 0
        %481 = vmatpush2.bf16.msra.mxu0 0
        %482 = vmatprep.subr.bf16.mxu0 0
        %483 = vmatpush2.bf16.msra.mxu0 0
        %484 = vmatprep.subr.bf16.mxu0 0
        %485 = vmatpush2.bf16.msra.mxu0 0
        %486 = vmatprep.subr.bf16.mxu0 0
        %487 = vmatpush2.bf16.msra.mxu0 0
        %488 = vmatprep.subr.bf16.mxu0 0
        %489 = vmatpush2.bf16.msra.mxu0 0
        %490 = vmatprep.mubr.bf16.mxu0 0
        %491 = vmatmul.mubr.bf16.gmra.mxu0 %v391
        %v492 = vpop.f32.mrf.mxu0
        %v493 = vadd.f32 0.0, %v492
        %v494 = vpop.f32.mrf.mxu0
        %v495 = vpop.f32.mrf.mxu0
        %v496 = vadd.f32 0.0, %v495
        %v497 = vpop.f32.mrf.mxu0
        %498 = vdwg.mxu0
        %v507 = vunpack.c.l.b16 %v317
        %v508 = vunpack.c.l.b16 %v318
        %v509 = vunpack.c.l.b16 %v319
        %v510 = vunpack.c.l.b16 %v320
        %v511 = vunpack.c.l.b16 %v321
        %v512 = vunpack.c.l.b16 %v322
        %v513 = vunpack.c.l.b16 %v323
        %v514 = vunpack.c.l.b16 %v324
        %v515 = vpack.c.b16 %v508, %v507
        %v516 = vpack.c.b16 %v510, %v509
        %v517 = vpack.c.b16 %v512, %v511
        %v518 = vpack.c.b16 %v514, %v513
        %523 = vmatprep.subr.bf16.mxu0 0
        %524 = vmatpush1.bf16.msra.mxu0 0
        %525 = vmatprep.subr.bf16.mxu0 0
        %526 = vmatpush1.bf16.msra.mxu0 0
        %527 = vmatprep.subr.bf16.mxu0 0
        %528 = vmatpush1.bf16.msra.mxu0 0
        %529 = vmatprep.subr.bf16.mxu0 0
        %530 = vmatpush1.bf16.msra.mxu0 0
        %531 = vmatprep.subr.bf16.mxu0 0
        %532 = vmatpush1.bf16.msra.mxu0 %v518
        %533 = vmatprep.subr.bf16.mxu0 0
        %534 = vmatpush1.bf16.msra.mxu0 %v517
        %535 = vmatprep.subr.bf16.mxu0 0
        %536 = vmatpush1.bf16.msra.mxu0 %v516
        %537 = vmatprep.subr.bf16.mxu0 0
        %538 = vmatpush1.bf16.msra.mxu0 %v515
        %539 = vmatprep.subr.bf16.mxu0 0
        %540 = vmatpush2.bf16.msra.mxu0 0
        %541 = vmatprep.subr.bf16.mxu0 0
        %542 = vmatpush2.bf16.msra.mxu0 0
        %543 = vmatprep.subr.bf16.mxu0 0
        %544 = vmatpush2.bf16.msra.mxu0 0
        %545 = vmatprep.subr.bf16.mxu0 0
        %546 = vmatpush2.bf16.msra.mxu0 0
        %547 = vmatprep.subr.bf16.mxu0 0
        %548 = vmatpush2.bf16.msra.mxu0 0
        %549 = vmatprep.subr.bf16.mxu0 0
        %550 = vmatpush2.bf16.msra.mxu0 0
        %551 = vmatprep.subr.bf16.mxu0 0
        %552 = vmatpush2.bf16.msra.mxu0 0
        %553 = vmatprep.subr.bf16.mxu0 0
        %554 = vmatpush2.bf16.msra.mxu0 0
        %555 = vmatprep.mubr.bf16.mxu0 0
        %556 = vmatmul.mubr.bf16.gmra.mxu0 %v391
        %v557 = vpop.f32.mrf.mxu0
        %v558 = vadd.f32 0.0, %v557
        %v559 = vpop.f32.mrf.mxu0
        %v560 = vpop.f32.mrf.mxu0
        %v561 = vadd.f32 0.0, %v560
        %v562 = vpop.f32.mrf.mxu0
        %563 = vdwg.mxu0
        %v572 = vunpack.c.l.b16 %v325
        %v573 = vunpack.c.l.b16 %v326
        %v574 = vunpack.c.l.b16 %v327
        %v575 = vunpack.c.l.b16 %v328
        %v576 = vunpack.c.l.b16 %v329
        %v577 = vunpack.c.l.b16 %v330
        %v578 = vunpack.c.l.b16 %v331
        %v579 = vunpack.c.l.b16 %v332
        %v580 = vpack.c.b16 %v573, %v572
        %v581 = vpack.c.b16 %v575, %v574
        %v582 = vpack.c.b16 %v577, %v576
        %v583 = vpack.c.b16 %v579, %v578
        %588 = vmatprep.subr.bf16.mxu0 0
        %589 = vmatpush1.bf16.msra.mxu0 0
        %590 = vmatprep.subr.bf16.mxu0 0
        %591 = vmatpush1.bf16.msra.mxu0 0
        %592 = vmatprep.subr.bf16.mxu0 0
        %593 = vmatpush1.bf16.msra.mxu0 0
        %594 = vmatprep.subr.bf16.mxu0 0
        %595 = vmatpush1.bf16.msra.mxu0 0
        %596 = vmatprep.subr.bf16.mxu0 0
        %597 = vmatpush1.bf16.msra.mxu0 %v583
        %598 = vmatprep.subr.bf16.mxu0 0
        %599 = vmatpush1.bf16.msra.mxu0 %v582
        %600 = vmatprep.subr.bf16.mxu0 0
        %601 = vmatpush1.bf16.msra.mxu0 %v581
        %602 = vmatprep.subr.bf16.mxu0 0
        %603 = vmatpush1.bf16.msra.mxu0 %v580
        %604 = vmatprep.subr.bf16.mxu0 0
        %605 = vmatpush2.bf16.msra.mxu0 0
        %606 = vmatprep.subr.bf16.mxu0 0
        %607 = vmatpush2.bf16.msra.mxu0 0
        %608 = vmatprep.subr.bf16.mxu0 0
        %609 = vmatpush2.bf16.msra.mxu0 0
        %610 = vmatprep.subr.bf16.mxu0 0
        %611 = vmatpush2.bf16.msra.mxu0 0
        %612 = vmatprep.subr.bf16.mxu0 0
        %613 = vmatpush2.bf16.msra.mxu0 0
        %614 = vmatprep.subr.bf16.mxu0 0
        %615 = vmatpush2.bf16.msra.mxu0 0
        %616 = vmatprep.subr.bf16.mxu0 0
        %617 = vmatpush2.bf16.msra.mxu0 0
        %618 = vmatprep.subr.bf16.mxu0 0
        %619 = vmatpush2.bf16.msra.mxu0 0
        %620 = vmatprep.mubr.bf16.mxu0 0
        %621 = vmatmul.mubr.bf16.gmra.mxu0 %v391
        %v622 = vpop.f32.mrf.mxu0
        %v623 = vadd.f32 0.0, %v622
        %v624 = vpop.f32.mrf.mxu0
        %v625 = vpop.f32.mrf.mxu0
        %v626 = vadd.f32 0.0, %v625
        %v627 = vpop.f32.mrf.mxu0
        %628 = vdwg.mxu0
        %v637 = vunpack.c.l.b16 %v333
        %v638 = vunpack.c.l.b16 %v334
        %v639 = vunpack.c.l.b16 %v335
        %v640 = vunpack.c.l.b16 %v336
        %v641 = vunpack.c.l.b16 %v337
        %v642 = vunpack.c.l.b16 %v338
        %v643 = vunpack.c.l.b16 %v339
        %v644 = vunpack.c.l.b16 %v340
        %v645 = vpack.c.b16 %v638, %v637
        %v646 = vpack.c.b16 %v640, %v639
        %v647 = vpack.c.b16 %v642, %v641
        %v648 = vpack.c.b16 %v644, %v643
        %653 = vmatprep.subr.bf16.mxu0 0
        %654 = vmatpush1.bf16.msra.mxu0 0
        %655 = vmatprep.subr.bf16.mxu0 0
        %656 = vmatpush1.bf16.msra.mxu0 0
        %657 = vmatprep.subr.bf16.mxu0 0
        %658 = vmatpush1.bf16.msra.mxu0 0
        %659 = vmatprep.subr.bf16.mxu0 0
        %660 = vmatpush1.bf16.msra.mxu0 0
        %661 = vmatprep.subr.bf16.mxu0 0
        %662 = vmatpush1.bf16.msra.mxu0 %v648
        %663 = vmatprep.subr.bf16.mxu0 0
        %664 = vmatpush1.bf16.msra.mxu0 %v647
        %665 = vmatprep.subr.bf16.mxu0 0
        %666 = vmatpush1.bf16.msra.mxu0 %v646
        %667 = vmatprep.subr.bf16.mxu0 0
        %668 = vmatpush1.bf16.msra.mxu0 %v645
        %669 = vmatprep.subr.bf16.mxu0 0
        %670 = vmatpush2.bf16.msra.mxu0 0
        %671 = vmatprep.subr.bf16.mxu0 0
        %672 = vmatpush2.bf16.msra.mxu0 0
        %673 = vmatprep.subr.bf16.mxu0 0
        %674 = vmatpush2.bf16.msra.mxu0 0
        %675 = vmatprep.subr.bf16.mxu0 0
        %676 = vmatpush2.bf16.msra.mxu0 0
        %677 = vmatprep.subr.bf16.mxu0 0
        %678 = vmatpush2.bf16.msra.mxu0 0
        %679 = vmatprep.subr.bf16.mxu0 0
        %680 = vmatpush2.bf16.msra.mxu0 0
        %681 = vmatprep.subr.bf16.mxu0 0
        %682 = vmatpush2.bf16.msra.mxu0 0
        %683 = vmatprep.subr.bf16.mxu0 0
        %684 = vmatpush2.bf16.msra.mxu0 0
        %685 = vmatprep.mubr.bf16.mxu0 0
        %686 = vmatmul.mubr.bf16.gmra.mxu0 %v391
        %v687 = vpop.f32.mrf.mxu0
        %v688 = vadd.f32 0.0, %v687
        %v689 = vpop.f32.mrf.mxu0
        %v690 = vpop.f32.mrf.mxu0
        %v691 = vadd.f32 0.0, %v690
        %v692 = vpop.f32.mrf.mxu0
        %693 = vdwg.mxu0
        %v702 = vunpack.c.l.b16 %v341
        %v703 = vunpack.c.l.b16 %v342
        %v704 = vunpack.c.l.b16 %v343
        %v705 = vunpack.c.l.b16 %v344
        %v706 = vunpack.c.l.b16 %v345
        %v707 = vunpack.c.l.b16 %v346
        %v708 = vunpack.c.l.b16 %v347
        %v709 = vunpack.c.l.b16 %v348
        %v710 = vpack.c.b16 %v703, %v702
        %v711 = vpack.c.b16 %v705, %v704
        %v712 = vpack.c.b16 %v707, %v706
        %v713 = vpack.c.b16 %v709, %v708
        %718 = vmatprep.subr.bf16.mxu0 0
        %719 = vmatpush1.bf16.msra.mxu0 0
        %720 = vmatprep.subr.bf16.mxu0 0
        %721 = vmatpush1.bf16.msra.mxu0 0
        %722 = vmatprep.subr.bf16.mxu0 0
        %723 = vmatpush1.bf16.msra.mxu0 0
        %724 = vmatprep.subr.bf16.mxu0 0
        %725 = vmatpush1.bf16.msra.mxu0 0
        %726 = vmatprep.subr.bf16.mxu0 0
        %727 = vmatpush1.bf16.msra.mxu0 %v713
        %728 = vmatprep.subr.bf16.mxu0 0
        %729 = vmatpush1.bf16.msra.mxu0 %v712
        %730 = vmatprep.subr.bf16.mxu0 0
        %731 = vmatpush1.bf16.msra.mxu0 %v711
        %732 = vmatprep.subr.bf16.mxu0 0
        %733 = vmatpush1.bf16.msra.mxu0 %v710
        %734 = vmatprep.subr.bf16.mxu0 0
        %735 = vmatpush2.bf16.msra.mxu0 0
        %736 = vmatprep.subr.bf16.mxu0 0
        %737 = vmatpush2.bf16.msra.mxu0 0
        %738 = vmatprep.subr.bf16.mxu0 0
        %739 = vmatpush2.bf16.msra.mxu0 0
        %740 = vmatprep.subr.bf16.mxu0 0
        %741 = vmatpush2.bf16.msra.mxu0 0
        %742 = vmatprep.subr.bf16.mxu0 0
        %743 = vmatpush2.bf16.msra.mxu0 0
        %744 = vmatprep.subr.bf16.mxu0 0
        %745 = vmatpush2.bf16.msra.mxu0 0
        %746 = vmatprep.subr.bf16.mxu0 0
        %747 = vmatpush2.bf16.msra.mxu0 0
        %748 = vmatprep.subr.bf16.mxu0 0
        %749 = vmatpush2.bf16.msra.mxu0 0
        %750 = vmatprep.mubr.bf16.mxu0 0
        %751 = vmatmul.mubr.bf16.gmra.mxu0 %v391
        %v752 = vpop.f32.mrf.mxu0
        %v753 = vadd.f32 0.0, %v752
        %v754 = vpop.f32.mrf.mxu0
        %v755 = vpop.f32.mrf.mxu0
        %v756 = vadd.f32 0.0, %v755
        %v757 = vpop.f32.mrf.mxu0
        %758 = vdwg.mxu0
        %v767 = vunpack.c.l.b16 %v349
        %v768 = vunpack.c.l.b16 %v350
        %v769 = vunpack.c.l.b16 %v351
        %v770 = vunpack.c.l.b16 %v352
        %v771 = vunpack.c.l.b16 %v353
        %v772 = vunpack.c.l.b16 %v354
        %v773 = vunpack.c.l.b16 %v355
        %v774 = vunpack.c.l.b16 %v356
        %v775 = vpack.c.b16 %v768, %v767
        %v776 = vpack.c.b16 %v770, %v769
        %v777 = vpack.c.b16 %v772, %v771
        %v778 = vpack.c.b16 %v774, %v773
        %783 = vmatprep.subr.bf16.mxu0 0
        %784 = vmatpush1.bf16.msra.mxu0 0
        %785 = vmatprep.subr.bf16.mxu0 0
        %786 = vmatpush1.bf16.msra.mxu0 0
        %787 = vmatprep.subr.bf16.mxu0 0
        %788 = vmatpush1.bf16.msra.mxu0 0
        %789 = vmatprep.subr.bf16.mxu0 0
        %790 = vmatpush1.bf16.msra.mxu0 0
        %791 = vmatprep.subr.bf16.mxu0 0
        %792 = vmatpush1.bf16.msra.mxu0 %v778
        %793 = vmatprep.subr.bf16.mxu0 0
        %794 = vmatpush1.bf16.msra.mxu0 %v777
        %795 = vmatprep.subr.bf16.mxu0 0
        %796 = vmatpush1.bf16.msra.mxu0 %v776
        %797 = vmatprep.subr.bf16.mxu0 0
        %798 = vmatpush1.bf16.msra.mxu0 %v775
        %799 = vmatprep.subr.bf16.mxu0 0
        %800 = vmatpush2.bf16.msra.mxu0 0
        %801 = vmatprep.subr.bf16.mxu0 0
        %802 = vmatpush2.bf16.msra.mxu0 0
        %803 = vmatprep.subr.bf16.mxu0 0
        %804 = vmatpush2.bf16.msra.mxu0 0
        %805 = vmatprep.subr.bf16.mxu0 0
        %806 = vmatpush2.bf16.msra.mxu0 0
        %807 = vmatprep.subr.bf16.mxu0 0
        %808 = vmatpush2.bf16.msra.mxu0 0
        %809 = vmatprep.subr.bf16.mxu0 0
        %810 = vmatpush2.bf16.msra.mxu0 0
        %811 = vmatprep.subr.bf16.mxu0 0
        %812 = vmatpush2.bf16.msra.mxu0 0
        %813 = vmatprep.subr.bf16.mxu0 0
        %814 = vmatpush2.bf16.msra.mxu0 0
        %815 = vmatprep.mubr.bf16.mxu0 0
        %816 = vmatmul.mubr.bf16.gmra.mxu0 %v391
        %v817 = vpop.f32.mrf.mxu0
        %v818 = vadd.f32 0.0, %v817
        %v819 = vpop.f32.mrf.mxu0
        %v820 = vpop.f32.mrf.mxu0
        %v821 = vadd.f32 0.0, %v820
        %v822 = vpop.f32.mrf.mxu0
        %823 = vdwg.mxu0
        %v832 = vunpack.c.l.b16 %v357
        %v833 = vunpack.c.l.b16 %v358
        %v834 = vunpack.c.l.b16 %v359
        %v835 = vunpack.c.l.b16 %v360
        %v836 = vunpack.c.l.b16 %v361
        %v837 = vunpack.c.l.b16 %v362
        %v838 = vunpack.c.l.b16 %v363
        %v839 = vunpack.c.l.b16 %v364
        %v840 = vpack.c.b16 %v833, %v832
        %v841 = vpack.c.b16 %v835, %v834
        %v842 = vpack.c.b16 %v837, %v836
        %v843 = vpack.c.b16 %v839, %v838
        %848 = vmatprep.subr.bf16.mxu0 0
        %849 = vmatpush1.bf16.msra.mxu0 0
        %850 = vmatprep.subr.bf16.mxu0 0
        %851 = vmatpush1.bf16.msra.mxu0 0
        %852 = vmatprep.subr.bf16.mxu0 0
        %853 = vmatpush1.bf16.msra.mxu0 0
        %854 = vmatprep.subr.bf16.mxu0 0
        %855 = vmatpush1.bf16.msra.mxu0 0
        %856 = vmatprep.subr.bf16.mxu0 0
        %857 = vmatpush1.bf16.msra.mxu0 %v843
        %858 = vmatprep.subr.bf16.mxu0 0
        %859 = vmatpush1.bf16.msra.mxu0 %v842
        %860 = vmatprep.subr.bf16.mxu0 0
        %861 = vmatpush1.bf16.msra.mxu0 %v841
        %862 = vmatprep.subr.bf16.mxu0 0
        %863 = vmatpush1.bf16.msra.mxu0 %v840
        %864 = vmatprep.subr.bf16.mxu0 0
        %865 = vmatpush2.bf16.msra.mxu0 0
        %866 = vmatprep.subr.bf16.mxu0 0
        %867 = vmatpush2.bf16.msra.mxu0 0
        %868 = vmatprep.subr.bf16.mxu0 0
        %869 = vmatpush2.bf16.msra.mxu0 0
        %870 = vmatprep.subr.bf16.mxu0 0
        %871 = vmatpush2.bf16.msra.mxu0 0
        %872 = vmatprep.subr.bf16.mxu0 0
        %873 = vmatpush2.bf16.msra.mxu0 0
        %874 = vmatprep.subr.bf16.mxu0 0
        %875 = vmatpush2.bf16.msra.mxu0 0
        %876 = vmatprep.subr.bf16.mxu0 0
        %877 = vmatpush2.bf16.msra.mxu0 0
        %878 = vmatprep.subr.bf16.mxu0 0
        %879 = vmatpush2.bf16.msra.mxu0 0
        %880 = vmatprep.mubr.bf16.mxu0 0
        %881 = vmatmul.mubr.bf16.gmra.mxu0 %v391
        %v882 = vpop.f32.mrf.mxu0
        %v883 = vadd.f32 0.0, %v882
        %v884 = vpop.f32.mrf.mxu0
        %v885 = vpop.f32.mrf.mxu0
        %v886 = vadd.f32 0.0, %v885
        %v887 = vpop.f32.mrf.mxu0
        %888 = vdwg.mxu0
        %v889 = vld [vmem:[%s3] sm:$0xf]
        %v890 = vld [vmem:[%s3 + $0x4] sm:$0xf]
        %v891 = vld [vmem:[%s3 + $0x8] sm:$0xf]
        %v892 = vld [vmem:[%s3 + $0xc] sm:$0xf]
        %v893 = vld [vmem:[%s3 + $0x10] sm:$0xf]
        %v894 = vld [vmem:[%s3 + $0x14] sm:$0xf]
        %v895 = vld [vmem:[%s3 + $0x18] sm:$0xf]
        %v896 = vld [vmem:[%s3 + $0x1c] sm:$0xf]
        %v897 = vld [vmem:[%s3 + $0x20] sm:$0xf]
        %v898 = vld [vmem:[%s3 + $0x24] sm:$0xf]
        %v899 = vld [vmem:[%s3 + $0x28] sm:$0xf]
        %v900 = vld [vmem:[%s3 + $0x2c] sm:$0xf]
        %v901 = vld [vmem:[%s3 + $0x30] sm:$0xf]
        %v902 = vld [vmem:[%s3 + $0x34] sm:$0xf]
        %v903 = vld [vmem:[%s3 + $0x38] sm:$0xf]
        %v904 = vld [vmem:[%s3 + $0x3c] sm:$0xf]
        %v905 = vld [vmem:[%s3 + $0x40] sm:$0xf]
        %v906 = vld [vmem:[%s3 + $0x44] sm:$0xf]
        %v907 = vld [vmem:[%s3 + $0x48] sm:$0xf]
        %v908 = vld [vmem:[%s3 + $0x4c] sm:$0xf]
        %v909 = vld [vmem:[%s3 + $0x50] sm:$0xf]
        %v910 = vld [vmem:[%s3 + $0x54] sm:$0xf]
        %v911 = vld [vmem:[%s3 + $0x58] sm:$0xf]
        %v912 = vld [vmem:[%s3 + $0x5c] sm:$0xf]
        %v913 = vld [vmem:[%s3 + $0x60] sm:$0xf]
        %v914 = vld [vmem:[%s3 + $0x64] sm:$0xf]
        %v915 = vld [vmem:[%s3 + $0x68] sm:$0xf]
        %v916 = vld [vmem:[%s3 + $0x6c] sm:$0xf]
        %v917 = vld [vmem:[%s3 + $0x70] sm:$0xf]
        %v918 = vld [vmem:[%s3 + $0x74] sm:$0xf]
        %v919 = vld [vmem:[%s3 + $0x78] sm:$0xf]
        %v920 = vld [vmem:[%s3 + $0x7c] sm:$0xf]
        %v921 = vld [vmem:[%s3 + $0x80] sm:$0xf]
        %v922 = vld [vmem:[%s3 + $0x84] sm:$0xf]
        %v923 = vld [vmem:[%s3 + $0x88] sm:$0xf]
        %v924 = vld [vmem:[%s3 + $0x8c] sm:$0xf]
        %v925 = vld [vmem:[%s3 + $0x90] sm:$0xf]
        %v926 = vld [vmem:[%s3 + $0x94] sm:$0xf]
        %v927 = vld [vmem:[%s3 + $0x98] sm:$0xf]
        %v928 = vld [vmem:[%s3 + $0x9c] sm:$0xf]
        %v929 = vld [vmem:[%s3 + $0xa0] sm:$0xf]
        %v930 = vld [vmem:[%s3 + $0xa4] sm:$0xf]
        %v931 = vld [vmem:[%s3 + $0xa8] sm:$0xf]
        %v932 = vld [vmem:[%s3 + $0xac] sm:$0xf]
        %v933 = vld [vmem:[%s3 + $0xb0] sm:$0xf]
        %v934 = vld [vmem:[%s3 + $0xb4] sm:$0xf]
        %v935 = vld [vmem:[%s3 + $0xb8] sm:$0xf]
        %v936 = vld [vmem:[%s3 + $0xbc] sm:$0xf]
        %v937 = vld [vmem:[%s3 + $0xc0] sm:$0xf]
        %v938 = vld [vmem:[%s3 + $0xc4] sm:$0xf]
        %v939 = vld [vmem:[%s3 + $0xc8] sm:$0xf]
        %v940 = vld [vmem:[%s3 + $0xcc] sm:$0xf]
        %v941 = vld [vmem:[%s3 + $0xd0] sm:$0xf]
        %v942 = vld [vmem:[%s3 + $0xd4] sm:$0xf]
        %v943 = vld [vmem:[%s3 + $0xd8] sm:$0xf]
        %v944 = vld [vmem:[%s3 + $0xdc] sm:$0xf]
        %v945 = vld [vmem:[%s3 + $0xe0] sm:$0xf]
        %v946 = vld [vmem:[%s3 + $0xe4] sm:$0xf]
        %v947 = vld [vmem:[%s3 + $0xe8] sm:$0xf]
        %v948 = vld [vmem:[%s3 + $0xec] sm:$0xf]
        %v949 = vld [vmem:[%s3 + $0xf0] sm:$0xf]
        %v950 = vld [vmem:[%s3 + $0xf4] sm:$0xf]
        %v951 = vld [vmem:[%s3 + $0xf8] sm:$0xf]
        %v952 = vld [vmem:[%s3 + $0xfc] sm:$0xf]
        %v961 = vunpack.c.l.b16 %v889
        %v962 = vunpack.c.l.b16 %v890
        %v963 = vunpack.c.l.b16 %v891
        %v964 = vunpack.c.l.b16 %v892
        %v965 = vunpack.c.l.b16 %v893
        %v966 = vunpack.c.l.b16 %v894
        %v967 = vunpack.c.l.b16 %v895
        %v968 = vunpack.c.l.b16 %v896
        %v969 = vpack.c.b16 %v962, %v961
        %v970 = vpack.c.b16 %v964, %v963
        %v971 = vpack.c.b16 %v966, %v965
        %v972 = vpack.c.b16 %v968, %v967
        %977 = vmatprep.subr.bf16.mxu0 0
        %978 = vmatpush1.bf16.msra.mxu0 0
        %979 = vmatprep.subr.bf16.mxu0 0
        %980 = vmatpush1.bf16.msra.mxu0 0
        %981 = vmatprep.subr.bf16.mxu0 0
        %982 = vmatpush1.bf16.msra.mxu0 0
        %983 = vmatprep.subr.bf16.mxu0 0
        %984 = vmatpush1.bf16.msra.mxu0 0
        %985 = vmatprep.subr.bf16.mxu0 0
        %986 = vmatpush1.bf16.msra.mxu0 %v972
        %987 = vmatprep.subr.bf16.mxu0 0
        %988 = vmatpush1.bf16.msra.mxu0 %v971
        %989 = vmatprep.subr.bf16.mxu0 0
        %990 = vmatpush1.bf16.msra.mxu0 %v970
        %991 = vmatprep.subr.bf16.mxu0 0
        %992 = vmatpush1.bf16.msra.mxu0 %v969
        %993 = vmatprep.subr.bf16.mxu0 0
        %994 = vmatpush2.bf16.msra.mxu0 0
        %995 = vmatprep.subr.bf16.mxu0 0
        %996 = vmatpush2.bf16.msra.mxu0 0
        %997 = vmatprep.subr.bf16.mxu0 0
        %998 = vmatpush2.bf16.msra.mxu0 0
        %999 = vmatprep.subr.bf16.mxu0 0
        %1000 = vmatpush2.bf16.msra.mxu0 0
        %1001 = vmatprep.subr.bf16.mxu0 0
        %1002 = vmatpush2.bf16.msra.mxu0 0
        %1003 = vmatprep.subr.bf16.mxu0 0
        %1004 = vmatpush2.bf16.msra.mxu0 0
        %1005 = vmatprep.subr.bf16.mxu0 0
        %1006 = vmatpush2.bf16.msra.mxu0 0
        %1007 = vmatprep.subr.bf16.mxu0 0
        %1008 = vmatpush2.bf16.msra.mxu0 0
        %1009 = vmatprep.mubr.bf16.mxu0 0
        %1010 = vmatmul.mubr.bf16.gmra.mxu0 %v391
        %v1011 = vpop.f32.mrf.mxu0
        %v1012 = vadd.f32 0.0, %v1011
        %v1013 = vpop.f32.mrf.mxu0
        %v1014 = vpop.f32.mrf.mxu0
        %v1015 = vadd.f32 0.0, %v1014
        %v1016 = vpop.f32.mrf.mxu0
        %1017 = vdwg.mxu0
        %v1026 = vunpack.c.l.b16 %v897
        %v1027 = vunpack.c.l.b16 %v898
        %v1028 = vunpack.c.l.b16 %v899
        %v1029 = vunpack.c.l.b16 %v900
        %v1030 = vunpack.c.l.b16 %v901
        %v1031 = vunpack.c.l.b16 %v902
        %v1032 = vunpack.c.l.b16 %v903
        %v1033 = vunpack.c.l.b16 %v904
        %v1034 = vpack.c.b16 %v1027, %v1026
        %v1035 = vpack.c.b16 %v1029, %v1028
        %v1036 = vpack.c.b16 %v1031, %v1030
        %v1037 = vpack.c.b16 %v1033, %v1032
        %1042 = vmatprep.subr.bf16.mxu0 0
        %1043 = vmatpush1.bf16.msra.mxu0 0
        %1044 = vmatprep.subr.bf16.mxu0 0
        %1045 = vmatpush1.bf16.msra.mxu0 0
        %1046 = vmatprep.subr.bf16.mxu0 0
        %1047 = vmatpush1.bf16.msra.mxu0 0
        %1048 = vmatprep.subr.bf16.mxu0 0
        %1049 = vmatpush1.bf16.msra.mxu0 0
        %1050 = vmatprep.subr.bf16.mxu0 0
        %1051 = vmatpush1.bf16.msra.mxu0 %v1037
        %1052 = vmatprep.subr.bf16.mxu0 0
        %1053 = vmatpush1.bf16.msra.mxu0 %v1036
        %1054 = vmatprep.subr.bf16.mxu0 0
        %1055 = vmatpush1.bf16.msra.mxu0 %v1035
        %1056 = vmatprep.subr.bf16.mxu0 0
        %1057 = vmatpush1.bf16.msra.mxu0 %v1034
        %1058 = vmatprep.subr.bf16.mxu0 0
        %1059 = vmatpush2.bf16.msra.mxu0 0
        %1060 = vmatprep.subr.bf16.mxu0 0
        %1061 = vmatpush2.bf16.msra.mxu0 0
        %1062 = vmatprep.subr.bf16.mxu0 0
        %1063 = vmatpush2.bf16.msra.mxu0 0
        %1064 = vmatprep.subr.bf16.mxu0 0
        %1065 = vmatpush2.bf16.msra.mxu0 0
        %1066 = vmatprep.subr.bf16.mxu0 0
        %1067 = vmatpush2.bf16.msra.mxu0 0
        %1068 = vmatprep.subr.bf16.mxu0 0
        %1069 = vmatpush2.bf16.msra.mxu0 0
        %1070 = vmatprep.subr.bf16.mxu0 0
        %1071 = vmatpush2.bf16.msra.mxu0 0
        %1072 = vmatprep.subr.bf16.mxu0 0
        %1073 = vmatpush2.bf16.msra.mxu0 0
        %1074 = vmatprep.mubr.bf16.mxu0 0
        %1075 = vmatmul.mubr.bf16.gmra.mxu0 %v391
        %v1076 = vpop.f32.mrf.mxu0
        %v1077 = vadd.f32 0.0, %v1076
        %v1078 = vpop.f32.mrf.mxu0
        %v1079 = vpop.f32.mrf.mxu0
        %v1080 = vadd.f32 0.0, %v1079
        %v1081 = vpop.f32.mrf.mxu0
        %1082 = vdwg.mxu0
        %v1091 = vunpack.c.l.b16 %v905
        %v1092 = vunpack.c.l.b16 %v906
        %v1093 = vunpack.c.l.b16 %v907
        %v1094 = vunpack.c.l.b16 %v908
        %v1095 = vunpack.c.l.b16 %v909
        %v1096 = vunpack.c.l.b16 %v910
        %v1097 = vunpack.c.l.b16 %v911
        %v1098 = vunpack.c.l.b16 %v912
        %v1099 = vpack.c.b16 %v1092, %v1091
        %v1100 = vpack.c.b16 %v1094, %v1093
        %v1101 = vpack.c.b16 %v1096, %v1095
        %v1102 = vpack.c.b16 %v1098, %v1097
        %1107 = vmatprep.subr.bf16.mxu0 0
        %1108 = vmatpush1.bf16.msra.mxu0 0
        %1109 = vmatprep.subr.bf16.mxu0 0
        %1110 = vmatpush1.bf16.msra.mxu0 0
        %1111 = vmatprep.subr.bf16.mxu0 0
        %1112 = vmatpush1.bf16.msra.mxu0 0
        %1113 = vmatprep.subr.bf16.mxu0 0
        %1114 = vmatpush1.bf16.msra.mxu0 0
        %1115 = vmatprep.subr.bf16.mxu0 0
        %1116 = vmatpush1.bf16.msra.mxu0 %v1102
        %1117 = vmatprep.subr.bf16.mxu0 0
        %1118 = vmatpush1.bf16.msra.mxu0 %v1101
        %1119 = vmatprep.subr.bf16.mxu0 0
        %1120 = vmatpush1.bf16.msra.mxu0 %v1100
        %1121 = vmatprep.subr.bf16.mxu0 0
        %1122 = vmatpush1.bf16.msra.mxu0 %v1099
        %1123 = vmatprep.subr.bf16.mxu0 0
        %1124 = vmatpush2.bf16.msra.mxu0 0
        %1125 = vmatprep.subr.bf16.mxu0 0
        %1126 = vmatpush2.bf16.msra.mxu0 0
        %1127 = vmatprep.subr.bf16.mxu0 0
        %1128 = vmatpush2.bf16.msra.mxu0 0
        %1129 = vmatprep.subr.bf16.mxu0 0
        %1130 = vmatpush2.bf16.msra.mxu0 0
        %1131 = vmatprep.subr.bf16.mxu0 0
        %1132 = vmatpush2.bf16.msra.mxu0 0
        %1133 = vmatprep.subr.bf16.mxu0 0
        %1134 = vmatpush2.bf16.msra.mxu0 0
        %1135 = vmatprep.subr.bf16.mxu0 0
        %1136 = vmatpush2.bf16.msra.mxu0 0
        %1137 = vmatprep.subr.bf16.mxu0 0
        %1138 = vmatpush2.bf16.msra.mxu0 0
        %1139 = vmatprep.mubr.bf16.mxu0 0
        %1140 = vmatmul.mubr.bf16.gmra.mxu0 %v391
        %v1141 = vpop.f32.mrf.mxu0
        %v1142 = vadd.f32 0.0, %v1141
        %v1143 = vpop.f32.mrf.mxu0
        %v1144 = vpop.f32.mrf.mxu0
        %v1145 = vadd.f32 0.0, %v1144
        %v1146 = vpop.f32.mrf.mxu0
        %1147 = vdwg.mxu0
        %v1156 = vunpack.c.l.b16 %v913
        %v1157 = vunpack.c.l.b16 %v914
        %v1158 = vunpack.c.l.b16 %v915
        %v1159 = vunpack.c.l.b16 %v916
        %v1160 = vunpack.c.l.b16 %v917
        %v1161 = vunpack.c.l.b16 %v918
        %v1162 = vunpack.c.l.b16 %v919
        %v1163 = vunpack.c.l.b16 %v920
        %v1164 = vpack.c.b16 %v1157, %v1156
        %v1165 = vpack.c.b16 %v1159, %v1158
        %v1166 = vpack.c.b16 %v1161, %v1160
        %v1167 = vpack.c.b16 %v1163, %v1162
        %1172 = vmatprep.subr.bf16.mxu0 0
        %1173 = vmatpush1.bf16.msra.mxu0 0
        %1174 = vmatprep.subr.bf16.mxu0 0
        %1175 = vmatpush1.bf16.msra.mxu0 0
        %1176 = vmatprep.subr.bf16.mxu0 0
        %1177 = vmatpush1.bf16.msra.mxu0 0
        %1178 = vmatprep.subr.bf16.mxu0 0
        %1179 = vmatpush1.bf16.msra.mxu0 0
        %1180 = vmatprep.subr.bf16.mxu0 0
        %1181 = vmatpush1.bf16.msra.mxu0 %v1167
        %1182 = vmatprep.subr.bf16.mxu0 0
        %1183 = vmatpush1.bf16.msra.mxu0 %v1166
        %1184 = vmatprep.subr.bf16.mxu0 0
        %1185 = vmatpush1.bf16.msra.mxu0 %v1165
        %1186 = vmatprep.subr.bf16.mxu0 0
        %1187 = vmatpush1.bf16.msra.mxu0 %v1164
        %1188 = vmatprep.subr.bf16.mxu0 0
        %1189 = vmatpush2.bf16.msra.mxu0 0
        %1190 = vmatprep.subr.bf16.mxu0 0
        %1191 = vmatpush2.bf16.msra.mxu0 0
        %1192 = vmatprep.subr.bf16.mxu0 0
        %1193 = vmatpush2.bf16.msra.mxu0 0
        %1194 = vmatprep.subr.bf16.mxu0 0
        %1195 = vmatpush2.bf16.msra.mxu0 0
        %1196 = vmatprep.subr.bf16.mxu0 0
        %1197 = vmatpush2.bf16.msra.mxu0 0
        %1198 = vmatprep.subr.bf16.mxu0 0
        %1199 = vmatpush2.bf16.msra.mxu0 0
        %1200 = vmatprep.subr.bf16.mxu0 0
        %1201 = vmatpush2.bf16.msra.mxu0 0
        %1202 = vmatprep.subr.bf16.mxu0 0
        %1203 = vmatpush2.bf16.msra.mxu0 0
        %1204 = vmatprep.mubr.bf16.mxu0 0
        %1205 = vmatmul.mubr.bf16.gmra.mxu0 %v391
        %v1206 = vpop.f32.mrf.mxu0
        %v1207 = vadd.f32 0.0, %v1206
        %v1208 = vpop.f32.mrf.mxu0
        %v1209 = vpop.f32.mrf.mxu0
        %v1210 = vadd.f32 0.0, %v1209
        %v1211 = vpop.f32.mrf.mxu0
        %1212 = vdwg.mxu0
        %v1221 = vunpack.c.l.b16 %v921
        %v1222 = vunpack.c.l.b16 %v922
        %v1223 = vunpack.c.l.b16 %v923
        %v1224 = vunpack.c.l.b16 %v924
        %v1225 = vunpack.c.l.b16 %v925
        %v1226 = vunpack.c.l.b16 %v926
        %v1227 = vunpack.c.l.b16 %v927
        %v1228 = vunpack.c.l.b16 %v928
        %v1229 = vpack.c.b16 %v1222, %v1221
        %v1230 = vpack.c.b16 %v1224, %v1223
        %v1231 = vpack.c.b16 %v1226, %v1225
        %v1232 = vpack.c.b16 %v1228, %v1227
        %1237 = vmatprep.subr.bf16.mxu0 0
        %1238 = vmatpush1.bf16.msra.mxu0 0
        %1239 = vmatprep.subr.bf16.mxu0 0
        %1240 = vmatpush1.bf16.msra.mxu0 0
        %1241 = vmatprep.subr.bf16.mxu0 0
        %1242 = vmatpush1.bf16.msra.mxu0 0
        %1243 = vmatprep.subr.bf16.mxu0 0
        %1244 = vmatpush1.bf16.msra.mxu0 0
        %1245 = vmatprep.subr.bf16.mxu0 0
        %1246 = vmatpush1.bf16.msra.mxu0 %v1232
        %1247 = vmatprep.subr.bf16.mxu0 0
        %1248 = vmatpush1.bf16.msra.mxu0 %v1231
        %1249 = vmatprep.subr.bf16.mxu0 0
        %1250 = vmatpush1.bf16.msra.mxu0 %v1230
        %1251 = vmatprep.subr.bf16.mxu0 0
        %1252 = vmatpush1.bf16.msra.mxu0 %v1229
        %1253 = vmatprep.subr.bf16.mxu0 0
        %1254 = vmatpush2.bf16.msra.mxu0 0
        %1255 = vmatprep.subr.bf16.mxu0 0
        %1256 = vmatpush2.bf16.msra.mxu0 0
        %1257 = vmatprep.subr.bf16.mxu0 0
        %1258 = vmatpush2.bf16.msra.mxu0 0
        %1259 = vmatprep.subr.bf16.mxu0 0
        %1260 = vmatpush2.bf16.msra.mxu0 0
        %1261 = vmatprep.subr.bf16.mxu0 0
        %1262 = vmatpush2.bf16.msra.mxu0 0
        %1263 = vmatprep.subr.bf16.mxu0 0
        %1264 = vmatpush2.bf16.msra.mxu0 0
        %1265 = vmatprep.subr.bf16.mxu0 0
        %1266 = vmatpush2.bf16.msra.mxu0 0
        %1267 = vmatprep.subr.bf16.mxu0 0
        %1268 = vmatpush2.bf16.msra.mxu0 0
        %1269 = vmatprep.mubr.bf16.mxu0 0
        %1270 = vmatmul.mubr.bf16.gmra.mxu0 %v391
        %v1271 = vpop.f32.mrf.mxu0
        %v1272 = vadd.f32 0.0, %v1271
        %v1273 = vpop.f32.mrf.mxu0
        %v1274 = vpop.f32.mrf.mxu0
        %v1275 = vadd.f32 0.0, %v1274
        %v1276 = vpop.f32.mrf.mxu0
        %1277 = vdwg.mxu0
        %v1286 = vunpack.c.l.b16 %v929
        %v1287 = vunpack.c.l.b16 %v930
        %v1288 = vunpack.c.l.b16 %v931
        %v1289 = vunpack.c.l.b16 %v932
        %v1290 = vunpack.c.l.b16 %v933
        %v1291 = vunpack.c.l.b16 %v934
        %v1292 = vunpack.c.l.b16 %v935
        %v1293 = vunpack.c.l.b16 %v936
        %v1294 = vpack.c.b16 %v1287, %v1286
        %v1295 = vpack.c.b16 %v1289, %v1288
        %v1296 = vpack.c.b16 %v1291, %v1290
        %v1297 = vpack.c.b16 %v1293, %v1292
        %1302 = vmatprep.subr.bf16.mxu0 0
        %1303 = vmatpush1.bf16.msra.mxu0 0
        %1304 = vmatprep.subr.bf16.mxu0 0
        %1305 = vmatpush1.bf16.msra.mxu0 0
        %1306 = vmatprep.subr.bf16.mxu0 0
        %1307 = vmatpush1.bf16.msra.mxu0 0
        %1308 = vmatprep.subr.bf16.mxu0 0
        %1309 = vmatpush1.bf16.msra.mxu0 0
        %1310 = vmatprep.subr.bf16.mxu0 0
        %1311 = vmatpush1.bf16.msra.mxu0 %v1297
        %1312 = vmatprep.subr.bf16.mxu0 0
        %1313 = vmatpush1.bf16.msra.mxu0 %v1296
        %1314 = vmatprep.subr.bf16.mxu0 0
        %1315 = vmatpush1.bf16.msra.mxu0 %v1295
        %1316 = vmatprep.subr.bf16.mxu0 0
        %1317 = vmatpush1.bf16.msra.mxu0 %v1294
        %1318 = vmatprep.subr.bf16.mxu0 0
        %1319 = vmatpush2.bf16.msra.mxu0 0
        %1320 = vmatprep.subr.bf16.mxu0 0
        %1321 = vmatpush2.bf16.msra.mxu0 0
        %1322 = vmatprep.subr.bf16.mxu0 0
        %1323 = vmatpush2.bf16.msra.mxu0 0
        %1324 = vmatprep.subr.bf16.mxu0 0
        %1325 = vmatpush2.bf16.msra.mxu0 0
        %1326 = vmatprep.subr.bf16.mxu0 0
        %1327 = vmatpush2.bf16.msra.mxu0 0
        %1328 = vmatprep.subr.bf16.mxu0 0
        %1329 = vmatpush2.bf16.msra.mxu0 0
        %1330 = vmatprep.subr.bf16.mxu0 0
        %1331 = vmatpush2.bf16.msra.mxu0 0
        %1332 = vmatprep.subr.bf16.mxu0 0
        %1333 = vmatpush2.bf16.msra.mxu0 0
        %1334 = vmatprep.mubr.bf16.mxu0 0
        %1335 = vmatmul.mubr.bf16.gmra.mxu0 %v391
        %v1336 = vpop.f32.mrf.mxu0
        %v1337 = vadd.f32 0.0, %v1336
        %v1338 = vpop.f32.mrf.mxu0
        %v1339 = vpop.f32.mrf.mxu0
        %v1340 = vadd.f32 0.0, %v1339
        %v1341 = vpop.f32.mrf.mxu0
        %1342 = vdwg.mxu0
        %v1351 = vunpack.c.l.b16 %v937
        %v1352 = vunpack.c.l.b16 %v938
        %v1353 = vunpack.c.l.b16 %v939
        %v1354 = vunpack.c.l.b16 %v940
        %v1355 = vunpack.c.l.b16 %v941
        %v1356 = vunpack.c.l.b16 %v942
        %v1357 = vunpack.c.l.b16 %v943
        %v1358 = vunpack.c.l.b16 %v944
        %v1359 = vpack.c.b16 %v1352, %v1351
        %v1360 = vpack.c.b16 %v1354, %v1353
        %v1361 = vpack.c.b16 %v1356, %v1355
        %v1362 = vpack.c.b16 %v1358, %v1357
        %1367 = vmatprep.subr.bf16.mxu0 0
        %1368 = vmatpush1.bf16.msra.mxu0 0
        %1369 = vmatprep.subr.bf16.mxu0 0
        %1370 = vmatpush1.bf16.msra.mxu0 0
        %1371 = vmatprep.subr.bf16.mxu0 0
        %1372 = vmatpush1.bf16.msra.mxu0 0
        %1373 = vmatprep.subr.bf16.mxu0 0
        %1374 = vmatpush1.bf16.msra.mxu0 0
        %1375 = vmatprep.subr.bf16.mxu0 0
        %1376 = vmatpush1.bf16.msra.mxu0 %v1362
        %1377 = vmatprep.subr.bf16.mxu0 0
        %1378 = vmatpush1.bf16.msra.mxu0 %v1361
        %1379 = vmatprep.subr.bf16.mxu0 0
        %1380 = vmatpush1.bf16.msra.mxu0 %v1360
        %1381 = vmatprep.subr.bf16.mxu0 0
        %1382 = vmatpush1.bf16.msra.mxu0 %v1359
        %1383 = vmatprep.subr.bf16.mxu0 0
        %1384 = vmatpush2.bf16.msra.mxu0 0
        %1385 = vmatprep.subr.bf16.mxu0 0
        %1386 = vmatpush2.bf16.msra.mxu0 0
        %1387 = vmatprep.subr.bf16.mxu0 0
        %1388 = vmatpush2.bf16.msra.mxu0 0
        %1389 = vmatprep.subr.bf16.mxu0 0
        %1390 = vmatpush2.bf16.msra.mxu0 0
        %1391 = vmatprep.subr.bf16.mxu0 0
        %1392 = vmatpush2.bf16.msra.mxu0 0
        %1393 = vmatprep.subr.bf16.mxu0 0
        %1394 = vmatpush2.bf16.msra.mxu0 0
        %1395 = vmatprep.subr.bf16.mxu0 0
        %1396 = vmatpush2.bf16.msra.mxu0 0
        %1397 = vmatprep.subr.bf16.mxu0 0
        %1398 = vmatpush2.bf16.msra.mxu0 0
        %1399 = vmatprep.mubr.bf16.mxu0 0
        %1400 = vmatmul.mubr.bf16.gmra.mxu0 %v391
        %v1401 = vpop.f32.mrf.mxu0
        %v1402 = vadd.f32 0.0, %v1401
        %v1403 = vpop.f32.mrf.mxu0
        %v1404 = vpop.f32.mrf.mxu0
        %v1405 = vadd.f32 0.0, %v1404
        %v1406 = vpop.f32.mrf.mxu0
        %1407 = vdwg.mxu0
        %v1416 = vunpack.c.l.b16 %v945
        %v1417 = vunpack.c.l.b16 %v946
        %v1418 = vunpack.c.l.b16 %v947
        %v1419 = vunpack.c.l.b16 %v948
        %v1420 = vunpack.c.l.b16 %v949
        %v1421 = vunpack.c.l.b16 %v950
        %v1422 = vunpack.c.l.b16 %v951
        %v1423 = vunpack.c.l.b16 %v952
        %v1424 = vpack.c.b16 %v1417, %v1416
        %v1425 = vpack.c.b16 %v1419, %v1418
        %v1426 = vpack.c.b16 %v1421, %v1420
        %v1427 = vpack.c.b16 %v1423, %v1422
        %1432 = vmatprep.subr.bf16.mxu0 0
        %1433 = vmatpush1.bf16.msra.mxu0 0
        %1434 = vmatprep.subr.bf16.mxu0 0
        %1435 = vmatpush1.bf16.msra.mxu0 0
        %1436 = vmatprep.subr.bf16.mxu0 0
        %1437 = vmatpush1.bf16.msra.mxu0 0
        %1438 = vmatprep.subr.bf16.mxu0 0
        %1439 = vmatpush1.bf16.msra.mxu0 0
        %1440 = vmatprep.subr.bf16.mxu0 0
        %1441 = vmatpush1.bf16.msra.mxu0 %v1427
        %1442 = vmatprep.subr.bf16.mxu0 0
        %1443 = vmatpush1.bf16.msra.mxu0 %v1426
        %1444 = vmatprep.subr.bf16.mxu0 0
        %1445 = vmatpush1.bf16.msra.mxu0 %v1425
        %1446 = vmatprep.subr.bf16.mxu0 0
        %1447 = vmatpush1.bf16.msra.mxu0 %v1424
        %1448 = vmatprep.subr.bf16.mxu0 0
        %1449 = vmatpush2.bf16.msra.mxu0 0
        %1450 = vmatprep.subr.bf16.mxu0 0
        %1451 = vmatpush2.bf16.msra.mxu0 0
        %1452 = vmatprep.subr.bf16.mxu0 0
        %1453 = vmatpush2.bf16.msra.mxu0 0
        %1454 = vmatprep.subr.bf16.mxu0 0
        %1455 = vmatpush2.bf16.msra.mxu0 0
        %1456 = vmatprep.subr.bf16.mxu0 0
        %1457 = vmatpush2.bf16.msra.mxu0 0
        %1458 = vmatprep.subr.bf16.mxu0 0
        %1459 = vmatpush2.bf16.msra.mxu0 0
        %1460 = vmatprep.subr.bf16.mxu0 0
        %1461 = vmatpush2.bf16.msra.mxu0 0
        %1462 = vmatprep.subr.bf16.mxu0 0
        %1463 = vmatpush2.bf16.msra.mxu0 0
        %1464 = vmatprep.mubr.bf16.mxu0 0
        %1465 = vmatmul.mubr.bf16.gmra.mxu0 %v391
        %v1466 = vpop.f32.mrf.mxu0
        %v1467 = vadd.f32 0.0, %v1466
        %v1468 = vpop.f32.mrf.mxu0
        %v1469 = vpop.f32.mrf.mxu0
        %v1470 = vadd.f32 0.0, %v1469
        %v1471 = vpop.f32.mrf.mxu0
        %1472 = vdwg.mxu0
        %v1473 = vld [vmem:[%s4] sm:$0xf]
        %v1474 = vld [vmem:[%s4 + $0x4] sm:$0xf]
        %v1475 = vld [vmem:[%s4 + $0x8] sm:$0xf]
        %v1476 = vld [vmem:[%s4 + $0xc] sm:$0xf]
        %v1477 = vld [vmem:[%s4 + $0x10] sm:$0xf]
        %v1478 = vld [vmem:[%s4 + $0x14] sm:$0xf]
        %v1479 = vld [vmem:[%s4 + $0x18] sm:$0xf]
        %v1480 = vld [vmem:[%s4 + $0x1c] sm:$0xf]
        %v1481 = vld [vmem:[%s4 + $0x20] sm:$0xf]
        %v1482 = vld [vmem:[%s4 + $0x24] sm:$0xf]
        %v1483 = vld [vmem:[%s4 + $0x28] sm:$0xf]
        %v1484 = vld [vmem:[%s4 + $0x2c] sm:$0xf]
        %v1485 = vld [vmem:[%s4 + $0x30] sm:$0xf]
        %v1486 = vld [vmem:[%s4 + $0x34] sm:$0xf]
        %v1487 = vld [vmem:[%s4 + $0x38] sm:$0xf]
        %v1488 = vld [vmem:[%s4 + $0x3c] sm:$0xf]
        %v1489 = vld [vmem:[%s4 + $0x40] sm:$0xf]
        %v1490 = vld [vmem:[%s4 + $0x44] sm:$0xf]
        %v1491 = vld [vmem:[%s4 + $0x48] sm:$0xf]
        %v1492 = vld [vmem:[%s4 + $0x4c] sm:$0xf]
        %v1493 = vld [vmem:[%s4 + $0x50] sm:$0xf]
        %v1494 = vld [vmem:[%s4 + $0x54] sm:$0xf]
        %v1495 = vld [vmem:[%s4 + $0x58] sm:$0xf]
        %v1496 = vld [vmem:[%s4 + $0x5c] sm:$0xf]
        %v1497 = vld [vmem:[%s4 + $0x60] sm:$0xf]
        %v1498 = vld [vmem:[%s4 + $0x64] sm:$0xf]
        %v1499 = vld [vmem:[%s4 + $0x68] sm:$0xf]
        %v1500 = vld [vmem:[%s4 + $0x6c] sm:$0xf]
        %v1501 = vld [vmem:[%s4 + $0x70] sm:$0xf]
        %v1502 = vld [vmem:[%s4 + $0x74] sm:$0xf]
        %v1503 = vld [vmem:[%s4 + $0x78] sm:$0xf]
        %v1504 = vld [vmem:[%s4 + $0x7c] sm:$0xf]
        %v1505 = vld [vmem:[%s4 + $0x80] sm:$0xf]
        %v1506 = vld [vmem:[%s4 + $0x84] sm:$0xf]
        %v1507 = vld [vmem:[%s4 + $0x88] sm:$0xf]
        %v1508 = vld [vmem:[%s4 + $0x8c] sm:$0xf]
        %v1509 = vld [vmem:[%s4 + $0x90] sm:$0xf]
        %v1510 = vld [vmem:[%s4 + $0x94] sm:$0xf]
        %v1511 = vld [vmem:[%s4 + $0x98] sm:$0xf]
        %v1512 = vld [vmem:[%s4 + $0x9c] sm:$0xf]
        %v1513 = vld [vmem:[%s4 + $0xa0] sm:$0xf]
        %v1514 = vld [vmem:[%s4 + $0xa4] sm:$0xf]
        %v1515 = vld [vmem:[%s4 + $0xa8] sm:$0xf]
        %v1516 = vld [vmem:[%s4 + $0xac] sm:$0xf]
        %v1517 = vld [vmem:[%s4 + $0xb0] sm:$0xf]
        %v1518 = vld [vmem:[%s4 + $0xb4] sm:$0xf]
        %v1519 = vld [vmem:[%s4 + $0xb8] sm:$0xf]
        %v1520 = vld [vmem:[%s4 + $0xbc] sm:$0xf]
        %v1521 = vld [vmem:[%s4 + $0xc0] sm:$0xf]
        %v1522 = vld [vmem:[%s4 + $0xc4] sm:$0xf]
        %v1523 = vld [vmem:[%s4 + $0xc8] sm:$0xf]
        %v1524 = vld [vmem:[%s4 + $0xcc] sm:$0xf]
        %v1525 = vld [vmem:[%s4 + $0xd0] sm:$0xf]
        %v1526 = vld [vmem:[%s4 + $0xd4] sm:$0xf]
        %v1527 = vld [vmem:[%s4 + $0xd8] sm:$0xf]
        %v1528 = vld [vmem:[%s4 + $0xdc] sm:$0xf]
        %v1529 = vld [vmem:[%s4 + $0xe0] sm:$0xf]
        %v1530 = vld [vmem:[%s4 + $0xe4] sm:$0xf]
        %v1531 = vld [vmem:[%s4 + $0xe8] sm:$0xf]
        %v1532 = vld [vmem:[%s4 + $0xec] sm:$0xf]
        %v1533 = vld [vmem:[%s4 + $0xf0] sm:$0xf]
        %v1534 = vld [vmem:[%s4 + $0xf4] sm:$0xf]
        %v1535 = vld [vmem:[%s4 + $0xf8] sm:$0xf]
        %v1536 = vld [vmem:[%s4 + $0xfc] sm:$0xf]
        %v1545 = vunpack.c.l.b16 %v1473
        %v1546 = vunpack.c.l.b16 %v1474
        %v1547 = vunpack.c.l.b16 %v1475
        %v1548 = vunpack.c.l.b16 %v1476
        %v1549 = vunpack.c.l.b16 %v1477
        %v1550 = vunpack.c.l.b16 %v1478
        %v1551 = vunpack.c.l.b16 %v1479
        %v1552 = vunpack.c.l.b16 %v1480
        %v1553 = vpack.c.b16 %v1546, %v1545
        %v1554 = vpack.c.b16 %v1548, %v1547
        %v1555 = vpack.c.b16 %v1550, %v1549
        %v1556 = vpack.c.b16 %v1552, %v1551
        %1561 = vmatprep.subr.bf16.mxu0 0
        %1562 = vmatpush1.bf16.msra.mxu0 0
        %1563 = vmatprep.subr.bf16.mxu0 0
        %1564 = vmatpush1.bf16.msra.mxu0 0
        %1565 = vmatprep.subr.bf16.mxu0 0
        %1566 = vmatpush1.bf16.msra.mxu0 0
        %1567 = vmatprep.subr.bf16.mxu0 0
        %1568 = vmatpush1.bf16.msra.mxu0 0
        %1569 = vmatprep.subr.bf16.mxu0 0
        %1570 = vmatpush1.bf16.msra.mxu0 %v1556
        %1571 = vmatprep.subr.bf16.mxu0 0
        %1572 = vmatpush1.bf16.msra.mxu0 %v1555
        %1573 = vmatprep.subr.bf16.mxu0 0
        %1574 = vmatpush1.bf16.msra.mxu0 %v1554
        %1575 = vmatprep.subr.bf16.mxu0 0
        %1576 = vmatpush1.bf16.msra.mxu0 %v1553
        %1577 = vmatprep.subr.bf16.mxu0 0
        %1578 = vmatpush2.bf16.msra.mxu0 0
        %1579 = vmatprep.subr.bf16.mxu0 0
        %1580 = vmatpush2.bf16.msra.mxu0 0
        %1581 = vmatprep.subr.bf16.mxu0 0
        %1582 = vmatpush2.bf16.msra.mxu0 0
        %1583 = vmatprep.subr.bf16.mxu0 0
        %1584 = vmatpush2.bf16.msra.mxu0 0
        %1585 = vmatprep.subr.bf16.mxu0 0
        %1586 = vmatpush2.bf16.msra.mxu0 0
        %1587 = vmatprep.subr.bf16.mxu0 0
        %1588 = vmatpush2.bf16.msra.mxu0 0
        %1589 = vmatprep.subr.bf16.mxu0 0
        %1590 = vmatpush2.bf16.msra.mxu0 0
        %1591 = vmatprep.subr.bf16.mxu0 0
        %1592 = vmatpush2.bf16.msra.mxu0 0
        %1593 = vmatprep.mubr.bf16.mxu0 0
        %1594 = vmatmul.mubr.bf16.gmra.mxu0 %v391
        %v1595 = vpop.f32.mrf.mxu0
        %v1596 = vadd.f32 0.0, %v1595
        %v1597 = vpop.f32.mrf.mxu0
        %v1598 = vpop.f32.mrf.mxu0
        %v1599 = vadd.f32 0.0, %v1598
        %v1600 = vpop.f32.mrf.mxu0
        %1601 = vdwg.mxu0
        %v1610 = vunpack.c.l.b16 %v1481
        %v1611 = vunpack.c.l.b16 %v1482
        %v1612 = vunpack.c.l.b16 %v1483
        %v1613 = vunpack.c.l.b16 %v1484
        %v1614 = vunpack.c.l.b16 %v1485
        %v1615 = vunpack.c.l.b16 %v1486
        %v1616 = vunpack.c.l.b16 %v1487
        %v1617 = vunpack.c.l.b16 %v1488
        %v1618 = vpack.c.b16 %v1611, %v1610
        %v1619 = vpack.c.b16 %v1613, %v1612
        %v1620 = vpack.c.b16 %v1615, %v1614
        %v1621 = vpack.c.b16 %v1617, %v1616
        %1626 = vmatprep.subr.bf16.mxu0 0
        %1627 = vmatpush1.bf16.msra.mxu0 0
        %1628 = vmatprep.subr.bf16.mxu0 0
        %1629 = vmatpush1.bf16.msra.mxu0 0
        %1630 = vmatprep.subr.bf16.mxu0 0
        %1631 = vmatpush1.bf16.msra.mxu0 0
        %1632 = vmatprep.subr.bf16.mxu0 0
        %1633 = vmatpush1.bf16.msra.mxu0 0
        %1634 = vmatprep.subr.bf16.mxu0 0
        %1635 = vmatpush1.bf16.msra.mxu0 %v1621
        %1636 = vmatprep.subr.bf16.mxu0 0
        %1637 = vmatpush1.bf16.msra.mxu0 %v1620
        %1638 = vmatprep.subr.bf16.mxu0 0
        %1639 = vmatpush1.bf16.msra.mxu0 %v1619
        %1640 = vmatprep.subr.bf16.mxu0 0
        %1641 = vmatpush1.bf16.msra.mxu0 %v1618
        %1642 = vmatprep.subr.bf16.mxu0 0
        %1643 = vmatpush2.bf16.msra.mxu0 0
        %1644 = vmatprep.subr.bf16.mxu0 0
        %1645 = vmatpush2.bf16.msra.mxu0 0
        %1646 = vmatprep.subr.bf16.mxu0 0
        %1647 = vmatpush2.bf16.msra.mxu0 0
        %1648 = vmatprep.subr.bf16.mxu0 0
        %1649 = vmatpush2.bf16.msra.mxu0 0
        %1650 = vmatprep.subr.bf16.mxu0 0
        %1651 = vmatpush2.bf16.msra.mxu0 0
        %1652 = vmatprep.subr.bf16.mxu0 0
        %1653 = vmatpush2.bf16.msra.mxu0 0
        %1654 = vmatprep.subr.bf16.mxu0 0
        %1655 = vmatpush2.bf16.msra.mxu0 0
        %1656 = vmatprep.subr.bf16.mxu0 0
        %1657 = vmatpush2.bf16.msra.mxu0 0
        %1658 = vmatprep.mubr.bf16.mxu0 0
        %1659 = vmatmul.mubr.bf16.gmra.mxu0 %v391
        %v1660 = vpop.f32.mrf.mxu0
        %v1661 = vadd.f32 0.0, %v1660
        %v1662 = vpop.f32.mrf.mxu0
        %v1663 = vpop.f32.mrf.mxu0
        %v1664 = vadd.f32 0.0, %v1663
        %v1665 = vpop.f32.mrf.mxu0
        %1666 = vdwg.mxu0
        %v1675 = vunpack.c.l.b16 %v1489
        %v1676 = vunpack.c.l.b16 %v1490
        %v1677 = vunpack.c.l.b16 %v1491
        %v1678 = vunpack.c.l.b16 %v1492
        %v1679 = vunpack.c.l.b16 %v1493
        %v1680 = vunpack.c.l.b16 %v1494
        %v1681 = vunpack.c.l.b16 %v1495
        %v1682 = vunpack.c.l.b16 %v1496
        %v1683 = vpack.c.b16 %v1676, %v1675
        %v1684 = vpack.c.b16 %v1678, %v1677
        %v1685 = vpack.c.b16 %v1680, %v1679
        %v1686 = vpack.c.b16 %v1682, %v1681
        %1691 = vmatprep.subr.bf16.mxu0 0
        %1692 = vmatpush1.bf16.msra.mxu0 0
        %1693 = vmatprep.subr.bf16.mxu0 0
        %1694 = vmatpush1.bf16.msra.mxu0 0
        %1695 = vmatprep.subr.bf16.mxu0 0
        %1696 = vmatpush1.bf16.msra.mxu0 0
        %1697 = vmatprep.subr.bf16.mxu0 0
        %1698 = vmatpush1.bf16.msra.mxu0 0
        %1699 = vmatprep.subr.bf16.mxu0 0
        %1700 = vmatpush1.bf16.msra.mxu0 %v1686
        %1701 = vmatprep.subr.bf16.mxu0 0
        %1702 = vmatpush1.bf16.msra.mxu0 %v1685
        %1703 = vmatprep.subr.bf16.mxu0 0
        %1704 = vmatpush1.bf16.msra.mxu0 %v1684
        %1705 = vmatprep.subr.bf16.mxu0 0
        %1706 = vmatpush1.bf16.msra.mxu0 %v1683
        %1707 = vmatprep.subr.bf16.mxu0 0
        %1708 = vmatpush2.bf16.msra.mxu0 0
        %1709 = vmatprep.subr.bf16.mxu0 0
        %1710 = vmatpush2.bf16.msra.mxu0 0
        %1711 = vmatprep.subr.bf16.mxu0 0
        %1712 = vmatpush2.bf16.msra.mxu0 0
        %1713 = vmatprep.subr.bf16.mxu0 0
        %1714 = vmatpush2.bf16.msra.mxu0 0
        %1715 = vmatprep.subr.bf16.mxu0 0
        %1716 = vmatpush2.bf16.msra.mxu0 0
        %1717 = vmatprep.subr.bf16.mxu0 0
        %1718 = vmatpush2.bf16.msra.mxu0 0
        %1719 = vmatprep.subr.bf16.mxu0 0
        %1720 = vmatpush2.bf16.msra.mxu0 0
        %1721 = vmatprep.subr.bf16.mxu0 0
        %1722 = vmatpush2.bf16.msra.mxu0 0
        %1723 = vmatprep.mubr.bf16.mxu0 0
        %1724 = vmatmul.mubr.bf16.gmra.mxu0 %v391
        %v1725 = vpop.f32.mrf.mxu0
        %v1726 = vadd.f32 0.0, %v1725
        %v1727 = vpop.f32.mrf.mxu0
        %v1728 = vpop.f32.mrf.mxu0
        %v1729 = vadd.f32 0.0, %v1728
        %v1730 = vpop.f32.mrf.mxu0
        %1731 = vdwg.mxu0
        %v1740 = vunpack.c.l.b16 %v1497
        %v1741 = vunpack.c.l.b16 %v1498
        %v1742 = vunpack.c.l.b16 %v1499
        %v1743 = vunpack.c.l.b16 %v1500
        %v1744 = vunpack.c.l.b16 %v1501
        %v1745 = vunpack.c.l.b16 %v1502
        %v1746 = vunpack.c.l.b16 %v1503
        %v1747 = vunpack.c.l.b16 %v1504
        %v1748 = vpack.c.b16 %v1741, %v1740
        %v1749 = vpack.c.b16 %v1743, %v1742
        %v1750 = vpack.c.b16 %v1745, %v1744
        %v1751 = vpack.c.b16 %v1747, %v1746
        %1756 = vmatprep.subr.bf16.mxu0 0
        %1757 = vmatpush1.bf16.msra.mxu0 0
        %1758 = vmatprep.subr.bf16.mxu0 0
        %1759 = vmatpush1.bf16.msra.mxu0 0
        %1760 = vmatprep.subr.bf16.mxu0 0
        %1761 = vmatpush1.bf16.msra.mxu0 0
        %1762 = vmatprep.subr.bf16.mxu0 0
        %1763 = vmatpush1.bf16.msra.mxu0 0
        %1764 = vmatprep.subr.bf16.mxu0 0
        %1765 = vmatpush1.bf16.msra.mxu0 %v1751
        %1766 = vmatprep.subr.bf16.mxu0 0
        %1767 = vmatpush1.bf16.msra.mxu0 %v1750
        %1768 = vmatprep.subr.bf16.mxu0 0
        %1769 = vmatpush1.bf16.msra.mxu0 %v1749
        %1770 = vmatprep.subr.bf16.mxu0 0
        %1771 = vmatpush1.bf16.msra.mxu0 %v1748
        %1772 = vmatprep.subr.bf16.mxu0 0
        %1773 = vmatpush2.bf16.msra.mxu0 0
        %1774 = vmatprep.subr.bf16.mxu0 0
        %1775 = vmatpush2.bf16.msra.mxu0 0
        %1776 = vmatprep.subr.bf16.mxu0 0
        %1777 = vmatpush2.bf16.msra.mxu0 0
        %1778 = vmatprep.subr.bf16.mxu0 0
        %1779 = vmatpush2.bf16.msra.mxu0 0
        %1780 = vmatprep.subr.bf16.mxu0 0
        %1781 = vmatpush2.bf16.msra.mxu0 0
        %1782 = vmatprep.subr.bf16.mxu0 0
        %1783 = vmatpush2.bf16.msra.mxu0 0
        %1784 = vmatprep.subr.bf16.mxu0 0
        %1785 = vmatpush2.bf16.msra.mxu0 0
        %1786 = vmatprep.subr.bf16.mxu0 0
        %1787 = vmatpush2.bf16.msra.mxu0 0
        %1788 = vmatprep.mubr.bf16.mxu0 0
        %1789 = vmatmul.mubr.bf16.gmra.mxu0 %v391
        %v1790 = vpop.f32.mrf.mxu0
        %v1791 = vadd.f32 0.0, %v1790
        %v1792 = vpop.f32.mrf.mxu0
        %v1793 = vpop.f32.mrf.mxu0
        %v1794 = vadd.f32 0.0, %v1793
        %v1795 = vpop.f32.mrf.mxu0
        %1796 = vdwg.mxu0
        %v1805 = vunpack.c.l.b16 %v1505
        %v1806 = vunpack.c.l.b16 %v1506
        %v1807 = vunpack.c.l.b16 %v1507
        %v1808 = vunpack.c.l.b16 %v1508
        %v1809 = vunpack.c.l.b16 %v1509
        %v1810 = vunpack.c.l.b16 %v1510
        %v1811 = vunpack.c.l.b16 %v1511
        %v1812 = vunpack.c.l.b16 %v1512
        %v1813 = vpack.c.b16 %v1806, %v1805
        %v1814 = vpack.c.b16 %v1808, %v1807
        %v1815 = vpack.c.b16 %v1810, %v1809
        %v1816 = vpack.c.b16 %v1812, %v1811
        %1821 = vmatprep.subr.bf16.mxu0 0
        %1822 = vmatpush1.bf16.msra.mxu0 0
        %1823 = vmatprep.subr.bf16.mxu0 0
        %1824 = vmatpush1.bf16.msra.mxu0 0
        %1825 = vmatprep.subr.bf16.mxu0 0
        %1826 = vmatpush1.bf16.msra.mxu0 0
        %1827 = vmatprep.subr.bf16.mxu0 0
        %1828 = vmatpush1.bf16.msra.mxu0 0
        %1829 = vmatprep.subr.bf16.mxu0 0
        %1830 = vmatpush1.bf16.msra.mxu0 %v1816
        %1831 = vmatprep.subr.bf16.mxu0 0
        %1832 = vmatpush1.bf16.msra.mxu0 %v1815
        %1833 = vmatprep.subr.bf16.mxu0 0
        %1834 = vmatpush1.bf16.msra.mxu0 %v1814
        %1835 = vmatprep.subr.bf16.mxu0 0
        %1836 = vmatpush1.bf16.msra.mxu0 %v1813
        %1837 = vmatprep.subr.bf16.mxu0 0
        %1838 = vmatpush2.bf16.msra.mxu0 0
        %1839 = vmatprep.subr.bf16.mxu0 0
        %1840 = vmatpush2.bf16.msra.mxu0 0
        %1841 = vmatprep.subr.bf16.mxu0 0
        %1842 = vmatpush2.bf16.msra.mxu0 0
        %1843 = vmatprep.subr.bf16.mxu0 0
        %1844 = vmatpush2.bf16.msra.mxu0 0
        %1845 = vmatprep.subr.bf16.mxu0 0
        %1846 = vmatpush2.bf16.msra.mxu0 0
        %1847 = vmatprep.subr.bf16.mxu0 0
        %1848 = vmatpush2.bf16.msra.mxu0 0
        %1849 = vmatprep.subr.bf16.mxu0 0
        %1850 = vmatpush2.bf16.msra.mxu0 0
        %1851 = vmatprep.subr.bf16.mxu0 0
        %1852 = vmatpush2.bf16.msra.mxu0 0
        %1853 = vmatprep.mubr.bf16.mxu0 0
        %1854 = vmatmul.mubr.bf16.gmra.mxu0 %v391
        %v1855 = vpop.f32.mrf.mxu0
        %v1856 = vadd.f32 0.0, %v1855
        %v1857 = vpop.f32.mrf.mxu0
        %v1858 = vpop.f32.mrf.mxu0
        %v1859 = vadd.f32 0.0, %v1858
        %v1860 = vpop.f32.mrf.mxu0
        %1861 = vdwg.mxu0
        %v1870 = vunpack.c.l.b16 %v1513
        %v1871 = vunpack.c.l.b16 %v1514
        %v1872 = vunpack.c.l.b16 %v1515
        %v1873 = vunpack.c.l.b16 %v1516
        %v1874 = vunpack.c.l.b16 %v1517
        %v1875 = vunpack.c.l.b16 %v1518
        %v1876 = vunpack.c.l.b16 %v1519
        %v1877 = vunpack.c.l.b16 %v1520
        %v1878 = vpack.c.b16 %v1871, %v1870
        %v1879 = vpack.c.b16 %v1873, %v1872
        %v1880 = vpack.c.b16 %v1875, %v1874
        %v1881 = vpack.c.b16 %v1877, %v1876
        %1886 = vmatprep.subr.bf16.mxu0 0
        %1887 = vmatpush1.bf16.msra.mxu0 0
        %1888 = vmatprep.subr.bf16.mxu0 0
        %1889 = vmatpush1.bf16.msra.mxu0 0
        %1890 = vmatprep.subr.bf16.mxu0 0
        %1891 = vmatpush1.bf16.msra.mxu0 0
        %1892 = vmatprep.subr.bf16.mxu0 0
        %1893 = vmatpush1.bf16.msra.mxu0 0
        %1894 = vmatprep.subr.bf16.mxu0 0
        %1895 = vmatpush1.bf16.msra.mxu0 %v1881
        %1896 = vmatprep.subr.bf16.mxu0 0
        %1897 = vmatpush1.bf16.msra.mxu0 %v1880
        %1898 = vmatprep.subr.bf16.mxu0 0
        %1899 = vmatpush1.bf16.msra.mxu0 %v1879
        %1900 = vmatprep.subr.bf16.mxu0 0
        %1901 = vmatpush1.bf16.msra.mxu0 %v1878
        %1902 = vmatprep.subr.bf16.mxu0 0
        %1903 = vmatpush2.bf16.msra.mxu0 0
        %1904 = vmatprep.subr.bf16.mxu0 0
        %1905 = vmatpush2.bf16.msra.mxu0 0
        %1906 = vmatprep.subr.bf16.mxu0 0
        %1907 = vmatpush2.bf16.msra.mxu0 0
        %1908 = vmatprep.subr.bf16.mxu0 0
        %1909 = vmatpush2.bf16.msra.mxu0 0
        %1910 = vmatprep.subr.bf16.mxu0 0
        %1911 = vmatpush2.bf16.msra.mxu0 0
        %1912 = vmatprep.subr.bf16.mxu0 0
        %1913 = vmatpush2.bf16.msra.mxu0 0
        %1914 = vmatprep.subr.bf16.mxu0 0
        %1915 = vmatpush2.bf16.msra.mxu0 0
        %1916 = vmatprep.subr.bf16.mxu0 0
        %1917 = vmatpush2.bf16.msra.mxu0 0
        %1918 = vmatprep.mubr.bf16.mxu0 0
        %1919 = vmatmul.mubr.bf16.gmra.mxu0 %v391
        %v1920 = vpop.f32.mrf.mxu0
        %v1921 = vadd.f32 0.0, %v1920
        %v1922 = vpop.f32.mrf.mxu0
        %v1923 = vpop.f32.mrf.mxu0
        %v1924 = vadd.f32 0.0, %v1923
        %v1925 = vpop.f32.mrf.mxu0
        %1926 = vdwg.mxu0
        %v1935 = vunpack.c.l.b16 %v1521
        %v1936 = vunpack.c.l.b16 %v1522
        %v1937 = vunpack.c.l.b16 %v1523
        %v1938 = vunpack.c.l.b16 %v1524
        %v1939 = vunpack.c.l.b16 %v1525
        %v1940 = vunpack.c.l.b16 %v1526
        %v1941 = vunpack.c.l.b16 %v1527
        %v1942 = vunpack.c.l.b16 %v1528
        %v1943 = vpack.c.b16 %v1936, %v1935
        %v1944 = vpack.c.b16 %v1938, %v1937
        %v1945 = vpack.c.b16 %v1940, %v1939
        %v1946 = vpack.c.b16 %v1942, %v1941
        %1951 = vmatprep.subr.bf16.mxu0 0
        %1952 = vmatpush1.bf16.msra.mxu0 0
        %1953 = vmatprep.subr.bf16.mxu0 0
        %1954 = vmatpush1.bf16.msra.mxu0 0
        %1955 = vmatprep.subr.bf16.mxu0 0
        %1956 = vmatpush1.bf16.msra.mxu0 0
        %1957 = vmatprep.subr.bf16.mxu0 0
        %1958 = vmatpush1.bf16.msra.mxu0 0
        %1959 = vmatprep.subr.bf16.mxu0 0
        %1960 = vmatpush1.bf16.msra.mxu0 %v1946
        %1961 = vmatprep.subr.bf16.mxu0 0
        %1962 = vmatpush1.bf16.msra.mxu0 %v1945
        %1963 = vmatprep.subr.bf16.mxu0 0
        %1964 = vmatpush1.bf16.msra.mxu0 %v1944
        %1965 = vmatprep.subr.bf16.mxu0 0
        %1966 = vmatpush1.bf16.msra.mxu0 %v1943
        %1967 = vmatprep.subr.bf16.mxu0 0
        %1968 = vmatpush2.bf16.msra.mxu0 0
        %1969 = vmatprep.subr.bf16.mxu0 0
        %1970 = vmatpush2.bf16.msra.mxu0 0
        %1971 = vmatprep.subr.bf16.mxu0 0
        %1972 = vmatpush2.bf16.msra.mxu0 0
        %1973 = vmatprep.subr.bf16.mxu0 0
        %1974 = vmatpush2.bf16.msra.mxu0 0
        %1975 = vmatprep.subr.bf16.mxu0 0
        %1976 = vmatpush2.bf16.msra.mxu0 0
        %1977 = vmatprep.subr.bf16.mxu0 0
        %1978 = vmatpush2.bf16.msra.mxu0 0
        %1979 = vmatprep.subr.bf16.mxu0 0
        %1980 = vmatpush2.bf16.msra.mxu0 0
        %1981 = vmatprep.subr.bf16.mxu0 0
        %1982 = vmatpush2.bf16.msra.mxu0 0
        %1983 = vmatprep.mubr.bf16.mxu0 0
        %1984 = vmatmul.mubr.bf16.gmra.mxu0 %v391
        %v1985 = vpop.f32.mrf.mxu0
        %v1986 = vadd.f32 0.0, %v1985
        %v1987 = vpop.f32.mrf.mxu0
        %v1988 = vpop.f32.mrf.mxu0
        %v1989 = vadd.f32 0.0, %v1988
        %v1990 = vpop.f32.mrf.mxu0
        %1991 = vdwg.mxu0
        %v2000 = vunpack.c.l.b16 %v1529
        %v2001 = vunpack.c.l.b16 %v1530
        %v2002 = vunpack.c.l.b16 %v1531
        %v2003 = vunpack.c.l.b16 %v1532
        %v2004 = vunpack.c.l.b16 %v1533
        %v2005 = vunpack.c.l.b16 %v1534
        %v2006 = vunpack.c.l.b16 %v1535
        %v2007 = vunpack.c.l.b16 %v1536
        %v2008 = vpack.c.b16 %v2001, %v2000
        %v2009 = vpack.c.b16 %v2003, %v2002
        %v2010 = vpack.c.b16 %v2005, %v2004
        %v2011 = vpack.c.b16 %v2007, %v2006
        %2016 = vmatprep.subr.bf16.mxu0 0
        %2017 = vmatpush1.bf16.msra.mxu0 0
        %2018 = vmatprep.subr.bf16.mxu0 0
        %2019 = vmatpush1.bf16.msra.mxu0 0
        %2020 = vmatprep.subr.bf16.mxu0 0
        %2021 = vmatpush1.bf16.msra.mxu0 0
        %2022 = vmatprep.subr.bf16.mxu0 0
        %2023 = vmatpush1.bf16.msra.mxu0 0
        %2024 = vmatprep.subr.bf16.mxu0 0
        %2025 = vmatpush1.bf16.msra.mxu0 %v2011
        %2026 = vmatprep.subr.bf16.mxu0 0
        %2027 = vmatpush1.bf16.msra.mxu0 %v2010
        %2028 = vmatprep.subr.bf16.mxu0 0
        %2029 = vmatpush1.bf16.msra.mxu0 %v2009
        %2030 = vmatprep.subr.bf16.mxu0 0
        %2031 = vmatpush1.bf16.msra.mxu0 %v2008
        %2032 = vmatprep.subr.bf16.mxu0 0
        %2033 = vmatpush2.bf16.msra.mxu0 0
        %2034 = vmatprep.subr.bf16.mxu0 0
        %2035 = vmatpush2.bf16.msra.mxu0 0
        %2036 = vmatprep.subr.bf16.mxu0 0
        %2037 = vmatpush2.bf16.msra.mxu0 0
        %2038 = vmatprep.subr.bf16.mxu0 0
        %2039 = vmatpush2.bf16.msra.mxu0 0
        %2040 = vmatprep.subr.bf16.mxu0 0
        %2041 = vmatpush2.bf16.msra.mxu0 0
        %2042 = vmatprep.subr.bf16.mxu0 0
        %2043 = vmatpush2.bf16.msra.mxu0 0
        %2044 = vmatprep.subr.bf16.mxu0 0
        %2045 = vmatpush2.bf16.msra.mxu0 0
        %2046 = vmatprep.subr.bf16.mxu0 0
        %2047 = vmatpush2.bf16.msra.mxu0 0
        %2048 = vmatprep.mubr.bf16.mxu0 0
        %2049 = vmatmul.mubr.bf16.gmra.mxu0 %v391
        %v2050 = vpop.f32.mrf.mxu0
        %v2051 = vadd.f32 0.0, %v2050
        %v2052 = vpop.f32.mrf.mxu0
        %v2053 = vpop.f32.mrf.mxu0
        %v2054 = vadd.f32 0.0, %v2053
        %v2055 = vpop.f32.mrf.mxu0
        %2056 = vdwg.mxu0
        %v2057 = vpack.c.bf16 %v431, %v428
        %v2058 = vpack.c.bf16 %v496, %v493
        %v2059 = vpack.c.bf16 %v561, %v558
        %v2060 = vpack.c.bf16 %v626, %v623
        %v2061 = vpack.c.bf16 %v691, %v688
        %v2062 = vpack.c.bf16 %v756, %v753
        %v2063 = vpack.c.bf16 %v821, %v818
        %v2064 = vpack.c.bf16 %v886, %v883
        %v2065 = vpack.c.bf16 %v1015, %v1012
        %v2066 = vpack.c.bf16 %v1080, %v1077
        %v2067 = vpack.c.bf16 %v1145, %v1142
        %v2068 = vpack.c.bf16 %v1210, %v1207
        %v2069 = vpack.c.bf16 %v1275, %v1272
        %v2070 = vpack.c.bf16 %v1340, %v1337
        %v2071 = vpack.c.bf16 %v1405, %v1402
        %v2072 = vpack.c.bf16 %v1470, %v1467
        %v2073 = vpack.c.bf16 %v1599, %v1596
        %v2074 = vpack.c.bf16 %v1664, %v1661
        %v2075 = vpack.c.bf16 %v1729, %v1726
        %v2076 = vpack.c.bf16 %v1794, %v1791
        %v2077 = vpack.c.bf16 %v1859, %v1856
        %v2078 = vpack.c.bf16 %v1924, %v1921
        %v2079 = vpack.c.bf16 %v1989, %v1986
        %v2080 = vpack.c.bf16 %v2054, %v2051
        %vm2081 = vcmask 64512
        %v2083 = vsel %vm2081, %v2057, 0
        %v2086 = vsel %vm2081, %v2065, 0
        %2088 = vmatprep.subr.bf16.mxu0 0
        %2089 = vmatpush1.bf16.xpose.msra.mxu0 0
        %2090 = vmatprep.subr.bf16.mxu0 0
        %2091 = vmatpush1.bf16.xpose.msra.mxu0 0
        %2092 = vmatprep.subr.bf16.mxu0 0
        %2093 = vmatpush1.bf16.xpose.msra.mxu0 0
        %2094 = vmatprep.subr.bf16.mxu0 0
        %2095 = vmatpush1.bf16.xpose.msra.mxu0 0
        %2096 = vmatprep.subr.bf16.mxu0 0
        %2097 = vmatpush1.bf16.xpose.msra.mxu0 0
        %2098 = vmatprep.subr.bf16.mxu0 0
        %2099 = vmatpush1.bf16.xpose.msra.mxu0 0
        %2100 = vmatprep.subr.bf16.mxu0 0
        %2101 = vmatpush1.bf16.xpose.msra.mxu0 0
        %2102 = vmatprep.subr.bf16.mxu0 0
        %2103 = vmatpush1.bf16.xpose.msra.mxu0 %v2086
        %2104 = vmatprep.subr.bf16.mxu0 0
        %2105 = vmatpush2.bf16.xpose.msra.mxu0 0
        %2106 = vmatprep.subr.bf16.mxu0 0
        %2107 = vmatpush2.bf16.xpose.msra.mxu0 0
        %2108 = vmatprep.subr.bf16.mxu0 0
        %2109 = vmatpush2.bf16.xpose.msra.mxu0 0
        %2110 = vmatprep.subr.bf16.mxu0 0
        %2111 = vmatpush2.bf16.xpose.msra.mxu0 0
        %2112 = vmatprep.subr.bf16.mxu0 0
        %2113 = vmatpush2.bf16.xpose.msra.mxu0 0
        %2114 = vmatprep.subr.bf16.mxu0 0
        %2115 = vmatpush2.bf16.xpose.msra.mxu0 0
        %2116 = vmatprep.subr.bf16.mxu0 0
        %2117 = vmatpush2.bf16.xpose.msra.mxu0 0
        %2118 = vmatprep.subr.bf16.mxu0 0
        %2119 = vmatpush2.bf16.xpose.msra.mxu0 0
        %2120 = vmatprep.mubr.bf16.mxu0 0
        %2121 = vmatmul.mubr.bf16.gmra.mxu0 %v2083
        %v2122 = vpop.f32.mrf.mxu0
        %v2123 = vadd.f32 0.0, %v2122
        %v2124 = vpop.f32.mrf.mxu0
        %v2125 = vpop.f32.mrf.mxu0
        %v2126 = vadd.f32 0.0, %v2125
        %v2127 = vpop.f32.mrf.mxu0
        %2128 = vdwg.mxu0
        %v2130 = vsel %vm2081, %v2058, 0
        %v2133 = vsel %vm2081, %v2066, 0
        %2135 = vmatprep.subr.bf16.mxu0 0
        %2136 = vmatpush1.bf16.xpose.msra.mxu0 0
        %2137 = vmatprep.subr.bf16.mxu0 0
        %2138 = vmatpush1.bf16.xpose.msra.mxu0 0
        %2139 = vmatprep.subr.bf16.mxu0 0
        %2140 = vmatpush1.bf16.xpose.msra.mxu0 0
        %2141 = vmatprep.subr.bf16.mxu0 0
        %2142 = vmatpush1.bf16.xpose.msra.mxu0 0
        %2143 = vmatprep.subr.bf16.mxu0 0
        %2144 = vmatpush1.bf16.xpose.msra.mxu0 0
        %2145 = vmatprep.subr.bf16.mxu0 0
        %2146 = vmatpush1.bf16.xpose.msra.mxu0 0
        %2147 = vmatprep.subr.bf16.mxu0 0
        %2148 = vmatpush1.bf16.xpose.msra.mxu0 0
        %2149 = vmatprep.subr.bf16.mxu0 0
        %2150 = vmatpush1.bf16.xpose.msra.mxu0 %v2133
        %2151 = vmatprep.subr.bf16.mxu0 0
        %2152 = vmatpush2.bf16.xpose.msra.mxu0 0
        %2153 = vmatprep.subr.bf16.mxu0 0
        %2154 = vmatpush2.bf16.xpose.msra.mxu0 0
        %2155 = vmatprep.subr.bf16.mxu0 0
        %2156 = vmatpush2.bf16.xpose.msra.mxu0 0
        %2157 = vmatprep.subr.bf16.mxu0 0
        %2158 = vmatpush2.bf16.xpose.msra.mxu0 0
        %2159 = vmatprep.subr.bf16.mxu0 0
        %2160 = vmatpush2.bf16.xpose.msra.mxu0 0
        %2161 = vmatprep.subr.bf16.mxu0 0
        %2162 = vmatpush2.bf16.xpose.msra.mxu0 0
        %2163 = vmatprep.subr.bf16.mxu0 0
        %2164 = vmatpush2.bf16.xpose.msra.mxu0 0
        %2165 = vmatprep.subr.bf16.mxu0 0
        %2166 = vmatpush2.bf16.xpose.msra.mxu0 0
        %2167 = vmatprep.mubr.bf16.mxu0 0
        %2168 = vmatmul.mubr.bf16.gmra.mxu0 %v2130
        %v2169 = vpop.f32.mrf.mxu0
        %v2170 = vadd.f32 0.0, %v2169
        %v2171 = vpop.f32.mrf.mxu0
        %v2172 = vpop.f32.mrf.mxu0
        %v2173 = vadd.f32 0.0, %v2172
        %v2174 = vpop.f32.mrf.mxu0
        %2175 = vdwg.mxu0
        %v2177 = vsel %vm2081, %v2059, 0
        %v2180 = vsel %vm2081, %v2067, 0
        %2182 = vmatprep.subr.bf16.mxu0 0
        %2183 = vmatpush1.bf16.xpose.msra.mxu0 0
        %2184 = vmatprep.subr.bf16.mxu0 0
        %2185 = vmatpush1.bf16.xpose.msra.mxu0 0
        %2186 = vmatprep.subr.bf16.mxu0 0
        %2187 = vmatpush1.bf16.xpose.msra.mxu0 0
        %2188 = vmatprep.subr.bf16.mxu0 0
        %2189 = vmatpush1.bf16.xpose.msra.mxu0 0
        %2190 = vmatprep.subr.bf16.mxu0 0
        %2191 = vmatpush1.bf16.xpose.msra.mxu0 0
        %2192 = vmatprep.subr.bf16.mxu0 0
        %2193 = vmatpush1.bf16.xpose.msra.mxu0 0
        %2194 = vmatprep.subr.bf16.mxu0 0
        %2195 = vmatpush1.bf16.xpose.msra.mxu0 0
        %2196 = vmatprep.subr.bf16.mxu0 0
        %2197 = vmatpush1.bf16.xpose.msra.mxu0 %v2180
        %2198 = vmatprep.subr.bf16.mxu0 0
        %2199 = vmatpush2.bf16.xpose.msra.mxu0 0
        %2200 = vmatprep.subr.bf16.mxu0 0
        %2201 = vmatpush2.bf16.xpose.msra.mxu0 0
        %2202 = vmatprep.subr.bf16.mxu0 0
        %2203 = vmatpush2.bf16.xpose.msra.mxu0 0
        %2204 = vmatprep.subr.bf16.mxu0 0
        %2205 = vmatpush2.bf16.xpose.msra.mxu0 0
        %2206 = vmatprep.subr.bf16.mxu0 0
        %2207 = vmatpush2.bf16.xpose.msra.mxu0 0
        %2208 = vmatprep.subr.bf16.mxu0 0
        %2209 = vmatpush2.bf16.xpose.msra.mxu0 0
        %2210 = vmatprep.subr.bf16.mxu0 0
        %2211 = vmatpush2.bf16.xpose.msra.mxu0 0
        %2212 = vmatprep.subr.bf16.mxu0 0
        %2213 = vmatpush2.bf16.xpose.msra.mxu0 0
        %2214 = vmatprep.mubr.bf16.mxu0 0
        %2215 = vmatmul.mubr.bf16.gmra.mxu0 %v2177
        %v2216 = vpop.f32.mrf.mxu0
        %v2217 = vadd.f32 0.0, %v2216
        %v2218 = vpop.f32.mrf.mxu0
        %v2219 = vpop.f32.mrf.mxu0
        %v2220 = vadd.f32 0.0, %v2219
        %v2221 = vpop.f32.mrf.mxu0
        %2222 = vdwg.mxu0
        %v2224 = vsel %vm2081, %v2060, 0
        %v2227 = vsel %vm2081, %v2068, 0
        %2229 = vmatprep.subr.bf16.mxu0 0
        %2230 = vmatpush1.bf16.xpose.msra.mxu0 0
        %2231 = vmatprep.subr.bf16.mxu0 0
        %2232 = vmatpush1.bf16.xpose.msra.mxu0 0
        %2233 = vmatprep.subr.bf16.mxu0 0
        %2234 = vmatpush1.bf16.xpose.msra.mxu0 0
        %2235 = vmatprep.subr.bf16.mxu0 0
        %2236 = vmatpush1.bf16.xpose.msra.mxu0 0
        %2237 = vmatprep.subr.bf16.mxu0 0
        %2238 = vmatpush1.bf16.xpose.msra.mxu0 0
        %2239 = vmatprep.subr.bf16.mxu0 0
        %2240 = vmatpush1.bf16.xpose.msra.mxu0 0
        %2241 = vmatprep.subr.bf16.mxu0 0
        %2242 = vmatpush1.bf16.xpose.msra.mxu0 0
        %2243 = vmatprep.subr.bf16.mxu0 0
        %2244 = vmatpush1.bf16.xpose.msra.mxu0 %v2227
        %2245 = vmatprep.subr.bf16.mxu0 0
        %2246 = vmatpush2.bf16.xpose.msra.mxu0 0
        %2247 = vmatprep.subr.bf16.mxu0 0
        %2248 = vmatpush2.bf16.xpose.msra.mxu0 0
        %2249 = vmatprep.subr.bf16.mxu0 0
        %2250 = vmatpush2.bf16.xpose.msra.mxu0 0
        %2251 = vmatprep.subr.bf16.mxu0 0
        %2252 = vmatpush2.bf16.xpose.msra.mxu0 0
        %2253 = vmatprep.subr.bf16.mxu0 0
        %2254 = vmatpush2.bf16.xpose.msra.mxu0 0
        %2255 = vmatprep.subr.bf16.mxu0 0
        %2256 = vmatpush2.bf16.xpose.msra.mxu0 0
        %2257 = vmatprep.subr.bf16.mxu0 0
        %2258 = vmatpush2.bf16.xpose.msra.mxu0 0
        %2259 = vmatprep.subr.bf16.mxu0 0
        %2260 = vmatpush2.bf16.xpose.msra.mxu0 0
        %2261 = vmatprep.mubr.bf16.mxu0 0
        %2262 = vmatmul.mubr.bf16.gmra.mxu0 %v2224
        %v2263 = vpop.f32.mrf.mxu0
        %v2264 = vadd.f32 0.0, %v2263
        %v2265 = vpop.f32.mrf.mxu0
        %v2266 = vpop.f32.mrf.mxu0
        %v2267 = vadd.f32 0.0, %v2266
        %v2268 = vpop.f32.mrf.mxu0
        %2269 = vdwg.mxu0
        %v2271 = vsel %vm2081, %v2061, 0
        %v2274 = vsel %vm2081, %v2069, 0
        %2276 = vmatprep.subr.bf16.mxu0 0
        %2277 = vmatpush1.bf16.xpose.msra.mxu0 0
        %2278 = vmatprep.subr.bf16.mxu0 0
        %2279 = vmatpush1.bf16.xpose.msra.mxu0 0
        %2280 = vmatprep.subr.bf16.mxu0 0
        %2281 = vmatpush1.bf16.xpose.msra.mxu0 0
        %2282 = vmatprep.subr.bf16.mxu0 0
        %2283 = vmatpush1.bf16.xpose.msra.mxu0 0
        %2284 = vmatprep.subr.bf16.mxu0 0
        %2285 = vmatpush1.bf16.xpose.msra.mxu0 0
        %2286 = vmatprep.subr.bf16.mxu0 0
        %2287 = vmatpush1.bf16.xpose.msra.mxu0 0
        %2288 = vmatprep.subr.bf16.mxu0 0
        %2289 = vmatpush1.bf16.xpose.msra.mxu0 0
        %2290 = vmatprep.subr.bf16.mxu0 0
        %2291 = vmatpush1.bf16.xpose.msra.mxu0 %v2274
        %2292 = vmatprep.subr.bf16.mxu0 0
        %2293 = vmatpush2.bf16.xpose.msra.mxu0 0
        %2294 = vmatprep.subr.bf16.mxu0 0
        %2295 = vmatpush2.bf16.xpose.msra.mxu0 0
        %2296 = vmatprep.subr.bf16.mxu0 0
        %2297 = vmatpush2.bf16.xpose.msra.mxu0 0
        %2298 = vmatprep.subr.bf16.mxu0 0
        %2299 = vmatpush2.bf16.xpose.msra.mxu0 0
        %2300 = vmatprep.subr.bf16.mxu0 0
        %2301 = vmatpush2.bf16.xpose.msra.mxu0 0
        %2302 = vmatprep.subr.bf16.mxu0 0
        %2303 = vmatpush2.bf16.xpose.msra.mxu0 0
        %2304 = vmatprep.subr.bf16.mxu0 0
        %2305 = vmatpush2.bf16.xpose.msra.mxu0 0
        %2306 = vmatprep.subr.bf16.mxu0 0
        %2307 = vmatpush2.bf16.xpose.msra.mxu0 0
        %2308 = vmatprep.mubr.bf16.mxu0 0
        %2309 = vmatmul.mubr.bf16.gmra.mxu0 %v2271
        %v2310 = vpop.f32.mrf.mxu0
        %v2311 = vadd.f32 0.0, %v2310
        %v2312 = vpop.f32.mrf.mxu0
        %v2313 = vpop.f32.mrf.mxu0
        %v2314 = vadd.f32 0.0, %v2313
        %v2315 = vpop.f32.mrf.mxu0
        %2316 = vdwg.mxu0
        %v2318 = vsel %vm2081, %v2062, 0
        %v2321 = vsel %vm2081, %v2070, 0
        %2323 = vmatprep.subr.bf16.mxu0 0
        %2324 = vmatpush1.bf16.xpose.msra.mxu0 0
        %2325 = vmatprep.subr.bf16.mxu0 0
        %2326 = vmatpush1.bf16.xpose.msra.mxu0 0
        %2327 = vmatprep.subr.bf16.mxu0 0
        %2328 = vmatpush1.bf16.xpose.msra.mxu0 0
        %2329 = vmatprep.subr.bf16.mxu0 0
        %2330 = vmatpush1.bf16.xpose.msra.mxu0 0
        %2331 = vmatprep.subr.bf16.mxu0 0
        %2332 = vmatpush1.bf16.xpose.msra.mxu0 0
        %2333 = vmatprep.subr.bf16.mxu0 0
        %2334 = vmatpush1.bf16.xpose.msra.mxu0 0
        %2335 = vmatprep.subr.bf16.mxu0 0
        %2336 = vmatpush1.bf16.xpose.msra.mxu0 0
        %2337 = vmatprep.subr.bf16.mxu0 0
        %2338 = vmatpush1.bf16.xpose.msra.mxu0 %v2321
        %2339 = vmatprep.subr.bf16.mxu0 0
        %2340 = vmatpush2.bf16.xpose.msra.mxu0 0
        %2341 = vmatprep.subr.bf16.mxu0 0
        %2342 = vmatpush2.bf16.xpose.msra.mxu0 0
        %2343 = vmatprep.subr.bf16.mxu0 0
        %2344 = vmatpush2.bf16.xpose.msra.mxu0 0
        %2345 = vmatprep.subr.bf16.mxu0 0
        %2346 = vmatpush2.bf16.xpose.msra.mxu0 0
        %2347 = vmatprep.subr.bf16.mxu0 0
        %2348 = vmatpush2.bf16.xpose.msra.mxu0 0
        %2349 = vmatprep.subr.bf16.mxu0 0
        %2350 = vmatpush2.bf16.xpose.msra.mxu0 0
        %2351 = vmatprep.subr.bf16.mxu0 0
        %2352 = vmatpush2.bf16.xpose.msra.mxu0 0
        %2353 = vmatprep.subr.bf16.mxu0 0
        %2354 = vmatpush2.bf16.xpose.msra.mxu0 0
        %2355 = vmatprep.mubr.bf16.mxu0 0
        %2356 = vmatmul.mubr.bf16.gmra.mxu0 %v2318
        %v2357 = vpop.f32.mrf.mxu0
        %v2358 = vadd.f32 0.0, %v2357
        %v2359 = vpop.f32.mrf.mxu0
        %v2360 = vpop.f32.mrf.mxu0
        %v2361 = vadd.f32 0.0, %v2360
        %v2362 = vpop.f32.mrf.mxu0
        %2363 = vdwg.mxu0
        %v2365 = vsel %vm2081, %v2063, 0
        %v2368 = vsel %vm2081, %v2071, 0
        %2370 = vmatprep.subr.bf16.mxu0 0
        %2371 = vmatpush1.bf16.xpose.msra.mxu0 0
        %2372 = vmatprep.subr.bf16.mxu0 0
        %2373 = vmatpush1.bf16.xpose.msra.mxu0 0
        %2374 = vmatprep.subr.bf16.mxu0 0
        %2375 = vmatpush1.bf16.xpose.msra.mxu0 0
        %2376 = vmatprep.subr.bf16.mxu0 0
        %2377 = vmatpush1.bf16.xpose.msra.mxu0 0
        %2378 = vmatprep.subr.bf16.mxu0 0
        %2379 = vmatpush1.bf16.xpose.msra.mxu0 0
        %2380 = vmatprep.subr.bf16.mxu0 0
        %2381 = vmatpush1.bf16.xpose.msra.mxu0 0
        %2382 = vmatprep.subr.bf16.mxu0 0
        %2383 = vmatpush1.bf16.xpose.msra.mxu0 0
        %2384 = vmatprep.subr.bf16.mxu0 0
        %2385 = vmatpush1.bf16.xpose.msra.mxu0 %v2368
        %2386 = vmatprep.subr.bf16.mxu0 0
        %2387 = vmatpush2.bf16.xpose.msra.mxu0 0
        %2388 = vmatprep.subr.bf16.mxu0 0
        %2389 = vmatpush2.bf16.xpose.msra.mxu0 0
        %2390 = vmatprep.subr.bf16.mxu0 0
        %2391 = vmatpush2.bf16.xpose.msra.mxu0 0
        %2392 = vmatprep.subr.bf16.mxu0 0
        %2393 = vmatpush2.bf16.xpose.msra.mxu0 0
        %2394 = vmatprep.subr.bf16.mxu0 0
        %2395 = vmatpush2.bf16.xpose.msra.mxu0 0
        %2396 = vmatprep.subr.bf16.mxu0 0
        %2397 = vmatpush2.bf16.xpose.msra.mxu0 0
        %2398 = vmatprep.subr.bf16.mxu0 0
        %2399 = vmatpush2.bf16.xpose.msra.mxu0 0
        %2400 = vmatprep.subr.bf16.mxu0 0
        %2401 = vmatpush2.bf16.xpose.msra.mxu0 0
        %2402 = vmatprep.mubr.bf16.mxu0 0
        %2403 = vmatmul.mubr.bf16.gmra.mxu0 %v2365
        %v2404 = vpop.f32.mrf.mxu0
        %v2405 = vadd.f32 0.0, %v2404
        %v2406 = vpop.f32.mrf.mxu0
        %v2407 = vpop.f32.mrf.mxu0
        %v2408 = vadd.f32 0.0, %v2407
        %v2409 = vpop.f32.mrf.mxu0
        %2410 = vdwg.mxu0
        %v2412 = vsel %vm2081, %v2064, 0
        %v2415 = vsel %vm2081, %v2072, 0
        %2417 = vmatprep.subr.bf16.mxu0 0
        %2418 = vmatpush1.bf16.xpose.msra.mxu0 0
        %2419 = vmatprep.subr.bf16.mxu0 0
        %2420 = vmatpush1.bf16.xpose.msra.mxu0 0
        %2421 = vmatprep.subr.bf16.mxu0 0
        %2422 = vmatpush1.bf16.xpose.msra.mxu0 0
        %2423 = vmatprep.subr.bf16.mxu0 0
        %2424 = vmatpush1.bf16.xpose.msra.mxu0 0
        %2425 = vmatprep.subr.bf16.mxu0 0
        %2426 = vmatpush1.bf16.xpose.msra.mxu0 0
        %2427 = vmatprep.subr.bf16.mxu0 0
        %2428 = vmatpush1.bf16.xpose.msra.mxu0 0
        %2429 = vmatprep.subr.bf16.mxu0 0
        %2430 = vmatpush1.bf16.xpose.msra.mxu0 0
        %2431 = vmatprep.subr.bf16.mxu0 0
        %2432 = vmatpush1.bf16.xpose.msra.mxu0 %v2415
        %2433 = vmatprep.subr.bf16.mxu0 0
        %2434 = vmatpush2.bf16.xpose.msra.mxu0 0
        %2435 = vmatprep.subr.bf16.mxu0 0
        %2436 = vmatpush2.bf16.xpose.msra.mxu0 0
        %2437 = vmatprep.subr.bf16.mxu0 0
        %2438 = vmatpush2.bf16.xpose.msra.mxu0 0
        %2439 = vmatprep.subr.bf16.mxu0 0
        %2440 = vmatpush2.bf16.xpose.msra.mxu0 0
        %2441 = vmatprep.subr.bf16.mxu0 0
        %2442 = vmatpush2.bf16.xpose.msra.mxu0 0
        %2443 = vmatprep.subr.bf16.mxu0 0
        %2444 = vmatpush2.bf16.xpose.msra.mxu0 0
        %2445 = vmatprep.subr.bf16.mxu0 0
        %2446 = vmatpush2.bf16.xpose.msra.mxu0 0
        %2447 = vmatprep.subr.bf16.mxu0 0
        %2448 = vmatpush2.bf16.xpose.msra.mxu0 0
        %2449 = vmatprep.mubr.bf16.mxu0 0
        %2450 = vmatmul.mubr.bf16.gmra.mxu0 %v2412
        %v2451 = vpop.f32.mrf.mxu0
        %v2452 = vadd.f32 0.0, %v2451
        %v2453 = vpop.f32.mrf.mxu0
        %v2454 = vpop.f32.mrf.mxu0
        %v2455 = vadd.f32 0.0, %v2454
        %v2456 = vpop.f32.mrf.mxu0
        %2457 = vdwg.mxu0
        %v2458 = vld [vmem:[%s296] sm:$0xff]
        %v2459 = vld [vmem:[%s296 + $0x8] sm:$0xff]
        %v2460 = vadd.f32 %v2123, %v2458
        %v2461 = vadd.f32 %v2126, %v2459
        %v2462 = vadd.f32 %v2170, %v2458
        %v2463 = vadd.f32 %v2173, %v2459
        %v2464 = vadd.f32 %v2217, %v2458
        %v2465 = vadd.f32 %v2220, %v2459
        %v2466 = vadd.f32 %v2264, %v2458
        %v2467 = vadd.f32 %v2267, %v2459
        %v2468 = vadd.f32 %v2311, %v2458
        %v2469 = vadd.f32 %v2314, %v2459
        %v2470 = vadd.f32 %v2358, %v2458
        %v2471 = vadd.f32 %v2361, %v2459
        %v2472 = vadd.f32 %v2405, %v2458
        %v2473 = vadd.f32 %v2408, %v2459
        %v2474 = vadd.f32 %v2452, %v2458
        %v2475 = vadd.f32 %v2455, %v2459
        %vm2476 = vcmask 130048
        %v2477 = vsel %vm2476, %v2460, -inf
        %2478 = vmax.xlane.f32.xlu0 %v2477
        %v2479 = vpop.xlane.xlu0 %2478
        %v2480 = vsel %vm2476, %v2461, -inf
        %2481 = vmax.xlane.f32.xlu0 %v2480
        %v2482 = vpop.xlane.xlu0 %2481
        %v2483 = vsel %vm2476, %v2462, -inf
        %2484 = vmax.xlane.f32.xlu0 %v2483
        %v2485 = vpop.xlane.xlu0 %2484
        %v2486 = vsel %vm2476, %v2463, -inf
        %2487 = vmax.xlane.f32.xlu0 %v2486
        %v2488 = vpop.xlane.xlu0 %2487
        %v2489 = vsel %vm2476, %v2464, -inf
        %2490 = vmax.xlane.f32.xlu0 %v2489
        %v2491 = vpop.xlane.xlu0 %2490
        %v2492 = vsel %vm2476, %v2465, -inf
        %2493 = vmax.xlane.f32.xlu0 %v2492
        %v2494 = vpop.xlane.xlu0 %2493
        %v2495 = vsel %vm2476, %v2466, -inf
        %2496 = vmax.xlane.f32.xlu0 %v2495
        %v2497 = vpop.xlane.xlu0 %2496
        %v2498 = vsel %vm2476, %v2467, -inf
        %2499 = vmax.xlane.f32.xlu0 %v2498
        %v2500 = vpop.xlane.xlu0 %2499
        %v2501 = vsel %vm2476, %v2468, -inf
        %2502 = vmax.xlane.f32.xlu0 %v2501
        %v2503 = vpop.xlane.xlu0 %2502
        %v2504 = vsel %vm2476, %v2469, -inf
        %2505 = vmax.xlane.f32.xlu0 %v2504
        %v2506 = vpop.xlane.xlu0 %2505
        %v2507 = vsel %vm2476, %v2470, -inf
        %2508 = vmax.xlane.f32.xlu0 %v2507
        %v2509 = vpop.xlane.xlu0 %2508
        %v2510 = vsel %vm2476, %v2471, -inf
        %2511 = vmax.xlane.f32.xlu0 %v2510
        %v2512 = vpop.xlane.xlu0 %2511
        %v2513 = vsel %vm2476, %v2472, -inf
        %2514 = vmax.xlane.f32.xlu0 %v2513
        %v2515 = vpop.xlane.xlu0 %2514
        %v2516 = vsel %vm2476, %v2473, -inf
        %2517 = vmax.xlane.f32.xlu0 %v2516
        %v2518 = vpop.xlane.xlu0 %2517
        %v2519 = vsel %vm2476, %v2474, -inf
        %2520 = vmax.xlane.f32.xlu0 %v2519
        %v2521 = vpop.xlane.xlu0 %2520
        %v2522 = vsel %vm2476, %v2475, -inf
        %2523 = vmax.xlane.f32.xlu0 %v2522
        %v2524 = vpop.xlane.xlu0 %2523
        %v2525 = vsub.f32 %v2460, %v2479
        %v2526 = vsub.f32 %v2461, %v2482
        %v2527 = vsub.f32 %v2462, %v2485
        %v2528 = vsub.f32 %v2463, %v2488
        %v2529 = vsub.f32 %v2464, %v2491
        %v2530 = vsub.f32 %v2465, %v2494
        %v2531 = vsub.f32 %v2466, %v2497
        %v2532 = vsub.f32 %v2467, %v2500
        %v2533 = vsub.f32 %v2468, %v2503
        %v2534 = vsub.f32 %v2469, %v2506
        %v2535 = vsub.f32 %v2470, %v2509
        %v2536 = vsub.f32 %v2471, %v2512
        %v2537 = vsub.f32 %v2472, %v2515
        %v2538 = vsub.f32 %v2473, %v2518
        %v2539 = vsub.f32 %v2474, %v2521
        %v2540 = vsub.f32 %v2475, %v2524
        %v2541 = vmul.f32 %v2525, 1.442695
        %v2542 = vpow.pop %v2541
        %v2543 = vmul.f32 %v2526, 1.442695
        %v2544 = vpow.pop %v2543
        %v2545 = vmul.f32 %v2527, 1.442695
        %v2546 = vpow.pop %v2545
        %v2547 = vmul.f32 %v2528, 1.442695
        %v2548 = vpow.pop %v2547
        %v2549 = vmul.f32 %v2529, 1.442695
        %v2550 = vpow.pop %v2549
        %v2551 = vmul.f32 %v2530, 1.442695
        %v2552 = vpow.pop %v2551
        %v2553 = vmul.f32 %v2531, 1.442695
        %v2554 = vpow.pop %v2553
        %v2555 = vmul.f32 %v2532, 1.442695
        %v2556 = vpow.pop %v2555
        %v2557 = vmul.f32 %v2533, 1.442695
        %v2558 = vpow.pop %v2557
        %v2559 = vmul.f32 %v2534, 1.442695
        %v2560 = vpow.pop %v2559
        %v2561 = vmul.f32 %v2535, 1.442695
        %v2562 = vpow.pop %v2561
        %v2563 = vmul.f32 %v2536, 1.442695
        %v2564 = vpow.pop %v2563
        %v2565 = vmul.f32 %v2537, 1.442695
        %v2566 = vpow.pop %v2565
        %v2567 = vmul.f32 %v2538, 1.442695
        %v2568 = vpow.pop %v2567
        %v2569 = vmul.f32 %v2539, 1.442695
        %v2570 = vpow.pop %v2569
        %v2571 = vmul.f32 %v2540, 1.442695
        %v2572 = vpow.pop %v2571
        %v2573 = vsel %vm2476, %v2542, 0.0
        %2574 = vadd.xlane.f32.xlu0 %v2573
        %v2575 = vpop.xlane.xlu0 %2574
        %v2576 = vsel %vm2476, %v2544, 0.0
        %2577 = vadd.xlane.f32.xlu0 %v2576
        %v2578 = vpop.xlane.xlu0 %2577
        %v2579 = vsel %vm2476, %v2546, 0.0
        %2580 = vadd.xlane.f32.xlu0 %v2579
        %v2581 = vpop.xlane.xlu0 %2580
        %v2582 = vsel %vm2476, %v2548, 0.0
        %2583 = vadd.xlane.f32.xlu0 %v2582
        %v2584 = vpop.xlane.xlu0 %2583
        %v2585 = vsel %vm2476, %v2550, 0.0
        %2586 = vadd.xlane.f32.xlu0 %v2585
        %v2587 = vpop.xlane.xlu0 %2586
        %v2588 = vsel %vm2476, %v2552, 0.0
        %2589 = vadd.xlane.f32.xlu0 %v2588
        %v2590 = vpop.xlane.xlu0 %2589
        %v2591 = vsel %vm2476, %v2554, 0.0
        %2592 = vadd.xlane.f32.xlu0 %v2591
        %v2593 = vpop.xlane.xlu0 %2592
        %v2594 = vsel %vm2476, %v2556, 0.0
        %2595 = vadd.xlane.f32.xlu0 %v2594
        %v2596 = vpop.xlane.xlu0 %2595
        %v2597 = vsel %vm2476, %v2558, 0.0
        %2598 = vadd.xlane.f32.xlu0 %v2597
        %v2599 = vpop.xlane.xlu0 %2598
        %v2600 = vsel %vm2476, %v2560, 0.0
        %2601 = vadd.xlane.f32.xlu0 %v2600
        %v2602 = vpop.xlane.xlu0 %2601
        %v2603 = vsel %vm2476, %v2562, 0.0
        %2604 = vadd.xlane.f32.xlu0 %v2603
        %v2605 = vpop.xlane.xlu0 %2604
        %v2606 = vsel %vm2476, %v2564, 0.0
        %2607 = vadd.xlane.f32.xlu0 %v2606
        %v2608 = vpop.xlane.xlu0 %2607
        %v2609 = vsel %vm2476, %v2566, 0.0
        %2610 = vadd.xlane.f32.xlu0 %v2609
        %v2611 = vpop.xlane.xlu0 %2610
        %v2612 = vsel %vm2476, %v2568, 0.0
        %2613 = vadd.xlane.f32.xlu0 %v2612
        %v2614 = vpop.xlane.xlu0 %2613
        %v2615 = vsel %vm2476, %v2570, 0.0
        %2616 = vadd.xlane.f32.xlu0 %v2615
        %v2617 = vpop.xlane.xlu0 %2616
        %v2618 = vsel %vm2476, %v2572, 0.0
        %2619 = vadd.xlane.f32.xlu0 %v2618
        %v2620 = vpop.xlane.xlu0 %2619
        %v2621 = vrcp.pop %v2575
        %v2622 = vrcp.pop %v2578
        %v2623 = vrcp.pop %v2581
        %v2624 = vrcp.pop %v2584
        %v2625 = vrcp.pop %v2587
        %v2626 = vrcp.pop %v2590
        %v2627 = vrcp.pop %v2593
        %v2628 = vrcp.pop %v2596
        %v2629 = vrcp.pop %v2599
        %v2630 = vrcp.pop %v2602
        %v2631 = vrcp.pop %v2605
        %v2632 = vrcp.pop %v2608
        %v2633 = vrcp.pop %v2611
        %v2634 = vrcp.pop %v2614
        %v2635 = vrcp.pop %v2617
        %v2636 = vrcp.pop %v2620
        %v2637 = vmul.f32 %v2542, %v2621
        %v2638 = vmul.f32 %v2544, %v2622
        %v2639 = vmul.f32 %v2546, %v2623
        %v2640 = vmul.f32 %v2548, %v2624
        %v2641 = vmul.f32 %v2550, %v2625
        %v2642 = vmul.f32 %v2552, %v2626
        %v2643 = vmul.f32 %v2554, %v2627
        %v2644 = vmul.f32 %v2556, %v2628
        %v2645 = vmul.f32 %v2558, %v2629
        %v2646 = vmul.f32 %v2560, %v2630
        %v2647 = vmul.f32 %v2562, %v2631
        %v2648 = vmul.f32 %v2564, %v2632
        %v2649 = vmul.f32 %v2566, %v2633
        %v2650 = vmul.f32 %v2568, %v2634
        %v2651 = vmul.f32 %v2570, %v2635
        %v2652 = vmul.f32 %v2572, %v2636
        %v2653 = vpack.c.bf16 %v2638, %v2637
        %v2654 = vpack.c.bf16 %v2640, %v2639
        %v2655 = vpack.c.bf16 %v2642, %v2641
        %v2656 = vpack.c.bf16 %v2644, %v2643
        %v2657 = vpack.c.bf16 %v2646, %v2645
        %v2658 = vpack.c.bf16 %v2648, %v2647
        %v2659 = vpack.c.bf16 %v2650, %v2649
        %v2660 = vpack.c.bf16 %v2652, %v2651
        %v2662 = vsel %vm2476, %v2653, 0
        %2664 = vmatprep.subr.bf16.mxu0 0
        %2665 = vmatpush1.bf16.msra.mxu0 0
        %2666 = vmatprep.subr.bf16.mxu0 0
        %2667 = vmatpush1.bf16.msra.mxu0 0
        %2668 = vmatprep.subr.bf16.mxu0 0
        %2669 = vmatpush1.bf16.msra.mxu0 0
        %2670 = vmatprep.subr.bf16.mxu0 0
        %2671 = vmatpush1.bf16.msra.mxu0 0
        %2672 = vmatprep.subr.bf16.mxu0 0
        %2673 = vmatpush1.bf16.msra.mxu0 0
        %2674 = vmatprep.subr.bf16.mxu0 0
        %2675 = vmatpush1.bf16.msra.mxu0 0
        %2676 = vmatprep.subr.bf16.mxu0 0
        %2677 = vmatpush1.bf16.msra.mxu0 0
        %2678 = vmatprep.subr.bf16.mxu0 0
        %2679 = vmatpush1.bf16.msra.mxu0 %v2073
        %2680 = vmatprep.subr.bf16.mxu0 0
        %2681 = vmatpush2.bf16.msra.mxu0 0
        %2682 = vmatprep.subr.bf16.mxu0 0
        %2683 = vmatpush2.bf16.msra.mxu0 0
        %2684 = vmatprep.subr.bf16.mxu0 0
        %2685 = vmatpush2.bf16.msra.mxu0 0
        %2686 = vmatprep.subr.bf16.mxu0 0
        %2687 = vmatpush2.bf16.msra.mxu0 0
        %2688 = vmatprep.subr.bf16.mxu0 0
        %2689 = vmatpush2.bf16.msra.mxu0 0
        %2690 = vmatprep.subr.bf16.mxu0 0
        %2691 = vmatpush2.bf16.msra.mxu0 0
        %2692 = vmatprep.subr.bf16.mxu0 0
        %2693 = vmatpush2.bf16.msra.mxu0 0
        %2694 = vmatprep.subr.bf16.mxu0 0
        %2695 = vmatpush2.bf16.msra.mxu0 0
        %2696 = vmatprep.mubr.bf16.mxu0 0
        %2697 = vmatmul.mubr.bf16.gmra.mxu0 %v2662
        %v2698 = vpop.f32.mrf.mxu0
        %v2699 = vadd.f32 0.0, %v2698
        %v2700 = vpop.f32.mrf.mxu0
        %v2701 = vpop.f32.mrf.mxu0
        %v2702 = vadd.f32 0.0, %v2701
        %v2703 = vpop.f32.mrf.mxu0
        %2704 = vdwg.mxu0
        %v2706 = vsel %vm2476, %v2654, 0
        %2708 = vmatprep.subr.bf16.mxu0 0
        %2709 = vmatpush1.bf16.msra.mxu0 0
        %2710 = vmatprep.subr.bf16.mxu0 0
        %2711 = vmatpush1.bf16.msra.mxu0 0
        %2712 = vmatprep.subr.bf16.mxu0 0
        %2713 = vmatpush1.bf16.msra.mxu0 0
        %2714 = vmatprep.subr.bf16.mxu0 0
        %2715 = vmatpush1.bf16.msra.mxu0 0
        %2716 = vmatprep.subr.bf16.mxu0 0
        %2717 = vmatpush1.bf16.msra.mxu0 0
        %2718 = vmatprep.subr.bf16.mxu0 0
        %2719 = vmatpush1.bf16.msra.mxu0 0
        %2720 = vmatprep.subr.bf16.mxu0 0
        %2721 = vmatpush1.bf16.msra.mxu0 0
        %2722 = vmatprep.subr.bf16.mxu0 0
        %2723 = vmatpush1.bf16.msra.mxu0 %v2074
        %2724 = vmatprep.subr.bf16.mxu0 0
        %2725 = vmatpush2.bf16.msra.mxu0 0
        %2726 = vmatprep.subr.bf16.mxu0 0
        %2727 = vmatpush2.bf16.msra.mxu0 0
        %2728 = vmatprep.subr.bf16.mxu0 0
        %2729 = vmatpush2.bf16.msra.mxu0 0
        %2730 = vmatprep.subr.bf16.mxu0 0
        %2731 = vmatpush2.bf16.msra.mxu0 0
        %2732 = vmatprep.subr.bf16.mxu0 0
        %2733 = vmatpush2.bf16.msra.mxu0 0
        %2734 = vmatprep.subr.bf16.mxu0 0
        %2735 = vmatpush2.bf16.msra.mxu0 0
        %2736 = vmatprep.subr.bf16.mxu0 0
        %2737 = vmatpush2.bf16.msra.mxu0 0
        %2738 = vmatprep.subr.bf16.mxu0 0
        %2739 = vmatpush2.bf16.msra.mxu0 0
        %2740 = vmatprep.mubr.bf16.mxu0 0
        %2741 = vmatmul.mubr.bf16.gmra.mxu0 %v2706
        %v2742 = vpop.f32.mrf.mxu0
        %v2743 = vadd.f32 0.0, %v2742
        %v2744 = vpop.f32.mrf.mxu0
        %v2745 = vpop.f32.mrf.mxu0
        %v2746 = vadd.f32 0.0, %v2745
        %v2747 = vpop.f32.mrf.mxu0
        %2748 = vdwg.mxu0
        %v2750 = vsel %vm2476, %v2655, 0
        %2752 = vmatprep.subr.bf16.mxu0 0
        %2753 = vmatpush1.bf16.msra.mxu0 0
        %2754 = vmatprep.subr.bf16.mxu0 0
        %2755 = vmatpush1.bf16.msra.mxu0 0
        %2756 = vmatprep.subr.bf16.mxu0 0
        %2757 = vmatpush1.bf16.msra.mxu0 0
        %2758 = vmatprep.subr.bf16.mxu0 0
        %2759 = vmatpush1.bf16.msra.mxu0 0
        %2760 = vmatprep.subr.bf16.mxu0 0
        %2761 = vmatpush1.bf16.msra.mxu0 0
        %2762 = vmatprep.subr.bf16.mxu0 0
        %2763 = vmatpush1.bf16.msra.mxu0 0
        %2764 = vmatprep.subr.bf16.mxu0 0
        %2765 = vmatpush1.bf16.msra.mxu0 0
        %2766 = vmatprep.subr.bf16.mxu0 0
        %2767 = vmatpush1.bf16.msra.mxu0 %v2075
        %2768 = vmatprep.subr.bf16.mxu0 0
        %2769 = vmatpush2.bf16.msra.mxu0 0
        %2770 = vmatprep.subr.bf16.mxu0 0
        %2771 = vmatpush2.bf16.msra.mxu0 0
        %2772 = vmatprep.subr.bf16.mxu0 0
        %2773 = vmatpush2.bf16.msra.mxu0 0
        %2774 = vmatprep.subr.bf16.mxu0 0
        %2775 = vmatpush2.bf16.msra.mxu0 0
        %2776 = vmatprep.subr.bf16.mxu0 0
        %2777 = vmatpush2.bf16.msra.mxu0 0
        %2778 = vmatprep.subr.bf16.mxu0 0
        %2779 = vmatpush2.bf16.msra.mxu0 0
        %2780 = vmatprep.subr.bf16.mxu0 0
        %2781 = vmatpush2.bf16.msra.mxu0 0
        %2782 = vmatprep.subr.bf16.mxu0 0
        %2783 = vmatpush2.bf16.msra.mxu0 0
        %2784 = vmatprep.mubr.bf16.mxu0 0
        %2785 = vmatmul.mubr.bf16.gmra.mxu0 %v2750
        %v2786 = vpop.f32.mrf.mxu0
        %v2787 = vadd.f32 0.0, %v2786
        %v2788 = vpop.f32.mrf.mxu0
        %v2789 = vpop.f32.mrf.mxu0
        %v2790 = vadd.f32 0.0, %v2789
        %v2791 = vpop.f32.mrf.mxu0
        %2792 = vdwg.mxu0
        %v2794 = vsel %vm2476, %v2656, 0
        %2796 = vmatprep.subr.bf16.mxu0 0
        %2797 = vmatpush1.bf16.msra.mxu0 0
        %2798 = vmatprep.subr.bf16.mxu0 0
        %2799 = vmatpush1.bf16.msra.mxu0 0
        %2800 = vmatprep.subr.bf16.mxu0 0
        %2801 = vmatpush1.bf16.msra.mxu0 0
        %2802 = vmatprep.subr.bf16.mxu0 0
        %2803 = vmatpush1.bf16.msra.mxu0 0
        %2804 = vmatprep.subr.bf16.mxu0 0
        %2805 = vmatpush1.bf16.msra.mxu0 0
        %2806 = vmatprep.subr.bf16.mxu0 0
        %2807 = vmatpush1.bf16.msra.mxu0 0
        %2808 = vmatprep.subr.bf16.mxu0 0
        %2809 = vmatpush1.bf16.msra.mxu0 0
        %2810 = vmatprep.subr.bf16.mxu0 0
        %2811 = vmatpush1.bf16.msra.mxu0 %v2076
        %2812 = vmatprep.subr.bf16.mxu0 0
        %2813 = vmatpush2.bf16.msra.mxu0 0
        %2814 = vmatprep.subr.bf16.mxu0 0
        %2815 = vmatpush2.bf16.msra.mxu0 0
        %2816 = vmatprep.subr.bf16.mxu0 0
        %2817 = vmatpush2.bf16.msra.mxu0 0
        %2818 = vmatprep.subr.bf16.mxu0 0
        %2819 = vmatpush2.bf16.msra.mxu0 0
        %2820 = vmatprep.subr.bf16.mxu0 0
        %2821 = vmatpush2.bf16.msra.mxu0 0
        %2822 = vmatprep.subr.bf16.mxu0 0
        %2823 = vmatpush2.bf16.msra.mxu0 0
        %2824 = vmatprep.subr.bf16.mxu0 0
        %2825 = vmatpush2.bf16.msra.mxu0 0
        %2826 = vmatprep.subr.bf16.mxu0 0
        %2827 = vmatpush2.bf16.msra.mxu0 0
        %2828 = vmatprep.mubr.bf16.mxu0 0
        %2829 = vmatmul.mubr.bf16.gmra.mxu0 %v2794
        %v2830 = vpop.f32.mrf.mxu0
        %v2831 = vadd.f32 0.0, %v2830
        %v2832 = vpop.f32.mrf.mxu0
        %v2833 = vpop.f32.mrf.mxu0
        %v2834 = vadd.f32 0.0, %v2833
        %v2835 = vpop.f32.mrf.mxu0
        %2836 = vdwg.mxu0
        %v2838 = vsel %vm2476, %v2657, 0
        %2840 = vmatprep.subr.bf16.mxu0 0
        %2841 = vmatpush1.bf16.msra.mxu0 0
        %2842 = vmatprep.subr.bf16.mxu0 0
        %2843 = vmatpush1.bf16.msra.mxu0 0
        %2844 = vmatprep.subr.bf16.mxu0 0
        %2845 = vmatpush1.bf16.msra.mxu0 0
        %2846 = vmatprep.subr.bf16.mxu0 0
        %2847 = vmatpush1.bf16.msra.mxu0 0
        %2848 = vmatprep.subr.bf16.mxu0 0
        %2849 = vmatpush1.bf16.msra.mxu0 0
        %2850 = vmatprep.subr.bf16.mxu0 0
        %2851 = vmatpush1.bf16.msra.mxu0 0
        %2852 = vmatprep.subr.bf16.mxu0 0
        %2853 = vmatpush1.bf16.msra.mxu0 0
        %2854 = vmatprep.subr.bf16.mxu0 0
        %2855 = vmatpush1.bf16.msra.mxu0 %v2077
        %2856 = vmatprep.subr.bf16.mxu0 0
        %2857 = vmatpush2.bf16.msra.mxu0 0
        %2858 = vmatprep.subr.bf16.mxu0 0
        %2859 = vmatpush2.bf16.msra.mxu0 0
        %2860 = vmatprep.subr.bf16.mxu0 0
        %2861 = vmatpush2.bf16.msra.mxu0 0
        %2862 = vmatprep.subr.bf16.mxu0 0
        %2863 = vmatpush2.bf16.msra.mxu0 0
        %2864 = vmatprep.subr.bf16.mxu0 0
        %2865 = vmatpush2.bf16.msra.mxu0 0
        %2866 = vmatprep.subr.bf16.mxu0 0
        %2867 = vmatpush2.bf16.msra.mxu0 0
        %2868 = vmatprep.subr.bf16.mxu0 0
        %2869 = vmatpush2.bf16.msra.mxu0 0
        %2870 = vmatprep.subr.bf16.mxu0 0
        %2871 = vmatpush2.bf16.msra.mxu0 0
        %2872 = vmatprep.mubr.bf16.mxu0 0
        %2873 = vmatmul.mubr.bf16.gmra.mxu0 %v2838
        %v2874 = vpop.f32.mrf.mxu0
        %v2875 = vadd.f32 0.0, %v2874
        %v2876 = vpop.f32.mrf.mxu0
        %v2877 = vpop.f32.mrf.mxu0
        %v2878 = vadd.f32 0.0, %v2877
        %v2879 = vpop.f32.mrf.mxu0
        %2880 = vdwg.mxu0
        %v2882 = vsel %vm2476, %v2658, 0
        %2884 = vmatprep.subr.bf16.mxu0 0
        %2885 = vmatpush1.bf16.msra.mxu0 0
        %2886 = vmatprep.subr.bf16.mxu0 0
        %2887 = vmatpush1.bf16.msra.mxu0 0
        %2888 = vmatprep.subr.bf16.mxu0 0
        %2889 = vmatpush1.bf16.msra.mxu0 0
        %2890 = vmatprep.subr.bf16.mxu0 0
        %2891 = vmatpush1.bf16.msra.mxu0 0
        %2892 = vmatprep.subr.bf16.mxu0 0
        %2893 = vmatpush1.bf16.msra.mxu0 0
        %2894 = vmatprep.subr.bf16.mxu0 0
        %2895 = vmatpush1.bf16.msra.mxu0 0
        %2896 = vmatprep.subr.bf16.mxu0 0
        %2897 = vmatpush1.bf16.msra.mxu0 0
        %2898 = vmatprep.subr.bf16.mxu0 0
        %2899 = vmatpush1.bf16.msra.mxu0 %v2078
        %2900 = vmatprep.subr.bf16.mxu0 0
        %2901 = vmatpush2.bf16.msra.mxu0 0
        %2902 = vmatprep.subr.bf16.mxu0 0
        %2903 = vmatpush2.bf16.msra.mxu0 0
        %2904 = vmatprep.subr.bf16.mxu0 0
        %2905 = vmatpush2.bf16.msra.mxu0 0
        %2906 = vmatprep.subr.bf16.mxu0 0
        %2907 = vmatpush2.bf16.msra.mxu0 0
        %2908 = vmatprep.subr.bf16.mxu0 0
        %2909 = vmatpush2.bf16.msra.mxu0 0
        %2910 = vmatprep.subr.bf16.mxu0 0
        %2911 = vmatpush2.bf16.msra.mxu0 0
        %2912 = vmatprep.subr.bf16.mxu0 0
        %2913 = vmatpush2.bf16.msra.mxu0 0
        %2914 = vmatprep.subr.bf16.mxu0 0
        %2915 = vmatpush2.bf16.msra.mxu0 0
        %2916 = vmatprep.mubr.bf16.mxu0 0
        %2917 = vmatmul.mubr.bf16.gmra.mxu0 %v2882
        %v2918 = vpop.f32.mrf.mxu0
        %v2919 = vadd.f32 0.0, %v2918
        %v2920 = vpop.f32.mrf.mxu0
        %v2921 = vpop.f32.mrf.mxu0
        %v2922 = vadd.f32 0.0, %v2921
        %v2923 = vpop.f32.mrf.mxu0
        %2924 = vdwg.mxu0
        %v2926 = vsel %vm2476, %v2659, 0
        %2928 = vmatprep.subr.bf16.mxu0 0
        %2929 = vmatpush1.bf16.msra.mxu0 0
        %2930 = vmatprep.subr.bf16.mxu0 0
        %2931 = vmatpush1.bf16.msra.mxu0 0
        %2932 = vmatprep.subr.bf16.mxu0 0
        %2933 = vmatpush1.bf16.msra.mxu0 0
        %2934 = vmatprep.subr.bf16.mxu0 0
        %2935 = vmatpush1.bf16.msra.mxu0 0
        %2936 = vmatprep.subr.bf16.mxu0 0
        %2937 = vmatpush1.bf16.msra.mxu0 0
        %2938 = vmatprep.subr.bf16.mxu0 0
        %2939 = vmatpush1.bf16.msra.mxu0 0
        %2940 = vmatprep.subr.bf16.mxu0 0
        %2941 = vmatpush1.bf16.msra.mxu0 0
        %2942 = vmatprep.subr.bf16.mxu0 0
        %2943 = vmatpush1.bf16.msra.mxu0 %v2079
        %2944 = vmatprep.subr.bf16.mxu0 0
        %2945 = vmatpush2.bf16.msra.mxu0 0
        %2946 = vmatprep.subr.bf16.mxu0 0
        %2947 = vmatpush2.bf16.msra.mxu0 0
        %2948 = vmatprep.subr.bf16.mxu0 0
        %2949 = vmatpush2.bf16.msra.mxu0 0
        %2950 = vmatprep.subr.bf16.mxu0 0
        %2951 = vmatpush2.bf16.msra.mxu0 0
        %2952 = vmatprep.subr.bf16.mxu0 0
        %2953 = vmatpush2.bf16.msra.mxu0 0
        %2954 = vmatprep.subr.bf16.mxu0 0
        %2955 = vmatpush2.bf16.msra.mxu0 0
        %2956 = vmatprep.subr.bf16.mxu0 0
        %2957 = vmatpush2.bf16.msra.mxu0 0
        %2958 = vmatprep.subr.bf16.mxu0 0
        %2959 = vmatpush2.bf16.msra.mxu0 0
        %2960 = vmatprep.mubr.bf16.mxu0 0
        %2961 = vmatmul.mubr.bf16.gmra.mxu0 %v2926
        %v2962 = vpop.f32.mrf.mxu0
        %v2963 = vadd.f32 0.0, %v2962
        %v2964 = vpop.f32.mrf.mxu0
        %v2965 = vpop.f32.mrf.mxu0
        %v2966 = vadd.f32 0.0, %v2965
        %v2967 = vpop.f32.mrf.mxu0
        %2968 = vdwg.mxu0
        %v2970 = vsel %vm2476, %v2660, 0
        %2972 = vmatprep.subr.bf16.mxu0 0
        %2973 = vmatpush1.bf16.msra.mxu0 0
        %2974 = vmatprep.subr.bf16.mxu0 0
        %2975 = vmatpush1.bf16.msra.mxu0 0
        %2976 = vmatprep.subr.bf16.mxu0 0
        %2977 = vmatpush1.bf16.msra.mxu0 0
        %2978 = vmatprep.subr.bf16.mxu0 0
        %2979 = vmatpush1.bf16.msra.mxu0 0
        %2980 = vmatprep.subr.bf16.mxu0 0
        %2981 = vmatpush1.bf16.msra.mxu0 0
        %2982 = vmatprep.subr.bf16.mxu0 0
        %2983 = vmatpush1.bf16.msra.mxu0 0
        %2984 = vmatprep.subr.bf16.mxu0 0
        %2985 = vmatpush1.bf16.msra.mxu0 0
        %2986 = vmatprep.subr.bf16.mxu0 0
        %2987 = vmatpush1.bf16.msra.mxu0 %v2080
        %2988 = vmatprep.subr.bf16.mxu0 0
        %2989 = vmatpush2.bf16.msra.mxu0 0
        %2990 = vmatprep.subr.bf16.mxu0 0
        %2991 = vmatpush2.bf16.msra.mxu0 0
        %2992 = vmatprep.subr.bf16.mxu0 0
        %2993 = vmatpush2.bf16.msra.mxu0 0
        %2994 = vmatprep.subr.bf16.mxu0 0
        %2995 = vmatpush2.bf16.msra.mxu0 0
        %2996 = vmatprep.subr.bf16.mxu0 0
        %2997 = vmatpush2.bf16.msra.mxu0 0
        %2998 = vmatprep.subr.bf16.mxu0 0
        %2999 = vmatpush2.bf16.msra.mxu0 0
        %3000 = vmatprep.subr.bf16.mxu0 0
        %3001 = vmatpush2.bf16.msra.mxu0 0
        %3002 = vmatprep.subr.bf16.mxu0 0
        %3003 = vmatpush2.bf16.msra.mxu0 0
        %3004 = vmatprep.mubr.bf16.mxu0 0
        %3005 = vmatmul.mubr.bf16.gmra.mxu0 %v2970
        %v3006 = vpop.f32.mrf.mxu0
        %v3007 = vadd.f32 0.0, %v3006
        %v3008 = vpop.f32.mrf.mxu0
        %v3009 = vpop.f32.mrf.mxu0
        %v3010 = vadd.f32 0.0, %v3009
        %v3011 = vpop.f32.mrf.mxu0
        %3012 = vdwg.mxu0
        %v3013 = vpack.c.bf16 %v2702, %v2699
        %v3014 = vpack.c.bf16 %v2746, %v2743
        %v3015 = vpack.c.bf16 %v2790, %v2787
        %v3016 = vpack.c.bf16 %v2834, %v2831
        %v3017 = vpack.c.bf16 %v2878, %v2875
        %v3018 = vpack.c.bf16 %v2922, %v2919
        %v3019 = vpack.c.bf16 %v2966, %v2963
        %v3020 = vpack.c.bf16 %v3010, %v3007
        %v3021 = vld [vmem:[%s5] sm:$0xf]
        %v3022 = vld [vmem:[%s5 + $0x4] sm:$0xf]
        %v3023 = vld [vmem:[%s5 + $0x8] sm:$0xf]
        %v3024 = vld [vmem:[%s5 + $0xc] sm:$0xf]
        %v3025 = vld [vmem:[%s5 + $0x10] sm:$0xf]
        %v3026 = vld [vmem:[%s5 + $0x14] sm:$0xf]
        %v3027 = vld [vmem:[%s5 + $0x18] sm:$0xf]
        %v3028 = vld [vmem:[%s5 + $0x1c] sm:$0xf]
        %v3030 = vsel %vm2081, %v3013, 0
        %vm3032 = vcmask 1043456
        %v3034 = vsel %vm3032, %v3021, 0
        %3036 = vmatprep.subr.bf16.mxu0 0
        %3037 = vmatpush1.bf16.msra.mxu0 0
        %3038 = vmatprep.subr.bf16.mxu0 0
        %3039 = vmatpush1.bf16.msra.mxu0 0
        %3040 = vmatprep.subr.bf16.mxu0 0
        %3041 = vmatpush1.bf16.msra.mxu0 0
        %3042 = vmatprep.subr.bf16.mxu0 0
        %3043 = vmatpush1.bf16.msra.mxu0 0
        %3044 = vmatprep.subr.bf16.mxu0 0
        %3045 = vmatpush1.bf16.msra.mxu0 0
        %3046 = vmatprep.subr.bf16.mxu0 0
        %3047 = vmatpush1.bf16.msra.mxu0 0
        %3048 = vmatprep.subr.bf16.mxu0 0
        %3049 = vmatpush1.bf16.msra.mxu0 0
        %3050 = vmatprep.subr.bf16.mxu0 0
        %3051 = vmatpush1.bf16.msra.mxu0 %v3034
        %3052 = vmatprep.subr.bf16.mxu0 0
        %3053 = vmatpush2.bf16.msra.mxu0 0
        %3054 = vmatprep.subr.bf16.mxu0 0
        %3055 = vmatpush2.bf16.msra.mxu0 0
        %3056 = vmatprep.subr.bf16.mxu0 0
        %3057 = vmatpush2.bf16.msra.mxu0 0
        %3058 = vmatprep.subr.bf16.mxu0 0
        %3059 = vmatpush2.bf16.msra.mxu0 0
        %3060 = vmatprep.subr.bf16.mxu0 0
        %3061 = vmatpush2.bf16.msra.mxu0 0
        %3062 = vmatprep.subr.bf16.mxu0 0
        %3063 = vmatpush2.bf16.msra.mxu0 0
        %3064 = vmatprep.subr.bf16.mxu0 0
        %3065 = vmatpush2.bf16.msra.mxu0 0
        %3066 = vmatprep.subr.bf16.mxu0 0
        %3067 = vmatpush2.bf16.msra.mxu0 0
        %3068 = vmatprep.mubr.bf16.mxu0 0
        %3069 = vmatmul.mubr.bf16.gmra.mxu0 %v3030
        %v3070 = vpop.f32.mrf.mxu0
        %v3071 = vadd.f32 0.0, %v3070
        %v3072 = vpop.f32.mrf.mxu0
        %v3073 = vpop.f32.mrf.mxu0
        %v3074 = vadd.f32 0.0, %v3073
        %v3075 = vpop.f32.mrf.mxu0
        %3076 = vdwg.mxu0
        %v3078 = vsel %vm2081, %v3014, 0
        %v3081 = vsel %vm3032, %v3022, 0
        %3083 = vmatprep.subr.bf16.mxu0 0
        %3084 = vmatpush1.bf16.msra.mxu0 0
        %3085 = vmatprep.subr.bf16.mxu0 0
        %3086 = vmatpush1.bf16.msra.mxu0 0
        %3087 = vmatprep.subr.bf16.mxu0 0
        %3088 = vmatpush1.bf16.msra.mxu0 0
        %3089 = vmatprep.subr.bf16.mxu0 0
        %3090 = vmatpush1.bf16.msra.mxu0 0
        %3091 = vmatprep.subr.bf16.mxu0 0
        %3092 = vmatpush1.bf16.msra.mxu0 0
        %3093 = vmatprep.subr.bf16.mxu0 0
        %3094 = vmatpush1.bf16.msra.mxu0 0
        %3095 = vmatprep.subr.bf16.mxu0 0
        %3096 = vmatpush1.bf16.msra.mxu0 0
        %3097 = vmatprep.subr.bf16.mxu0 0
        %3098 = vmatpush1.bf16.msra.mxu0 %v3081
        %3099 = vmatprep.subr.bf16.mxu0 0
        %3100 = vmatpush2.bf16.msra.mxu0 0
        %3101 = vmatprep.subr.bf16.mxu0 0
        %3102 = vmatpush2.bf16.msra.mxu0 0
        %3103 = vmatprep.subr.bf16.mxu0 0
        %3104 = vmatpush2.bf16.msra.mxu0 0
        %3105 = vmatprep.subr.bf16.mxu0 0
        %3106 = vmatpush2.bf16.msra.mxu0 0
        %3107 = vmatprep.subr.bf16.mxu0 0
        %3108 = vmatpush2.bf16.msra.mxu0 0
        %3109 = vmatprep.subr.bf16.mxu0 0
        %3110 = vmatpush2.bf16.msra.mxu0 0
        %3111 = vmatprep.subr.bf16.mxu0 0
        %3112 = vmatpush2.bf16.msra.mxu0 0
        %3113 = vmatprep.subr.bf16.mxu0 0
        %3114 = vmatpush2.bf16.msra.mxu0 0
        %3115 = vmatprep.mubr.bf16.mxu0 0
        %3116 = vmatmul.mubr.bf16.gmra.mxu0 %v3078
        %v3117 = vpop.f32.mrf.mxu0
        %v3118 = vadd.f32 0.0, %v3117
        %v3119 = vpop.f32.mrf.mxu0
        %v3120 = vpop.f32.mrf.mxu0
        %v3121 = vadd.f32 0.0, %v3120
        %v3122 = vpop.f32.mrf.mxu0
        %3123 = vdwg.mxu0
        %v3125 = vsel %vm2081, %v3015, 0
        %v3128 = vsel %vm3032, %v3023, 0
        %3130 = vmatprep.subr.bf16.mxu0 0
        %3131 = vmatpush1.bf16.msra.mxu0 0
        %3132 = vmatprep.subr.bf16.mxu0 0
        %3133 = vmatpush1.bf16.msra.mxu0 0
        %3134 = vmatprep.subr.bf16.mxu0 0
        %3135 = vmatpush1.bf16.msra.mxu0 0
        %3136 = vmatprep.subr.bf16.mxu0 0
        %3137 = vmatpush1.bf16.msra.mxu0 0
        %3138 = vmatprep.subr.bf16.mxu0 0
        %3139 = vmatpush1.bf16.msra.mxu0 0
        %3140 = vmatprep.subr.bf16.mxu0 0
        %3141 = vmatpush1.bf16.msra.mxu0 0
        %3142 = vmatprep.subr.bf16.mxu0 0
        %3143 = vmatpush1.bf16.msra.mxu0 0
        %3144 = vmatprep.subr.bf16.mxu0 0
        %3145 = vmatpush1.bf16.msra.mxu0 %v3128
        %3146 = vmatprep.subr.bf16.mxu0 0
        %3147 = vmatpush2.bf16.msra.mxu0 0
        %3148 = vmatprep.subr.bf16.mxu0 0
        %3149 = vmatpush2.bf16.msra.mxu0 0
        %3150 = vmatprep.subr.bf16.mxu0 0
        %3151 = vmatpush2.bf16.msra.mxu0 0
        %3152 = vmatprep.subr.bf16.mxu0 0
        %3153 = vmatpush2.bf16.msra.mxu0 0
        %3154 = vmatprep.subr.bf16.mxu0 0
        %3155 = vmatpush2.bf16.msra.mxu0 0
        %3156 = vmatprep.subr.bf16.mxu0 0
        %3157 = vmatpush2.bf16.msra.mxu0 0
        %3158 = vmatprep.subr.bf16.mxu0 0
        %3159 = vmatpush2.bf16.msra.mxu0 0
        %3160 = vmatprep.subr.bf16.mxu0 0
        %3161 = vmatpush2.bf16.msra.mxu0 0
        %3162 = vmatprep.mubr.bf16.mxu0 0
        %3163 = vmatmul.mubr.bf16.gmra.mxu0 %v3125
        %v3164 = vpop.f32.mrf.mxu0
        %v3165 = vadd.f32 0.0, %v3164
        %v3166 = vpop.f32.mrf.mxu0
        %v3167 = vpop.f32.mrf.mxu0
        %v3168 = vadd.f32 0.0, %v3167
        %v3169 = vpop.f32.mrf.mxu0
        %3170 = vdwg.mxu0
        %v3172 = vsel %vm2081, %v3016, 0
        %v3175 = vsel %vm3032, %v3024, 0
        %3177 = vmatprep.subr.bf16.mxu0 0
        %3178 = vmatpush1.bf16.msra.mxu0 0
        %3179 = vmatprep.subr.bf16.mxu0 0
        %3180 = vmatpush1.bf16.msra.mxu0 0
        %3181 = vmatprep.subr.bf16.mxu0 0
        %3182 = vmatpush1.bf16.msra.mxu0 0
        %3183 = vmatprep.subr.bf16.mxu0 0
        %3184 = vmatpush1.bf16.msra.mxu0 0
        %3185 = vmatprep.subr.bf16.mxu0 0
        %3186 = vmatpush1.bf16.msra.mxu0 0
        %3187 = vmatprep.subr.bf16.mxu0 0
        %3188 = vmatpush1.bf16.msra.mxu0 0
        %3189 = vmatprep.subr.bf16.mxu0 0
        %3190 = vmatpush1.bf16.msra.mxu0 0
        %3191 = vmatprep.subr.bf16.mxu0 0
        %3192 = vmatpush1.bf16.msra.mxu0 %v3175
        %3193 = vmatprep.subr.bf16.mxu0 0
        %3194 = vmatpush2.bf16.msra.mxu0 0
        %3195 = vmatprep.subr.bf16.mxu0 0
        %3196 = vmatpush2.bf16.msra.mxu0 0
        %3197 = vmatprep.subr.bf16.mxu0 0
        %3198 = vmatpush2.bf16.msra.mxu0 0
        %3199 = vmatprep.subr.bf16.mxu0 0
        %3200 = vmatpush2.bf16.msra.mxu0 0
        %3201 = vmatprep.subr.bf16.mxu0 0
        %3202 = vmatpush2.bf16.msra.mxu0 0
        %3203 = vmatprep.subr.bf16.mxu0 0
        %3204 = vmatpush2.bf16.msra.mxu0 0
        %3205 = vmatprep.subr.bf16.mxu0 0
        %3206 = vmatpush2.bf16.msra.mxu0 0
        %3207 = vmatprep.subr.bf16.mxu0 0
        %3208 = vmatpush2.bf16.msra.mxu0 0
        %3209 = vmatprep.mubr.bf16.mxu0 0
        %3210 = vmatmul.mubr.bf16.gmra.mxu0 %v3172
        %v3211 = vpop.f32.mrf.mxu0
        %v3212 = vadd.f32 0.0, %v3211
        %v3213 = vpop.f32.mrf.mxu0
        %v3214 = vpop.f32.mrf.mxu0
        %v3215 = vadd.f32 0.0, %v3214
        %v3216 = vpop.f32.mrf.mxu0
        %3217 = vdwg.mxu0
        %v3219 = vsel %vm2081, %v3017, 0
        %v3222 = vsel %vm3032, %v3025, 0
        %3224 = vmatprep.subr.bf16.mxu0 0
        %3225 = vmatpush1.bf16.msra.mxu0 0
        %3226 = vmatprep.subr.bf16.mxu0 0
        %3227 = vmatpush1.bf16.msra.mxu0 0
        %3228 = vmatprep.subr.bf16.mxu0 0
        %3229 = vmatpush1.bf16.msra.mxu0 0
        %3230 = vmatprep.subr.bf16.mxu0 0
        %3231 = vmatpush1.bf16.msra.mxu0 0
        %3232 = vmatprep.subr.bf16.mxu0 0
        %3233 = vmatpush1.bf16.msra.mxu0 0
        %3234 = vmatprep.subr.bf16.mxu0 0
        %3235 = vmatpush1.bf16.msra.mxu0 0
        %3236 = vmatprep.subr.bf16.mxu0 0
        %3237 = vmatpush1.bf16.msra.mxu0 0
        %3238 = vmatprep.subr.bf16.mxu0 0
        %3239 = vmatpush1.bf16.msra.mxu0 %v3222
        %3240 = vmatprep.subr.bf16.mxu0 0
        %3241 = vmatpush2.bf16.msra.mxu0 0
        %3242 = vmatprep.subr.bf16.mxu0 0
        %3243 = vmatpush2.bf16.msra.mxu0 0
        %3244 = vmatprep.subr.bf16.mxu0 0
        %3245 = vmatpush2.bf16.msra.mxu0 0
        %3246 = vmatprep.subr.bf16.mxu0 0
        %3247 = vmatpush2.bf16.msra.mxu0 0
        %3248 = vmatprep.subr.bf16.mxu0 0
        %3249 = vmatpush2.bf16.msra.mxu0 0
        %3250 = vmatprep.subr.bf16.mxu0 0
        %3251 = vmatpush2.bf16.msra.mxu0 0
        %3252 = vmatprep.subr.bf16.mxu0 0
        %3253 = vmatpush2.bf16.msra.mxu0 0
        %3254 = vmatprep.subr.bf16.mxu0 0
        %3255 = vmatpush2.bf16.msra.mxu0 0
        %3256 = vmatprep.mubr.bf16.mxu0 0
        %3257 = vmatmul.mubr.bf16.gmra.mxu0 %v3219
        %v3258 = vpop.f32.mrf.mxu0
        %v3259 = vadd.f32 0.0, %v3258
        %v3260 = vpop.f32.mrf.mxu0
        %v3261 = vpop.f32.mrf.mxu0
        %v3262 = vadd.f32 0.0, %v3261
        %v3263 = vpop.f32.mrf.mxu0
        %3264 = vdwg.mxu0
        %v3266 = vsel %vm2081, %v3018, 0
        %v3269 = vsel %vm3032, %v3026, 0
        %3271 = vmatprep.subr.bf16.mxu0 0
        %3272 = vmatpush1.bf16.msra.mxu0 0
        %3273 = vmatprep.subr.bf16.mxu0 0
        %3274 = vmatpush1.bf16.msra.mxu0 0
        %3275 = vmatprep.subr.bf16.mxu0 0
        %3276 = vmatpush1.bf16.msra.mxu0 0
        %3277 = vmatprep.subr.bf16.mxu0 0
        %3278 = vmatpush1.bf16.msra.mxu0 0
        %3279 = vmatprep.subr.bf16.mxu0 0
        %3280 = vmatpush1.bf16.msra.mxu0 0
        %3281 = vmatprep.subr.bf16.mxu0 0
        %3282 = vmatpush1.bf16.msra.mxu0 0
        %3283 = vmatprep.subr.bf16.mxu0 0
        %3284 = vmatpush1.bf16.msra.mxu0 0
        %3285 = vmatprep.subr.bf16.mxu0 0
        %3286 = vmatpush1.bf16.msra.mxu0 %v3269
        %3287 = vmatprep.subr.bf16.mxu0 0
        %3288 = vmatpush2.bf16.msra.mxu0 0
        %3289 = vmatprep.subr.bf16.mxu0 0
        %3290 = vmatpush2.bf16.msra.mxu0 0
        %3291 = vmatprep.subr.bf16.mxu0 0
        %3292 = vmatpush2.bf16.msra.mxu0 0
        %3293 = vmatprep.subr.bf16.mxu0 0
        %3294 = vmatpush2.bf16.msra.mxu0 0
        %3295 = vmatprep.subr.bf16.mxu0 0
        %3296 = vmatpush2.bf16.msra.mxu0 0
        %3297 = vmatprep.subr.bf16.mxu0 0
        %3298 = vmatpush2.bf16.msra.mxu0 0
        %3299 = vmatprep.subr.bf16.mxu0 0
        %3300 = vmatpush2.bf16.msra.mxu0 0
        %3301 = vmatprep.subr.bf16.mxu0 0
        %3302 = vmatpush2.bf16.msra.mxu0 0
        %3303 = vmatprep.mubr.bf16.mxu0 0
        %3304 = vmatmul.mubr.bf16.gmra.mxu0 %v3266
        %v3305 = vpop.f32.mrf.mxu0
        %v3306 = vadd.f32 0.0, %v3305
        %v3307 = vpop.f32.mrf.mxu0
        %v3308 = vpop.f32.mrf.mxu0
        %v3309 = vadd.f32 0.0, %v3308
        %v3310 = vpop.f32.mrf.mxu0
        %3311 = vdwg.mxu0
        %v3313 = vsel %vm2081, %v3019, 0
        %v3316 = vsel %vm3032, %v3027, 0
        %3318 = vmatprep.subr.bf16.mxu0 0
        %3319 = vmatpush1.bf16.msra.mxu0 0
        %3320 = vmatprep.subr.bf16.mxu0 0
        %3321 = vmatpush1.bf16.msra.mxu0 0
        %3322 = vmatprep.subr.bf16.mxu0 0
        %3323 = vmatpush1.bf16.msra.mxu0 0
        %3324 = vmatprep.subr.bf16.mxu0 0
        %3325 = vmatpush1.bf16.msra.mxu0 0
        %3326 = vmatprep.subr.bf16.mxu0 0
        %3327 = vmatpush1.bf16.msra.mxu0 0
        %3328 = vmatprep.subr.bf16.mxu0 0
        %3329 = vmatpush1.bf16.msra.mxu0 0
        %3330 = vmatprep.subr.bf16.mxu0 0
        %3331 = vmatpush1.bf16.msra.mxu0 0
        %3332 = vmatprep.subr.bf16.mxu0 0
        %3333 = vmatpush1.bf16.msra.mxu0 %v3316
        %3334 = vmatprep.subr.bf16.mxu0 0
        %3335 = vmatpush2.bf16.msra.mxu0 0
        %3336 = vmatprep.subr.bf16.mxu0 0
        %3337 = vmatpush2.bf16.msra.mxu0 0
        %3338 = vmatprep.subr.bf16.mxu0 0
        %3339 = vmatpush2.bf16.msra.mxu0 0
        %3340 = vmatprep.subr.bf16.mxu0 0
        %3341 = vmatpush2.bf16.msra.mxu0 0
        %3342 = vmatprep.subr.bf16.mxu0 0
        %3343 = vmatpush2.bf16.msra.mxu0 0
        %3344 = vmatprep.subr.bf16.mxu0 0
        %3345 = vmatpush2.bf16.msra.mxu0 0
        %3346 = vmatprep.subr.bf16.mxu0 0
        %3347 = vmatpush2.bf16.msra.mxu0 0
        %3348 = vmatprep.subr.bf16.mxu0 0
        %3349 = vmatpush2.bf16.msra.mxu0 0
        %3350 = vmatprep.mubr.bf16.mxu0 0
        %3351 = vmatmul.mubr.bf16.gmra.mxu0 %v3313
        %v3352 = vpop.f32.mrf.mxu0
        %v3353 = vadd.f32 0.0, %v3352
        %v3354 = vpop.f32.mrf.mxu0
        %v3355 = vpop.f32.mrf.mxu0
        %v3356 = vadd.f32 0.0, %v3355
        %v3357 = vpop.f32.mrf.mxu0
        %3358 = vdwg.mxu0
        %v3360 = vsel %vm2081, %v3020, 0
        %v3363 = vsel %vm3032, %v3028, 0
        %3365 = vmatprep.subr.bf16.mxu0 0
        %3366 = vmatpush1.bf16.msra.mxu0 0
        %3367 = vmatprep.subr.bf16.mxu0 0
        %3368 = vmatpush1.bf16.msra.mxu0 0
        %3369 = vmatprep.subr.bf16.mxu0 0
        %3370 = vmatpush1.bf16.msra.mxu0 0
        %3371 = vmatprep.subr.bf16.mxu0 0
        %3372 = vmatpush1.bf16.msra.mxu0 0
        %3373 = vmatprep.subr.bf16.mxu0 0
        %3374 = vmatpush1.bf16.msra.mxu0 0
        %3375 = vmatprep.subr.bf16.mxu0 0
        %3376 = vmatpush1.bf16.msra.mxu0 0
        %3377 = vmatprep.subr.bf16.mxu0 0
        %3378 = vmatpush1.bf16.msra.mxu0 0
        %3379 = vmatprep.subr.bf16.mxu0 0
        %3380 = vmatpush1.bf16.msra.mxu0 %v3363
        %3381 = vmatprep.subr.bf16.mxu0 0
        %3382 = vmatpush2.bf16.msra.mxu0 0
        %3383 = vmatprep.subr.bf16.mxu0 0
        %3384 = vmatpush2.bf16.msra.mxu0 0
        %3385 = vmatprep.subr.bf16.mxu0 0
        %3386 = vmatpush2.bf16.msra.mxu0 0
        %3387 = vmatprep.subr.bf16.mxu0 0
        %3388 = vmatpush2.bf16.msra.mxu0 0
        %3389 = vmatprep.subr.bf16.mxu0 0
        %3390 = vmatpush2.bf16.msra.mxu0 0
        %3391 = vmatprep.subr.bf16.mxu0 0
        %3392 = vmatpush2.bf16.msra.mxu0 0
        %3393 = vmatprep.subr.bf16.mxu0 0
        %3394 = vmatpush2.bf16.msra.mxu0 0
        %3395 = vmatprep.subr.bf16.mxu0 0
        %3396 = vmatpush2.bf16.msra.mxu0 0
        %3397 = vmatprep.mubr.bf16.mxu0 0
        %3398 = vmatmul.mubr.bf16.gmra.mxu0 %v3360
        %v3399 = vpop.f32.mrf.mxu0
        %v3400 = vadd.f32 0.0, %v3399
        %v3401 = vpop.f32.mrf.mxu0
        %v3402 = vpop.f32.mrf.mxu0
        %v3403 = vadd.f32 0.0, %v3402
        %v3404 = vpop.f32.mrf.mxu0
        %3405 = vdwg.mxu0
        %v3406 = vsel %vm389, %v3071, 0.0
        %v3407 = vsel %vm389, %v3118, 0.0
        %v3408 = vadd.f32 %v3406, %v3407
        %v3409 = vsel %vm389, %v3165, 0.0
        %v3410 = vadd.f32 %v3408, %v3409
        %v3411 = vsel %vm389, %v3212, 0.0
        %v3412 = vadd.f32 %v3410, %v3411
        %v3413 = vsel %vm389, %v3259, 0.0
        %v3414 = vadd.f32 %v3412, %v3413
        %v3415 = vsel %vm389, %v3306, 0.0
        %v3416 = vadd.f32 %v3414, %v3415
        %v3417 = vsel %vm389, %v3353, 0.0
        %v3418 = vadd.f32 %v3416, %v3417
        %v3419 = vsel %vm389, %v3400, 0.0
        %v3420 = vadd.f32 %v3418, %v3419
        %v3421 = vsel %vm389, %v3074, 0.0
        %v3422 = vsel %vm389, %v3121, 0.0
        %v3423 = vadd.f32 %v3421, %v3422
        %v3424 = vsel %vm389, %v3168, 0.0
        %v3425 = vadd.f32 %v3423, %v3424
        %v3426 = vsel %vm389, %v3215, 0.0
        %v3427 = vadd.f32 %v3425, %v3426
        %v3428 = vsel %vm389, %v3262, 0.0
        %v3429 = vadd.f32 %v3427, %v3428
        %v3430 = vsel %vm389, %v3309, 0.0
        %v3431 = vadd.f32 %v3429, %v3430
        %v3432 = vsel %vm389, %v3356, 0.0
        %v3433 = vadd.f32 %v3431, %v3432
        %v3434 = vsel %vm389, %v3403, 0.0
        %v3435 = vadd.f32 %v3433, %v3434
        %v3436 = vld [vmem:[%s6] sm:$0x1]
        %v3438 = vlaneseq
        %v3439 = vshrl.u32 %v3438, 7
        %v3440 = vsub.s32 0, %v3439
        %v3441 = vrot.slane %v3436, %v3440
        %v3443 = vadd.f32 %v3420, %v3441
        %v3444 = vadd.f32 %v3435, %v3441
        %3445 = vst.msk [vmem:[%s286] sm:$0xff] %vm389, %v3443
        %3446 = vst.msk [vmem:[%s286 + $0x8] sm:$0xff] %vm389, %v3444
        %s3447 = sand.u32 %s186, 1
        %s3448 = scalar_lea.sflag [#allocation3], %s3447
        %s3449 = sand.u32 %s186, 1
        %s3450 = smul.addr %s3449, 16
        %s3451 = scalar_lea.vmem [#allocation2], %s3450
        // Predicated region
        $region49: #{tpu_custom_call.1} parent=47 // pred_check
          %p3452 = pneg %p196
        $region50: #{tpu_custom_call.1} parent=47 // pred_check_branch
          %3454 = sbr.rel (%p3452) target = $region52
        $region51: #{tpu_custom_call.1} parent=47 // pred_region
          %s3456 = ssub.s32 256, 256
          %3457 = vsyncadd %s3448, %s3456
          %s3458 = smul.addr %s21, 2
          %s3459 = smul.addr %s3458, 128
          %s3460 = scalar_lea.hbm %s7, %s3459
          %s3461 = sshll.u32 %s3451, 4
          %s3462 = int_to_ptr.vmem [resolvable:$true] %s3461
          %3467 = dma.vmem_to_hbm [thread:$0]  %s3462, 256, %s3460, %s3448, 128, 128, 8
        $region52: #{tpu_custom_call.1} parent=47 // pred_fallthru
          _
      $region48: #{tpu_custom_call.1} parent=5 // pred_fallthru
        _
      %p3468 = scmp.le.s32.totalorder 2, %s16
      // Predicated region
      $region53: #{tpu_custom_call.1} parent=5 // pred_check
        %p3469 = pneg %p3468
      $region54: #{tpu_custom_call.1} parent=5 // pred_check_branch
        %3471 = sbr.rel (%p3469) target = $region56
      $region55: #{tpu_custom_call.1} parent=5 // pred_region
        %s3472 = ssub.s32 %s16, 2
        // Predicated region
        $region57: #{tpu_custom_call.1} parent=55 // pred_check
          %p3473 = pneg %p202
        $region58: #{tpu_custom_call.1} parent=55 // pred_check_branch
          %3475 = sbr.rel (%p3473) target = $region60
        $region59: #{tpu_custom_call.1} parent=55 // pred_region
          %s3476 = sand.u32 %s187, 1
          %s3477 = scalar_lea.sflag [#allocation3], %s3476
          %s3478 = sand.u32 %s187, 1
          %s3479 = smul.addr %s3478, 16
          %s3480 = scalar_lea.vmem [#allocation2], %s3479
          %3481 = dma.done %s3477, 256
        $region60: #{tpu_custom_call.1} parent=55 // pred_fallthru
          _
      $region56: #{tpu_custom_call.1} parent=5 // pred_fallthru
        _
    $region6: #{tpu_custom_call.1} parent=1 // loop_footer
      %s20 = sadd.s32 1, %s16
    $region7: #{tpu_custom_call.1} parent=1 // loop_footer_branch
      %15 = sbr.rel target = $region3
    $region8: #{tpu_custom_call.1} parent=1 // loop_exit
      _
    %3482 = vsyncpa [#allocation3], 1
    %s3483 = scalar_lea.sflag [#allocation3], 1
    %3484 = vsyncpa %s3483, 1

</llo_original>
